<compile_context>
chip_gen: v7x
topology: tpu7x:2x2x1
jax: 0.10.0
libtpu: 0.0.40
codegen_flags: <defaults>
</compile_context>

<pallas_src>
import jax
import jax.numpy as jnp
from jax.experimental import pallas as pl
from jax.experimental.pallas import tpu as pltpu

_PAD_L = 8  # left sublane padding of the stencil scratch (aligned interior store)


def _local_rep_kernel(x_ref, bns_ref, bnb_ref, w1_ref, k3_ref, k5_ref,
                      wf_ref, bt_ref, o_ref, xpad_ref, acc_ref):
    """One grid step == one image, channels-last (H, W, C) with C on lanes."""
    _, H, W, C = x_ref.shape
    HW = H * W
    f32 = jnp.float32
    bf16 = jnp.bfloat16
    PL = _PAD_L
    Wp = W + 2 * PL  # padded scratch width

    # ---- SyncBatchNorm folded into per-channel scale/shift -------------------
    xb = x_ref[0].astype(f32) * bns_ref[...] + bnb_ref[...]          # (H, W, C)

    # ---- depthwise 1x1 branch -> first projection dot (bf16 MXU, f32 acc) ----
    x1 = xb * w1_ref[...]                                            # (H, W, C)
    acc_ref[...] = jnp.dot(x1.reshape(HW, C).astype(bf16), wf_ref[0],
                           preferred_element_type=f32)

    # ---- padded scratch: halo-only zeroing + aligned interior write ----------
    # Halo re-zeroed every step (scratch persists across grid steps / cores);
    # the interior is fully overwritten so it needs no zeroing.
    xpad_ref[0:2, :, :] = jnp.zeros((2, Wp, C), f32)                  # top rows
    xpad_ref[2 + H:4 + H, :, :] = jnp.zeros((2, Wp, C), f32)          # bottom rows
    xpad_ref[2:2 + H, 0:PL, :] = jnp.zeros((H, PL, C), f32)           # left cols (8-aligned)
    xpad_ref[2:2 + H, PL + W:PL + W + PL, :] = jnp.zeros((H, PL, C), f32)  # right cols
    xpad_ref[2:2 + H, PL:PL + W, :] = xb                              # aligned interior

    # ---- hoist the 5 distinct column-shifted tap slabs (one realign each) ----
    # Column offsets PL-2 .. PL+2 are shared between the 3x3 and 5x5 stencils;
    # row offsets index the free leading dim.
    slabs = [xpad_ref[:, PL - 2 + c: PL - 2 + c + W, :] for c in range(5)]

    # ---- depthwise 3x3 branch (pad=1) -> second projection dot ---------------
    k3 = k3_ref[...].astype(f32)                                      # (3, 3, C)
    x3 = jnp.zeros((H, W, C), f32)
    for di in range(3):
        for dj in range(3):
            x3 = x3 + slabs[dj + 1][1 + di:1 + di + H] * k3[di, dj]
    acc_ref[...] += jnp.dot(x3.reshape(HW, C).astype(bf16), wf_ref[1],
                            preferred_element_type=f32)

    # ---- depthwise 5x5 branch (pad=2) -> third projection dot ----------------
    k5 = k5_ref[...].astype(f32)                                      # (5, 5, C)
    x5 = jnp.zeros((H, W, C), f32)
    for di in range(5):
        for dj in range(5):
            x5 = x5 + slabs[dj][di:di + H] * k5[di, dj]
    acc_ref[...] += jnp.dot(x5.reshape(HW, C).astype(bf16), wf_ref[2],
                            preferred_element_type=f32)

    # ---- fused bias (branch biases + projection bias + out-Linear, exact f32) -
    o_ref[0] = (acc_ref[...] + bt_ref[...]).astype(o_ref.dtype)


def local_representation(x_nchw, params, *, eps=1e-5):
    """x_nchw: (B, C, H, W). Returns (B, H*W, C), matching the PyTorch forward."""
    B, C, H, W = x_nchw.shape
    HW = H * W
    f32 = jnp.float32

    assert C % 128 == 0, "d_model must be a multiple of 128 (lane-dense)"
    assert W % 8 == 0, "W must be a multiple of 8 (aligned sublane stores / free reshapes)"

    # TODO(synk): accept NHWC input upstream to drop this wrapper transpose
    # (an extra HBM pass over x before the kernel runs).
    x_nhwc = jnp.transpose(x_nchw, (0, 2, 3, 1))                      # (B, H, W, C)

    # SyncBatchNorm == BatchNorm2d training-forward on a single device (biased
    # batch stats), computed in one fused sum / sum-of-squares pass and folded
    # into a per-channel scale/shift applied inside the kernel.
    xf = x_nhwc.astype(f32)
    n = B * H * W
    s1 = jnp.sum(xf, axis=(0, 1, 2))
    s2 = jnp.sum(xf * xf, axis=(0, 1, 2))
    mean = s1 / n
    var = jnp.maximum(s2 / n - mean * mean, 0.0)
    inv = jax.lax.rsqrt(var + eps)
    gamma = params["bn_gamma"].astype(f32)
    beta = params["bn_beta"].astype(f32)
    bn_scale = (gamma * inv).reshape(1, C)
    bn_shift = (beta - gamma * mean * inv).reshape(1, C)

    # Depthwise weights, channels-last.
    w1 = params["w1"].reshape(1, C).astype(f32)
    k3 = jnp.transpose(params["w3"].reshape(C, 3, 3), (1, 2, 0)).astype(f32)   # (3,3,C)
    k5 = jnp.transpose(params["w5"].reshape(C, 5, 5), (1, 2, 0)).astype(f32)   # (5,5,C)

    # Fold the output Linear into the 1x1 projection (exact algebra):
    #   out = (cat @ Wp^T + bp) @ Wo^T + bo = cat @ (Wp^T Wo^T) + (bp @ Wo^T + bo)
    # and fold the branch biases b1/b3/b5 into the same constant term.
    wp_t = params["wp"].reshape(C, 3 * C).T.astype(f32)               # (3C, C) [in, out_proj]
    wo_t = params["wo"].T.astype(f32)                                 # (C, C)  [in, out]
    w_fold = (wp_t @ wo_t).reshape(3, C, C)                           # per-branch (C, C)
    b_total = (params["b1"].astype(f32) @ w_fold[0]
               + params["b3"].astype(f32) @ w_fold[1]
               + params["b5"].astype(f32) @ w_fold[2]
               + params["bp"].astype(f32) @ wo_t
               + params["bo"].astype(f32)).reshape(1, C)

    # bf16 operands for the MXU (accumulation is f32 inside the kernel).
    w_fold_bf16 = w_fold.astype(jnp.bfloat16)

    # Roofline hint for XLA's scheduler around the custom call.
    flops = B * HW * C * (2 + 2 + 18 + 50) + B * 2 * HW * 3 * C * C
    bytes_accessed = (2 * B * HW * C * 4          # x in + out
                      + 3 * C * C * 2             # folded projection weights (bf16)
                      + (2 + 1 + 9 + 25 + 1) * C * 4)
    cost = pl.CostEstimate(flops=int(flops), transcendentals=0,
                           bytes_accessed=int(bytes_accessed))

    # Explicit scoped-VMEM budget sized to the real working set (cap: v7x 64 MiB).
    itemsize = x_nhwc.dtype.itemsize
    working = (2 * H * W * C * itemsize            # double-buffered input block
               + 2 * HW * C * itemsize             # double-buffered output block
               + (H + 4) * (W + 2 * _PAD_L) * C * 4   # padded stencil scratch
               + HW * C * 4                        # f32 accumulator scratch
               + 3 * C * C * 2                     # folded weights (bf16)
               + 5 * (H + 4) * W * C * 4           # hoisted tap slabs
               + 3 * H * W * C * 4                 # live branch intermediates
               + 48 * C * 4)                       # biases / BN / stencil taps
    vmem_limit = int(min(max(2 * working, 16 << 20), 64 << 20))

    out = pl.pallas_call(
        _local_rep_kernel,
        out_shape=jax.ShapeDtypeStruct((B, HW, C), x_nchw.dtype),
        grid_spec=pltpu.PrefetchScalarGridSpec(
            num_scalar_prefetch=0,
            grid=(B,),   # one image per step; B>=2 -> pipelining + both TCs
            in_specs=[
                pl.BlockSpec((1, H, W, C), lambda b: (b, 0, 0, 0)),   # x image
                # Constant-index operands stay VMEM-resident across steps.
                pl.BlockSpec((1, C), lambda b: (0, 0)),               # bn scale
                pl.BlockSpec((1, C), lambda b: (0, 0)),               # bn shift
                pl.BlockSpec((1, C), lambda b: (0, 0)),               # dw 1x1 w
                pl.BlockSpec((3, 3, C), lambda b: (0, 0, 0)),         # dw 3x3 w
                pl.BlockSpec((5, 5, C), lambda b: (0, 0, 0)),         # dw 5x5 w
                pl.BlockSpec((3, C, C), lambda b: (0, 0, 0)),         # folded proj w (bf16)
                pl.BlockSpec((1, C), lambda b: (0, 0)),               # folded bias (f32)
            ],
            out_specs=pl.BlockSpec((1, HW, C), lambda b: (b, 0, 0)),
            scratch_shapes=[
                pltpu.VMEM((H + 4, W + 2 * _PAD_L, C), jnp.float32),  # padded stencil
                pltpu.VMEM((HW, C), jnp.float32),                     # f32 accumulator
            ],
        ),
        compiler_params=pltpu.CompilerParams(
            dimension_semantics=("parallel",),
            vmem_limit_bytes=vmem_limit),
        cost_estimate=cost,
    )(x_nhwc, bn_scale, bn_shift, w1, k3, k5, w_fold_bf16, b_total)

    return out


def _conv_params(kw, kb, out_ch, in_ch_per_group, kh, kwid, dtype=jnp.float32):
    """PyTorch nn.Conv2d default init (kaiming-uniform with a=sqrt(5))."""
    fan_in = in_ch_per_group * kh * kwid
    bound = 1.0 / (fan_in ** 0.5)
    w = jax.random.uniform(kw, (out_ch, in_ch_per_group, kh, kwid), dtype,
                           minval=-bound, maxval=bound)
    b = jax.random.uniform(kb, (out_ch,), dtype, minval=-bound, maxval=bound)
    return w, b


if __name__ == "__main__":
    # Small but lane-dense shapes: d_model on the 128-lane axis, W multiple of 8.
    B, C, H, W = 2, 128, 16, 16

    key = jax.random.PRNGKey(0)
    ks = jax.random.split(key, 11)

    x = jax.random.normal(ks[0], (B, C, H, W), jnp.float32)

    w1, b1 = _conv_params(ks[1], ks[2], C, 1, 1, 1)       # depthwise 1x1
    w3, b3 = _conv_params(ks[3], ks[4], C, 1, 3, 3)       # depthwise 3x3
    w5, b5 = _conv_params(ks[5], ks[6], C, 1, 5, 5)       # depthwise 5x5
    wp, bp = _conv_params(ks[7], ks[8], C, 3 * C, 1, 1)   # dense 1x1 projection
    lb = 1.0 / (C ** 0.5)
    wo = jax.random.uniform(ks[9], (C, C), jnp.float32, minval=-lb, maxval=lb)
    bo = jax.random.uniform(ks[10], (C,), jnp.float32, minval=-lb, maxval=lb)

    params = dict(bn_gamma=jnp.ones((C,), jnp.float32),
                  bn_beta=jnp.zeros((C,), jnp.float32),
                  w1=w1, b1=b1, w3=w3, b3=b3, w5=w5, b5=b5,
                  wp=wp, bp=bp, wo=wo, bo=bo)

    out = local_representation(x, params)
    jax.block_until_ready(out)
    assert out.shape == (B, H * W, C), out.shape

    # ---- plain-JAX reference (lax convolutions, NCHW like the PyTorch module) --
    def depthwise(xi, w, b, pad):
        y = jax.lax.conv_general_dilated(
            xi, w, window_strides=(1, 1), padding=((pad, pad), (pad, pad)),
            dimension_numbers=("NCHW", "OIHW", "NCHW"),
            feature_group_count=xi.shape[1])
        return y + b.reshape(1, -1, 1, 1)

    eps = 1e-5
    mean = x.mean(axis=(0, 2, 3), keepdims=True)
    var = x.var(axis=(0, 2, 3), keepdims=True)
    xb = ((x - mean) / jnp.sqrt(var + eps)
          * params["bn_gamma"].reshape(1, -1, 1, 1)
          + params["bn_beta"].reshape(1, -1, 1, 1))
    x1r = depthwise(xb, w1, b1, 0)
    x3r = depthwise(xb, w3, b3, 1)
    x5r = depthwise(xb, w5, b5, 2)
    cat = jnp.concatenate([x1r, x3r, x5r], axis=1)
    proj = jax.lax.conv_general_dilated(
        cat, wp, window_strides=(1, 1), padding="VALID",
        dimension_numbers=("NCHW", "OIHW", "NCHW")) + bp.reshape(1, -1, 1, 1)
    ref = proj.reshape(B, C, H * W).transpose(0, 2, 1) @ wo.T + bo

    # Tolerance accounts for bf16 MXU operands + folded-Wo rounding (exact algebra,
    # different rounding order) versus the all-f32 reference.
    err = float(jnp.max(jnp.abs(out - ref)))
    assert jnp.allclose(out, ref, atol=2e-2, rtol=2e-2), err

    print("KERNEL_OK")
</pallas_src>

<mosaic_0001>
module attributes {stable_mosaic.version = 11 : i64} {
  func.func @_local_rep_kernel(%arg0: i32, %arg1: memref<1x16x16x128xf32, #tpu.memory_space<vmem>>, %arg2: memref<1x128xf32, #tpu.memory_space<vmem>>, %arg3: memref<1x128xf32, #tpu.memory_space<vmem>>, %arg4: memref<1x128xf32, #tpu.memory_space<vmem>>, %arg5: memref<3x3x128xf32, #tpu.memory_space<vmem>>, %arg6: memref<5x5x128xf32, #tpu.memory_space<vmem>>, %arg7: memref<3x128x128xbf16, #tpu.memory_space<vmem>>, %arg8: memref<1x128xf32, #tpu.memory_space<vmem>>, %arg9: memref<1x256x128xf32, #tpu.memory_space<vmem>>, %arg10: memref<20x32x128xf32, #tpu.memory_space<vmem>>, %arg11: memref<256x128xf32, #tpu.memory_space<vmem>>) attributes {dimension_semantics = [#tpu.dimension_semantics<parallel>], iteration_bounds = array<i64: 2>, scalar_prefetch = 0 : i64, scratch_operands = 2 : i64, tpu.core_type = #tpu.core_type<tc>, window_params = [{transform_indices = @transform_0, window_bounds = array<i64: 1, 16, 16, 128>}, {pipeline_mode = #tpu.pipeline_mode<synchronous>, transform_indices = @transform_1, window_bounds = array<i64: 1, 128>}, {pipeline_mode = #tpu.pipeline_mode<synchronous>, transform_indices = @transform_2, window_bounds = array<i64: 1, 128>}, {pipeline_mode = #tpu.pipeline_mode<synchronous>, transform_indices = @transform_3, window_bounds = array<i64: 1, 128>}, {pipeline_mode = #tpu.pipeline_mode<synchronous>, transform_indices = @transform_4, window_bounds = array<i64: 3, 3, 128>}, {pipeline_mode = #tpu.pipeline_mode<synchronous>, transform_indices = @transform_5, window_bounds = array<i64: 5, 5, 128>}, {pipeline_mode = #tpu.pipeline_mode<synchronous>, transform_indices = @transform_6, window_bounds = array<i64: 3, 128, 128>}, {pipeline_mode = #tpu.pipeline_mode<synchronous>, transform_indices = @transform_7, window_bounds = array<i64: 1, 128>}, {transform_indices = @transform_8, window_bounds = array<i64: 1, 256, 128>}]} {
    %c0 = arith.constant 0 : index
    %c0_0 = arith.constant 0 : index
    %c0_1 = arith.constant 0 : index
    %c0_2 = arith.constant 0 : index
    %0 = vector.load %arg1[%c0, %c0_0, %c0_1, %c0_2] : memref<1x16x16x128xf32, #tpu.memory_space<vmem>>, vector<1x16x16x128xf32>
    %1 = vector.shape_cast %0 : vector<1x16x16x128xf32> to vector<16x16x128xf32>
    %c0_3 = arith.constant 0 : index
    %c0_4 = arith.constant 0 : index
    %2 = vector.load %arg2[%c0_3, %c0_4] : memref<1x128xf32, #tpu.memory_space<vmem>>, vector<1x128xf32>
    %3 = vector.shape_cast %2 : vector<1x128xf32> to vector<1x1x128xf32>
    %4 = vector.broadcast %3 : vector<1x1x128xf32> to vector<16x16x128xf32>
    %5 = arith.mulf %1, %4 : vector<16x16x128xf32>
    %c0_5 = arith.constant 0 : index
    %c0_6 = arith.constant 0 : index
    %6 = vector.load %arg3[%c0_5, %c0_6] : memref<1x128xf32, #tpu.memory_space<vmem>>, vector<1x128xf32>
    %7 = vector.shape_cast %6 : vector<1x128xf32> to vector<1x1x128xf32>
    %8 = vector.broadcast %7 : vector<1x1x128xf32> to vector<16x16x128xf32>
    %9 = arith.addf %5, %8 : vector<16x16x128xf32>
    %c0_7 = arith.constant 0 : index
    %c0_8 = arith.constant 0 : index
    %10 = vector.load %arg4[%c0_7, %c0_8] : memref<1x128xf32, #tpu.memory_space<vmem>>, vector<1x128xf32>
    %11 = vector.shape_cast %10 : vector<1x128xf32> to vector<1x1x128xf32>
    %12 = vector.broadcast %11 : vector<1x1x128xf32> to vector<16x16x128xf32>
    %13 = arith.mulf %9, %12 : vector<16x16x128xf32>
    %14 = vector.shape_cast %13 : vector<16x16x128xf32> to vector<256x128xf32>
    %15 = arith.truncf %14 : vector<256x128xf32> to vector<256x128xbf16>
    %c0_9 = arith.constant 0 : index
    %c0_10 = arith.constant 0 : index
    %c0_11 = arith.constant 0 : index
    %16 = vector.load %arg7[%c0_9, %c0_10, %c0_11] : memref<3x128x128xbf16, #tpu.memory_space<vmem>>, vector<1x128x128xbf16>
    %17 = vector.shape_cast %16 : vector<1x128x128xbf16> to vector<128x128xbf16>
    %cst = arith.constant dense<0.000000e+00> : vector<256x128xf32>
    %18 = tpu.matmul %15, %17, %cst {dimension_numbers = #tpu.dot_dimension_numbers<[1], [0], [0], [1], [0, 0, 1, 1], [], []>} : vector<256x128xbf16>, vector<128x128xbf16>, vector<256x128xf32> -> vector<256x128xf32>
    %c0_12 = arith.constant 0 : index
    %c0_13 = arith.constant 0 : index
    %19 = vector.load %arg11[%c0_12, %c0_13] : memref<256x128xf32, #tpu.memory_space<vmem>>, vector<256x128xf32>
    tpu.vector_store %arg11[%c0_12, %c0_13], %18 {strides = array<i32>} : memref<256x128xf32, #tpu.memory_space<vmem>>, vector<256x128xf32>,
    %cst_14 = arith.constant 0.000000e+00 : f32
    %20 = vector.broadcast %cst_14 : f32 to vector<2x32x128xf32>
    %c0_15 = arith.constant 0 : index
    %c0_16 = arith.constant 0 : index
    %c0_17 = arith.constant 0 : index
    %21 = vector.load %arg10[%c0_15, %c0_16, %c0_17] : memref<20x32x128xf32, #tpu.memory_space<vmem>>, vector<2x32x128xf32>
    tpu.vector_store %arg10[%c0_15, %c0_16, %c0_17], %20 {strides = array<i32>} : memref<20x32x128xf32, #tpu.memory_space<vmem>>, vector<2x32x128xf32>,
    %cst_18 = arith.constant 0.000000e+00 : f32
    %22 = vector.broadcast %cst_18 : f32 to vector<2x32x128xf32>
    %c18 = arith.constant 18 : index
    %c0_19 = arith.constant 0 : index
    %c0_20 = arith.constant 0 : index
    %23 = vector.load %arg10[%c18, %c0_19, %c0_20] : memref<20x32x128xf32, #tpu.memory_space<vmem>>, vector<2x32x128xf32>
    tpu.vector_store %arg10[%c18, %c0_19, %c0_20], %22 {strides = array<i32>} : memref<20x32x128xf32, #tpu.memory_space<vmem>>, vector<2x32x128xf32>,
    %cst_21 = arith.constant 0.000000e+00 : f32
    %24 = vector.broadcast %cst_21 : f32 to vector<16x8x128xf32>
    %c2 = arith.constant 2 : index
    %c0_22 = arith.constant 0 : index
    %c0_23 = arith.constant 0 : index
    %25 = vector.load %arg10[%c2, %c0_22, %c0_23] : memref<20x32x128xf32, #tpu.memory_space<vmem>>, vector<16x8x128xf32>
    tpu.vector_store %arg10[%c2, %c0_22, %c0_23], %24 {strides = array<i32>} : memref<20x32x128xf32, #tpu.memory_space<vmem>>, vector<16x8x128xf32>,
    %cst_24 = arith.constant 0.000000e+00 : f32
    %26 = vector.broadcast %cst_24 : f32 to vector<16x8x128xf32>
    %c2_25 = arith.constant 2 : index
    %c24 = arith.constant 24 : index
    %c0_26 = arith.constant 0 : index
    %27 = vector.load %arg10[%c2_25, %c24, %c0_26] : memref<20x32x128xf32, #tpu.memory_space<vmem>>, vector<16x8x128xf32>
    tpu.vector_store %arg10[%c2_25, %c24, %c0_26], %26 {strides = array<i32>} : memref<20x32x128xf32, #tpu.memory_space<vmem>>, vector<16x8x128xf32>,
    %c2_27 = arith.constant 2 : index
    %c8 = arith.constant 8 : index
    %c0_28 = arith.constant 0 : index
    %28 = vector.load %arg10[%c2_27, %c8, %c0_28] : memref<20x32x128xf32, #tpu.memory_space<vmem>>, vector<16x16x128xf32>
    tpu.vector_store %arg10[%c2_27, %c8, %c0_28], %9 {strides = array<i32>} : memref<20x32x128xf32, #tpu.memory_space<vmem>>, vector<16x16x128xf32>,
    %c0_29 = arith.constant 0 : index
    %c6 = arith.constant 6 : index
    %c0_30 = arith.constant 0 : index
    %29 = vector.load %arg10[%c0_29, %c6, %c0_30] : memref<20x32x128xf32, #tpu.memory_space<vmem>>, vector<20x16x128xf32>
    %c0_31 = arith.constant 0 : index
    %c7 = arith.constant 7 : index
    %c0_32 = arith.constant 0 : index
    %30 = vector.load %arg10[%c0_31, %c7, %c0_32] : memref<20x32x128xf32, #tpu.memory_space<vmem>>, vector<20x16x128xf32>
    %c0_33 = arith.constant 0 : index
    %c8_34 = arith.constant 8 : index
    %c0_35 = arith.constant 0 : index
    %31 = vector.load %arg10[%c0_33, %c8_34, %c0_35] : memref<20x32x128xf32, #tpu.memory_space<vmem>>, vector<20x16x128xf32>
    %c0_36 = arith.constant 0 : index
    %c9 = arith.constant 9 : index
    %c0_37 = arith.constant 0 : index
    %32 = vector.load %arg10[%c0_36, %c9, %c0_37] : memref<20x32x128xf32, #tpu.memory_space<vmem>>, vector<20x16x128xf32>
    %c0_38 = arith.constant 0 : index
    %c10 = arith.constant 10 : index
    %c0_39 = arith.constant 0 : index
    %33 = vector.load %arg10[%c0_38, %c10, %c0_39] : memref<20x32x128xf32, #tpu.memory_space<vmem>>, vector<20x16x128xf32>
    %c0_40 = arith.constant 0 : index
    %c0_41 = arith.constant 0 : index
    %c0_42 = arith.constant 0 : index
    %34 = vector.load %arg5[%c0_40, %c0_41, %c0_42] : memref<3x3x128xf32, #tpu.memory_space<vmem>>, vector<3x3x128xf32>
    %cst_43 = arith.constant 0.000000e+00 : f32
    %35 = vector.broadcast %cst_43 : f32 to vector<16x16x128xf32>
    %36 = vector.extract_strided_slice %30 {offsets = [1, 0, 0], sizes = [16, 16, 128], strides = [1, 1, 1]} : vector<20x16x128xf32> to vector<16x16x128xf32>
    %37 = vector.extract_strided_slice %34 {offsets = [0, 0, 0], sizes = [1, 1, 128], strides = [1, 1, 1]} : vector<3x3x128xf32> to vector<1x1x128xf32>
    %38 = vector.shape_cast %37 : vector<1x1x128xf32> to vector<128xf32>
    %39 = vector.shape_cast %38 : vector<128xf32> to vector<1x1x128xf32>
    %40 = vector.broadcast %39 : vector<1x1x128xf32> to vector<16x16x128xf32>
    %41 = arith.mulf %36, %40 : vector<16x16x128xf32>
    %42 = arith.addf %35, %41 : vector<16x16x128xf32>
    %43 = vector.extract_strided_slice %31 {offsets = [1, 0, 0], sizes = [16, 16, 128], strides = [1, 1, 1]} : vector<20x16x128xf32> to vector<16x16x128xf32>
    %44 = vector.extract_strided_slice %34 {offsets = [0, 1, 0], sizes = [1, 1, 128], strides = [1, 1, 1]} : vector<3x3x128xf32> to vector<1x1x128xf32>
    %45 = vector.shape_cast %44 : vector<1x1x128xf32> to vector<128xf32>
    %46 = vector.shape_cast %45 : vector<128xf32> to vector<1x1x128xf32>
    %47 = vector.broadcast %46 : vector<1x1x128xf32> to vector<16x16x128xf32>
    %48 = arith.mulf %43, %47 : vector<16x16x128xf32>
    %49 = arith.addf %42, %48 : vector<16x16x128xf32>
    %50 = vector.extract_strided_slice %32 {offsets = [1, 0, 0], sizes = [16, 16, 128], strides = [1, 1, 1]} : vector<20x16x128xf32> to vector<16x16x128xf32>
    %51 = vector.extract_strided_slice %34 {offsets = [0, 2, 0], sizes = [1, 1, 128], strides = [1, 1, 1]} : vector<3x3x128xf32> to vector<1x1x128xf32>
    %52 = vector.shape_cast %51 : vector<1x1x128xf32> to vector<128xf32>
    %53 = vector.shape_cast %52 : vector<128xf32> to vector<1x1x128xf32>
    %54 = vector.broadcast %53 : vector<1x1x128xf32> to vector<16x16x128xf32>
    %55 = arith.mulf %50, %54 : vector<16x16x128xf32>
    %56 = arith.addf %49, %55 : vector<16x16x128xf32>
    %57 = vector.extract_strided_slice %30 {offsets = [2, 0, 0], sizes = [16, 16, 128], strides = [1, 1, 1]} : vector<20x16x128xf32> to vector<16x16x128xf32>
    %58 = vector.extract_strided_slice %34 {offsets = [1, 0, 0], sizes = [1, 1, 128], strides = [1, 1, 1]} : vector<3x3x128xf32> to vector<1x1x128xf32>
    %59 = vector.shape_cast %58 : vector<1x1x128xf32> to vector<128xf32>
    %60 = vector.shape_cast %59 : vector<128xf32> to vector<1x1x128xf32>
    %61 = vector.broadcast %60 : vector<1x1x128xf32> to vector<16x16x128xf32>
    %62 = arith.mulf %57, %61 : vector<16x16x128xf32>
    %63 = arith.addf %56, %62 : vector<16x16x128xf32>
    %64 = vector.extract_strided_slice %31 {offsets = [2, 0, 0], sizes = [16, 16, 128], strides = [1, 1, 1]} : vector<20x16x128xf32> to vector<16x16x128xf32>
    %65 = vector.extract_strided_slice %34 {offsets = [1, 1, 0], sizes = [1, 1, 128], strides = [1, 1, 1]} : vector<3x3x128xf32> to vector<1x1x128xf32>
    %66 = vector.shape_cast %65 : vector<1x1x128xf32> to vector<128xf32>
    %67 = vector.shape_cast %66 : vector<128xf32> to vector<1x1x128xf32>
    %68 = vector.broadcast %67 : vector<1x1x128xf32> to vector<16x16x128xf32>
    %69 = arith.mulf %64, %68 : vector<16x16x128xf32>
    %70 = arith.addf %63, %69 : vector<16x16x128xf32>
    %71 = vector.extract_strided_slice %32 {offsets = [2, 0, 0], sizes = [16, 16, 128], strides = [1, 1, 1]} : vector<20x16x128xf32> to vector<16x16x128xf32>
    %72 = vector.extract_strided_slice %34 {offsets = [1, 2, 0], sizes = [1, 1, 128], strides = [1, 1, 1]} : vector<3x3x128xf32> to vector<1x1x128xf32>
    %73 = vector.shape_cast %72 : vector<1x1x128xf32> to vector<128xf32>
    %74 = vector.shape_cast %73 : vector<128xf32> to vector<1x1x128xf32>
    %75 = vector.broadcast %74 : vector<1x1x128xf32> to vector<16x16x128xf32>
    %76 = arith.mulf %71, %75 : vector<16x16x128xf32>
    %77 = arith.addf %70, %76 : vector<16x16x128xf32>
    %78 = vector.extract_strided_slice %30 {offsets = [3, 0, 0], sizes = [16, 16, 128], strides = [1, 1, 1]} : vector<20x16x128xf32> to vector<16x16x128xf32>
    %79 = vector.extract_strided_slice %34 {offsets = [2, 0, 0], sizes = [1, 1, 128], strides = [1, 1, 1]} : vector<3x3x128xf32> to vector<1x1x128xf32>
    %80 = vector.shape_cast %79 : vector<1x1x128xf32> to vector<128xf32>
    %81 = vector.shape_cast %80 : vector<128xf32> to vector<1x1x128xf32>
    %82 = vector.broadcast %81 : vector<1x1x128xf32> to vector<16x16x128xf32>
    %83 = arith.mulf %78, %82 : vector<16x16x128xf32>
    %84 = arith.addf %77, %83 : vector<16x16x128xf32>
    %85 = vector.extract_strided_slice %31 {offsets = [3, 0, 0], sizes = [16, 16, 128], strides = [1, 1, 1]} : vector<20x16x128xf32> to vector<16x16x128xf32>
    %86 = vector.extract_strided_slice %34 {offsets = [2, 1, 0], sizes = [1, 1, 128], strides = [1, 1, 1]} : vector<3x3x128xf32> to vector<1x1x128xf32>
    %87 = vector.shape_cast %86 : vector<1x1x128xf32> to vector<128xf32>
    %88 = vector.shape_cast %87 : vector<128xf32> to vector<1x1x128xf32>
    %89 = vector.broadcast %88 : vector<1x1x128xf32> to vector<16x16x128xf32>
    %90 = arith.mulf %85, %89 : vector<16x16x128xf32>
    %91 = arith.addf %84, %90 : vector<16x16x128xf32>
    %92 = vector.extract_strided_slice %32 {offsets = [3, 0, 0], sizes = [16, 16, 128], strides = [1, 1, 1]} : vector<20x16x128xf32> to vector<16x16x128xf32>
    %93 = vector.extract_strided_slice %34 {offsets = [2, 2, 0], sizes = [1, 1, 128], strides = [1, 1, 1]} : vector<3x3x128xf32> to vector<1x1x128xf32>
    %94 = vector.shape_cast %93 : vector<1x1x128xf32> to vector<128xf32>
    %95 = vector.shape_cast %94 : vector<128xf32> to vector<1x1x128xf32>
    %96 = vector.broadcast %95 : vector<1x1x128xf32> to vector<16x16x128xf32>
    %97 = arith.mulf %92, %96 : vector<16x16x128xf32>
    %98 = arith.addf %91, %97 : vector<16x16x128xf32>
    %c0_44 = arith.constant 0 : index
    %c0_45 = arith.constant 0 : index
    %99 = vector.load %arg11[%c0_44, %c0_45] : memref<256x128xf32, #tpu.memory_space<vmem>>, vector<256x128xf32>
    %100 = vector.shape_cast %98 : vector<16x16x128xf32> to vector<256x128xf32>
    %101 = arith.truncf %100 : vector<256x128xf32> to vector<256x128xbf16>
    %c1 = arith.constant 1 : index
    %c0_46 = arith.constant 0 : index
    %c0_47 = arith.constant 0 : index
    %102 = vector.load %arg7[%c1, %c0_46, %c0_47] : memref<3x128x128xbf16, #tpu.memory_space<vmem>>, vector<1x128x128xbf16>
    %103 = vector.shape_cast %102 : vector<1x128x128xbf16> to vector<128x128xbf16>
    %cst_48 = arith.constant dense<0.000000e+00> : vector<256x128xf32>
    %104 = tpu.matmul %101, %103, %cst_48 {dimension_numbers = #tpu.dot_dimension_numbers<[1], [0], [0], [1], [0, 0, 1, 1], [], []>} : vector<256x128xbf16>, vector<128x128xbf16>, vector<256x128xf32> -> vector<256x128xf32>
    %105 = arith.addf %99, %104 : vector<256x128xf32>
    %c0_49 = arith.constant 0 : index
    %c0_50 = arith.constant 0 : index
    %106 = vector.load %arg11[%c0_49, %c0_50] : memref<256x128xf32, #tpu.memory_space<vmem>>, vector<256x128xf32>
    tpu.vector_store %arg11[%c0_49, %c0_50], %105 {strides = array<i32>} : memref<256x128xf32, #tpu.memory_space<vmem>>, vector<256x128xf32>,
    %c0_51 = arith.constant 0 : index
    %c0_52 = arith.constant 0 : index
    %c0_53 = arith.constant 0 : index
    %107 = vector.load %arg6[%c0_51, %c0_52, %c0_53] : memref<5x5x128xf32, #tpu.memory_space<vmem>>, vector<5x5x128xf32>
    %cst_54 = arith.constant 0.000000e+00 : f32
    %108 = vector.broadcast %cst_54 : f32 to vector<16x16x128xf32>
    %109 = vector.extract_strided_slice %29 {offsets = [0, 0, 0], sizes = [16, 16, 128], strides = [1, 1, 1]} : vector<20x16x128xf32> to vector<16x16x128xf32>
    %110 = vector.extract_strided_slice %107 {offsets = [0, 0, 0], sizes = [1, 1, 128], strides = [1, 1, 1]} : vector<5x5x128xf32> to vector<1x1x128xf32>
    %111 = vector.shape_cast %110 : vector<1x1x128xf32> to vector<128xf32>
    %112 = vector.shape_cast %111 : vector<128xf32> to vector<1x1x128xf32>
    %113 = vector.broadcast %112 : vector<1x1x128xf32> to vector<16x16x128xf32>
    %114 = arith.mulf %109, %113 : vector<16x16x128xf32>
    %115 = arith.addf %108, %114 : vector<16x16x128xf32>
    %116 = vector.extract_strided_slice %30 {offsets = [0, 0, 0], sizes = [16, 16, 128], strides = [1, 1, 1]} : vector<20x16x128xf32> to vector<16x16x128xf32>
    %117 = vector.extract_strided_slice %107 {offsets = [0, 1, 0], sizes = [1, 1, 128], strides = [1, 1, 1]} : vector<5x5x128xf32> to vector<1x1x128xf32>
    %118 = vector.shape_cast %117 : vector<1x1x128xf32> to vector<128xf32>
    %119 = vector.shape_cast %118 : vector<128xf32> to vector<1x1x128xf32>
    %120 = vector.broadcast %119 : vector<1x1x128xf32> to vector<16x16x128xf32>
    %121 = arith.mulf %116, %120 : vector<16x16x128xf32>
    %122 = arith.addf %115, %121 : vector<16x16x128xf32>
    %123 = vector.extract_strided_slice %31 {offsets = [0, 0, 0], sizes = [16, 16, 128], strides = [1, 1, 1]} : vector<20x16x128xf32> to vector<16x16x128xf32>
    %124 = vector.extract_strided_slice %107 {offsets = [0, 2, 0], sizes = [1, 1, 128], strides = [1, 1, 1]} : vector<5x5x128xf32> to vector<1x1x128xf32>
    %125 = vector.shape_cast %124 : vector<1x1x128xf32> to vector<128xf32>
    %126 = vector.shape_cast %125 : vector<128xf32> to vector<1x1x128xf32>
    %127 = vector.broadcast %126 : vector<1x1x128xf32> to vector<16x16x128xf32>
    %128 = arith.mulf %123, %127 : vector<16x16x128xf32>
    %129 = arith.addf %122, %128 : vector<16x16x128xf32>
    %130 = vector.extract_strided_slice %32 {offsets = [0, 0, 0], sizes = [16, 16, 128], strides = [1, 1, 1]} : vector<20x16x128xf32> to vector<16x16x128xf32>
    %131 = vector.extract_strided_slice %107 {offsets = [0, 3, 0], sizes = [1, 1, 128], strides = [1, 1, 1]} : vector<5x5x128xf32> to vector<1x1x128xf32>
    %132 = vector.shape_cast %131 : vector<1x1x128xf32> to vector<128xf32>
    %133 = vector.shape_cast %132 : vector<128xf32> to vector<1x1x128xf32>
    %134 = vector.broadcast %133 : vector<1x1x128xf32> to vector<16x16x128xf32>
    %135 = arith.mulf %130, %134 : vector<16x16x128xf32>
    %136 = arith.addf %129, %135 : vector<16x16x128xf32>
    %137 = vector.extract_strided_slice %33 {offsets = [0, 0, 0], sizes = [16, 16, 128], strides = [1, 1, 1]} : vector<20x16x128xf32> to vector<16x16x128xf32>
    %138 = vector.extract_strided_slice %107 {offsets = [0, 4, 0], sizes = [1, 1, 128], strides = [1, 1, 1]} : vector<5x5x128xf32> to vector<1x1x128xf32>
    %139 = vector.shape_cast %138 : vector<1x1x128xf32> to vector<128xf32>
    %140 = vector.shape_cast %139 : vector<128xf32> to vector<1x1x128xf32>
    %141 = vector.broadcast %140 : vector<1x1x128xf32> to vector<16x16x128xf32>
    %142 = arith.mulf %137, %141 : vector<16x16x128xf32>
    %143 = arith.addf %136, %142 : vector<16x16x128xf32>
    %144 = vector.extract_strided_slice %29 {offsets = [1, 0, 0], sizes = [16, 16, 128], strides = [1, 1, 1]} : vector<20x16x128xf32> to vector<16x16x128xf32>
    %145 = vector.extract_strided_slice %107 {offsets = [1, 0, 0], sizes = [1, 1, 128], strides = [1, 1, 1]} : vector<5x5x128xf32> to vector<1x1x128xf32>
    %146 = vector.shape_cast %145 : vector<1x1x128xf32> to vector<128xf32>
    %147 = vector.shape_cast %146 : vector<128xf32> to vector<1x1x128xf32>
    %148 = vector.broadcast %147 : vector<1x1x128xf32> to vector<16x16x128xf32>
    %149 = arith.mulf %144, %148 : vector<16x16x128xf32>
    %150 = arith.addf %143, %149 : vector<16x16x128xf32>
    %151 = vector.extract_strided_slice %30 {offsets = [1, 0, 0], sizes = [16, 16, 128], strides = [1, 1, 1]} : vector<20x16x128xf32> to vector<16x16x128xf32>
    %152 = vector.extract_strided_slice %107 {offsets = [1, 1, 0], sizes = [1, 1, 128], strides = [1, 1, 1]} : vector<5x5x128xf32> to vector<1x1x128xf32>
    %153 = vector.shape_cast %152 : vector<1x1x128xf32> to vector<128xf32>
    %154 = vector.shape_cast %153 : vector<128xf32> to vector<1x1x128xf32>
    %155 = vector.broadcast %154 : vector<1x1x128xf32> to vector<16x16x128xf32>
    %156 = arith.mulf %151, %155 : vector<16x16x128xf32>
    %157 = arith.addf %150, %156 : vector<16x16x128xf32>
    %158 = vector.extract_strided_slice %31 {offsets = [1, 0, 0], sizes = [16, 16, 128], strides = [1, 1, 1]} : vector<20x16x128xf32> to vector<16x16x128xf32>
    %159 = vector.extract_strided_slice %107 {offsets = [1, 2, 0], sizes = [1, 1, 128], strides = [1, 1, 1]} : vector<5x5x128xf32> to vector<1x1x128xf32>
    %160 = vector.shape_cast %159 : vector<1x1x128xf32> to vector<128xf32>
    %161 = vector.shape_cast %160 : vector<128xf32> to vector<1x1x128xf32>
    %162 = vector.broadcast %161 : vector<1x1x128xf32> to vector<16x16x128xf32>
    %163 = arith.mulf %158, %162 : vector<16x16x128xf32>
    %164 = arith.addf %157, %163 : vector<16x16x128xf32>
    %165 = vector.extract_strided_slice %32 {offsets = [1, 0, 0], sizes = [16, 16, 128], strides = [1, 1, 1]} : vector<20x16x128xf32> to vector<16x16x128xf32>
    %166 = vector.extract_strided_slice %107 {offsets = [1, 3, 0], sizes = [1, 1, 128], strides = [1, 1, 1]} : vector<5x5x128xf32> to vector<1x1x128xf32>
    %167 = vector.shape_cast %166 : vector<1x1x128xf32> to vector<128xf32>
    %168 = vector.shape_cast %167 : vector<128xf32> to vector<1x1x128xf32>
    %169 = vector.broadcast %168 : vector<1x1x128xf32> to vector<16x16x128xf32>
    %170 = arith.mulf %165, %169 : vector<16x16x128xf32>
    %171 = arith.addf %164, %170 : vector<16x16x128xf32>
    %172 = vector.extract_strided_slice %33 {offsets = [1, 0, 0], sizes = [16, 16, 128], strides = [1, 1, 1]} : vector<20x16x128xf32> to vector<16x16x128xf32>
    %173 = vector.extract_strided_slice %107 {offsets = [1, 4, 0], sizes = [1, 1, 128], strides = [1, 1, 1]} : vector<5x5x128xf32> to vector<1x1x128xf32>
    %174 = vector.shape_cast %173 : vector<1x1x128xf32> to vector<128xf32>
    %175 = vector.shape_cast %174 : vector<128xf32> to vector<1x1x128xf32>
    %176 = vector.broadcast %175 : vector<1x1x128xf32> to vector<16x16x128xf32>
    %177 = arith.mulf %172, %176 : vector<16x16x128xf32>
    %178 = arith.addf %171, %177 : vector<16x16x128xf32>
    %179 = vector.extract_strided_slice %29 {offsets = [2, 0, 0], sizes = [16, 16, 128], strides = [1, 1, 1]} : vector<20x16x128xf32> to vector<16x16x128xf32>
    %180 = vector.extract_strided_slice %107 {offsets = [2, 0, 0], sizes = [1, 1, 128], strides = [1, 1, 1]} : vector<5x5x128xf32> to vector<1x1x128xf32>
    %181 = vector.shape_cast %180 : vector<1x1x128xf32> to vector<128xf32>
    %182 = vector.shape_cast %181 : vector<128xf32> to vector<1x1x128xf32>
    %183 = vector.broadcast %182 : vector<1x1x128xf32> to vector<16x16x128xf32>
    %184 = arith.mulf %179, %183 : vector<16x16x128xf32>
    %185 = arith.addf %178, %184 : vector<16x16x128xf32>
    %186 = vector.extract_strided_slice %30 {offsets = [2, 0, 0], sizes = [16, 16, 128], strides = [1, 1, 1]} : vector<20x16x128xf32> to vector<16x16x128xf32>
    %187 = vector.extract_strided_slice %107 {offsets = [2, 1, 0], sizes = [1, 1, 128], strides = [1, 1, 1]} : vector<5x5x128xf32> to vector<1x1x128xf32>
    %188 = vector.shape_cast %187 : vector<1x1x128xf32> to vector<128xf32>
    %189 = vector.shape_cast %188 : vector<128xf32> to vector<1x1x128xf32>
    %190 = vector.broadcast %189 : vector<1x1x128xf32> to vector<16x16x128xf32>
    %191 = arith.mulf %186, %190 : vector<16x16x128xf32>
    %192 = arith.addf %185, %191 : vector<16x16x128xf32>
    %193 = vector.extract_strided_slice %31 {offsets = [2, 0, 0], sizes = [16, 16, 128], strides = [1, 1, 1]} : vector<20x16x128xf32> to vector<16x16x128xf32>
    %194 = vector.extract_strided_slice %107 {offsets = [2, 2, 0], sizes = [1, 1, 128], strides = [1, 1, 1]} : vector<5x5x128xf32> to vector<1x1x128xf32>
    %195 = vector.shape_cast %194 : vector<1x1x128xf32> to vector<128xf32>
    %196 = vector.shape_cast %195 : vector<128xf32> to vector<1x1x128xf32>
    %197 = vector.broadcast %196 : vector<1x1x128xf32> to vector<16x16x128xf32>
    %198 = arith.mulf %193, %197 : vector<16x16x128xf32>
    %199 = arith.addf %192, %198 : vector<16x16x128xf32>
    %200 = vector.extract_strided_slice %32 {offsets = [2, 0, 0], sizes = [16, 16, 128], strides = [1, 1, 1]} : vector<20x16x128xf32> to vector<16x16x128xf32>
    %201 = vector.extract_strided_slice %107 {offsets = [2, 3, 0], sizes = [1, 1, 128], strides = [1, 1, 1]} : vector<5x5x128xf32> to vector<1x1x128xf32>
    %202 = vector.shape_cast %201 : vector<1x1x128xf32> to vector<128xf32>
    %203 = vector.shape_cast %202 : vector<128xf32> to vector<1x1x128xf32>
    %204 = vector.broadcast %203 : vector<1x1x128xf32> to vector<16x16x128xf32>
    %205 = arith.mulf %200, %204 : vector<16x16x128xf32>
    %206 = arith.addf %199, %205 : vector<16x16x128xf32>
    %207 = vector.extract_strided_slice %33 {offsets = [2, 0, 0], sizes = [16, 16, 128], strides = [1, 1, 1]} : vector<20x16x128xf32> to vector<16x16x128xf32>
    %208 = vector.extract_strided_slice %107 {offsets = [2, 4, 0], sizes = [1, 1, 128], strides = [1, 1, 1]} : vector<5x5x128xf32> to vector<1x1x128xf32>
    %209 = vector.shape_cast %208 : vector<1x1x128xf32> to vector<128xf32>
    %210 = vector.shape_cast %209 : vector<128xf32> to vector<1x1x128xf32>
    %211 = vector.broadcast %210 : vector<1x1x128xf32> to vector<16x16x128xf32>
    %212 = arith.mulf %207, %211 : vector<16x16x128xf32>
    %213 = arith.addf %206, %212 : vector<16x16x128xf32>
    %214 = vector.extract_strided_slice %29 {offsets = [3, 0, 0], sizes = [16, 16, 128], strides = [1, 1, 1]} : vector<20x16x128xf32> to vector<16x16x128xf32>
    %215 = vector.extract_strided_slice %107 {offsets = [3, 0, 0], sizes = [1, 1, 128], strides = [1, 1, 1]} : vector<5x5x128xf32> to vector<1x1x128xf32>
    %216 = vector.shape_cast %215 : vector<1x1x128xf32> to vector<128xf32>
    %217 = vector.shape_cast %216 : vector<128xf32> to vector<1x1x128xf32>
    %218 = vector.broadcast %217 : vector<1x1x128xf32> to vector<16x16x128xf32>
    %219 = arith.mulf %214, %218 : vector<16x16x128xf32>
    %220 = arith.addf %213, %219 : vector<16x16x128xf32>
    %221 = vector.extract_strided_slice %30 {offsets = [3, 0, 0], sizes = [16, 16, 128], strides = [1, 1, 1]} : vector<20x16x128xf32> to vector<16x16x128xf32>
    %222 = vector.extract_strided_slice %107 {offsets = [3, 1, 0], sizes = [1, 1, 128], strides = [1, 1, 1]} : vector<5x5x128xf32> to vector<1x1x128xf32>
    %223 = vector.shape_cast %222 : vector<1x1x128xf32> to vector<128xf32>
    %224 = vector.shape_cast %223 : vector<128xf32> to vector<1x1x128xf32>
    %225 = vector.broadcast %224 : vector<1x1x128xf32> to vector<16x16x128xf32>
    %226 = arith.mulf %221, %225 : vector<16x16x128xf32>
    %227 = arith.addf %220, %226 : vector<16x16x128xf32>
    %228 = vector.extract_strided_slice %31 {offsets = [3, 0, 0], sizes = [16, 16, 128], strides = [1, 1, 1]} : vector<20x16x128xf32> to vector<16x16x128xf32>
    %229 = vector.extract_strided_slice %107 {offsets = [3, 2, 0], sizes = [1, 1, 128], strides = [1, 1, 1]} : vector<5x5x128xf32> to vector<1x1x128xf32>
    %230 = vector.shape_cast %229 : vector<1x1x128xf32> to vector<128xf32>
    %231 = vector.shape_cast %230 : vector<128xf32> to vector<1x1x128xf32>
    %232 = vector.broadcast %231 : vector<1x1x128xf32> to vector<16x16x128xf32>
    %233 = arith.mulf %228, %232 : vector<16x16x128xf32>
    %234 = arith.addf %227, %233 : vector<16x16x128xf32>
    %235 = vector.extract_strided_slice %32 {offsets = [3, 0, 0], sizes = [16, 16, 128], strides = [1, 1, 1]} : vector<20x16x128xf32> to vector<16x16x128xf32>
    %236 = vector.extract_strided_slice %107 {offsets = [3, 3, 0], sizes = [1, 1, 128], strides = [1, 1, 1]} : vector<5x5x128xf32> to vector<1x1x128xf32>
    %237 = vector.shape_cast %236 : vector<1x1x128xf32> to vector<128xf32>
    %238 = vector.shape_cast %237 : vector<128xf32> to vector<1x1x128xf32>
    %239 = vector.broadcast %238 : vector<1x1x128xf32> to vector<16x16x128xf32>
    %240 = arith.mulf %235, %239 : vector<16x16x128xf32>
    %241 = arith.addf %234, %240 : vector<16x16x128xf32>
    %242 = vector.extract_strided_slice %33 {offsets = [3, 0, 0], sizes = [16, 16, 128], strides = [1, 1, 1]} : vector<20x16x128xf32> to vector<16x16x128xf32>
    %243 = vector.extract_strided_slice %107 {offsets = [3, 4, 0], sizes = [1, 1, 128], strides = [1, 1, 1]} : vector<5x5x128xf32> to vector<1x1x128xf32>
    %244 = vector.shape_cast %243 : vector<1x1x128xf32> to vector<128xf32>
    %245 = vector.shape_cast %244 : vector<128xf32> to vector<1x1x128xf32>
    %246 = vector.broadcast %245 : vector<1x1x128xf32> to vector<16x16x128xf32>
    %247 = arith.mulf %242, %246 : vector<16x16x128xf32>
    %248 = arith.addf %241, %247 : vector<16x16x128xf32>
    %249 = vector.extract_strided_slice %29 {offsets = [4, 0, 0], sizes = [16, 16, 128], strides = [1, 1, 1]} : vector<20x16x128xf32> to vector<16x16x128xf32>
    %250 = vector.extract_strided_slice %107 {offsets = [4, 0, 0], sizes = [1, 1, 128], strides = [1, 1, 1]} : vector<5x5x128xf32> to vector<1x1x128xf32>
    %251 = vector.shape_cast %250 : vector<1x1x128xf32> to vector<128xf32>
    %252 = vector.shape_cast %251 : vector<128xf32> to vector<1x1x128xf32>
    %253 = vector.broadcast %252 : vector<1x1x128xf32> to vector<16x16x128xf32>
    %254 = arith.mulf %249, %253 : vector<16x16x128xf32>
    %255 = arith.addf %248, %254 : vector<16x16x128xf32>
    %256 = vector.extract_strided_slice %30 {offsets = [4, 0, 0], sizes = [16, 16, 128], strides = [1, 1, 1]} : vector<20x16x128xf32> to vector<16x16x128xf32>
    %257 = vector.extract_strided_slice %107 {offsets = [4, 1, 0], sizes = [1, 1, 128], strides = [1, 1, 1]} : vector<5x5x128xf32> to vector<1x1x128xf32>
    %258 = vector.shape_cast %257 : vector<1x1x128xf32> to vector<128xf32>
    %259 = vector.shape_cast %258 : vector<128xf32> to vector<1x1x128xf32>
    %260 = vector.broadcast %259 : vector<1x1x128xf32> to vector<16x16x128xf32>
    %261 = arith.mulf %256, %260 : vector<16x16x128xf32>
    %262 = arith.addf %255, %261 : vector<16x16x128xf32>
    %263 = vector.extract_strided_slice %31 {offsets = [4, 0, 0], sizes = [16, 16, 128], strides = [1, 1, 1]} : vector<20x16x128xf32> to vector<16x16x128xf32>
    %264 = vector.extract_strided_slice %107 {offsets = [4, 2, 0], sizes = [1, 1, 128], strides = [1, 1, 1]} : vector<5x5x128xf32> to vector<1x1x128xf32>
    %265 = vector.shape_cast %264 : vector<1x1x128xf32> to vector<128xf32>
    %266 = vector.shape_cast %265 : vector<128xf32> to vector<1x1x128xf32>
    %267 = vector.broadcast %266 : vector<1x1x128xf32> to vector<16x16x128xf32>
    %268 = arith.mulf %263, %267 : vector<16x16x128xf32>
    %269 = arith.addf %262, %268 : vector<16x16x128xf32>
    %270 = vector.extract_strided_slice %32 {offsets = [4, 0, 0], sizes = [16, 16, 128], strides = [1, 1, 1]} : vector<20x16x128xf32> to vector<16x16x128xf32>
    %271 = vector.extract_strided_slice %107 {offsets = [4, 3, 0], sizes = [1, 1, 128], strides = [1, 1, 1]} : vector<5x5x128xf32> to vector<1x1x128xf32>
    %272 = vector.shape_cast %271 : vector<1x1x128xf32> to vector<128xf32>
    %273 = vector.shape_cast %272 : vector<128xf32> to vector<1x1x128xf32>
    %274 = vector.broadcast %273 : vector<1x1x128xf32> to vector<16x16x128xf32>
    %275 = arith.mulf %270, %274 : vector<16x16x128xf32>
    %276 = arith.addf %269, %275 : vector<16x16x128xf32>
    %277 = vector.extract_strided_slice %33 {offsets = [4, 0, 0], sizes = [16, 16, 128], strides = [1, 1, 1]} : vector<20x16x128xf32> to vector<16x16x128xf32>
    %278 = vector.extract_strided_slice %107 {offsets = [4, 4, 0], sizes = [1, 1, 128], strides = [1, 1, 1]} : vector<5x5x128xf32> to vector<1x1x128xf32>
    %279 = vector.shape_cast %278 : vector<1x1x128xf32> to vector<128xf32>
    %280 = vector.shape_cast %279 : vector<128xf32> to vector<1x1x128xf32>
    %281 = vector.broadcast %280 : vector<1x1x128xf32> to vector<16x16x128xf32>
    %282 = arith.mulf %277, %281 : vector<16x16x128xf32>
    %283 = arith.addf %276, %282 : vector<16x16x128xf32>
    %c0_55 = arith.constant 0 : index
    %c0_56 = arith.constant 0 : index
    %284 = vector.load %arg11[%c0_55, %c0_56] : memref<256x128xf32, #tpu.memory_space<vmem>>, vector<256x128xf32>
    %285 = vector.shape_cast %283 : vector<16x16x128xf32> to vector<256x128xf32>
    %286 = arith.truncf %285 : vector<256x128xf32> to vector<256x128xbf16>
    %c2_57 = arith.constant 2 : index
    %c0_58 = arith.constant 0 : index
    %c0_59 = arith.constant 0 : index
    %287 = vector.load %arg7[%c2_57, %c0_58, %c0_59] : memref<3x128x128xbf16, #tpu.memory_space<vmem>>, vector<1x128x128xbf16>
    %288 = vector.shape_cast %287 : vector<1x128x128xbf16> to vector<128x128xbf16>
    %cst_60 = arith.constant dense<0.000000e+00> : vector<256x128xf32>
    %289 = tpu.matmul %286, %288, %cst_60 {dimension_numbers = #tpu.dot_dimension_numbers<[1], [0], [0], [1], [0, 0, 1, 1], [], []>} : vector<256x128xbf16>, vector<128x128xbf16>, vector<256x128xf32> -> vector<256x128xf32>
    %290 = arith.addf %284, %289 : vector<256x128xf32>
    %c0_61 = arith.constant 0 : index
    %c0_62 = arith.constant 0 : index
    %291 = vector.load %arg11[%c0_61, %c0_62] : memref<256x128xf32, #tpu.memory_space<vmem>>, vector<256x128xf32>
    tpu.vector_store %arg11[%c0_61, %c0_62], %290 {strides = array<i32>} : memref<256x128xf32, #tpu.memory_space<vmem>>, vector<256x128xf32>,
    %c0_63 = arith.constant 0 : index
    %c0_64 = arith.constant 0 : index
    %292 = vector.load %arg11[%c0_63, %c0_64] : memref<256x128xf32, #tpu.memory_space<vmem>>, vector<256x128xf32>
    %c0_65 = arith.constant 0 : index
    %c0_66 = arith.constant 0 : index
    %293 = vector.load %arg8[%c0_65, %c0_66] : memref<1x128xf32, #tpu.memory_space<vmem>>, vector<1x128xf32>
    %294 = vector.broadcast %293 : vector<1x128xf32> to vector<256x128xf32>
    %295 = arith.addf %292, %294 : vector<256x128xf32>
    %c0_67 = arith.constant 0 : index
    %c0_68 = arith.constant 0 : index
    %c0_69 = arith.constant 0 : index
    %296 = vector.load %arg9[%c0_67, %c0_68, %c0_69] : memref<1x256x128xf32, #tpu.memory_space<vmem>>, vector<1x256x128xf32>
    %297 = vector.shape_cast %296 : vector<1x256x128xf32> to vector<256x128xf32>
    %298 = vector.shape_cast %295 : vector<256x128xf32> to vector<1x256x128xf32>
    tpu.vector_store %arg9[%c0_67, %c0_68, %c0_69], %298 {strides = array<i32>} : memref<1x256x128xf32, #tpu.memory_space<vmem>>, vector<1x256x128xf32>,
    return
  }
  func.func @transform_0(%arg0: i32) -> (i32, i32, i32, i32) {
    %c0_i32 = arith.constant 0 : i32
    %c0_i32_0 = arith.constant 0 : i32
    %c0_i32_1 = arith.constant 0 : i32
    %c0_i32_2 = arith.constant 0 : i32
    return %arg0, %c0_i32, %c0_i32_0, %c0_i32_1 : i32, i32, i32, i32
  }
  func.func @transform_1(%arg0: i32) -> (i32, i32) {
    %c0_i32 = arith.constant 0 : i32
    %c0_i32_0 = arith.constant 0 : i32
    %c0_i32_1 = arith.constant 0 : i32
    return %c0_i32, %c0_i32_0 : i32, i32
  }
  func.func @transform_2(%arg0: i32) -> (i32, i32) {
    %c0_i32 = arith.constant 0 : i32
    %c0_i32_0 = arith.constant 0 : i32
    %c0_i32_1 = arith.constant 0 : i32
    return %c0_i32, %c0_i32_0 : i32, i32
  }
  func.func @transform_3(%arg0: i32) -> (i32, i32) {
    %c0_i32 = arith.constant 0 : i32
    %c0_i32_0 = arith.constant 0 : i32
    %c0_i32_1 = arith.constant 0 : i32
    return %c0_i32, %c0_i32_0 : i32, i32
  }
  func.func @transform_4(%arg0: i32) -> (i32, i32, i32) {
    %c0_i32 = arith.constant 0 : i32
    %c0_i32_0 = arith.constant 0 : i32
    %c0_i32_1 = arith.constant 0 : i32
    %c0_i32_2 = arith.constant 0 : i32
    return %c0_i32, %c0_i32_0, %c0_i32_1 : i32, i32, i32
  }
  func.func @transform_5(%arg0: i32) -> (i32, i32, i32) {
    %c0_i32 = arith.constant 0 : i32
    %c0_i32_0 = arith.constant 0 : i32
    %c0_i32_1 = arith.constant 0 : i32
    %c0_i32_2 = arith.constant 0 : i32
    return %c0_i32, %c0_i32_0, %c0_i32_1 : i32, i32, i32
  }
  func.func @transform_6(%arg0: i32) -> (i32, i32, i32) {
    %c0_i32 = arith.constant 0 : i32
    %c0_i32_0 = arith.constant 0 : i32
    %c0_i32_1 = arith.constant 0 : i32
    %c0_i32_2 = arith.constant 0 : i32
    return %c0_i32, %c0_i32_0, %c0_i32_1 : i32, i32, i32
  }
  func.func @transform_7(%arg0: i32) -> (i32, i32) {
    %c0_i32 = arith.constant 0 : i32
    %c0_i32_0 = arith.constant 0 : i32
    %c0_i32_1 = arith.constant 0 : i32
    return %c0_i32, %c0_i32_0 : i32, i32
  }
  func.func @transform_8(%arg0: i32) -> (i32, i32, i32) {
    %c0_i32 = arith.constant 0 : i32
    %c0_i32_0 = arith.constant 0 : i32
    %c0_i32_1 = arith.constant 0 : i32
    return %arg0, %c0_i32, %c0_i32_0 : i32, i32, i32
  }
}

</mosaic_0001>

<llo_original>
// kernel: tpu_custom_call.1
$region0: #{tpu_custom_call.1}
  #allocation0 [shape = 'u32[]', space=smem, size = 0x4, offset = 0x4, fixed_abs, tag = 'smem constant byte address 0x4 - core index']
  #allocation1 [shape = 'u32[144,128]{1,0:T(1,128)}', space=vmem, size = 0x12000, scoped, tag = 'internal scratch']
  #allocation2 [shape = 'f32[20,32,128]{2,1,0:T(8,128)}', space=vmem, size = 0x50000, scoped, tag = 'scratch operand']
  #allocation3 [shape = 'f32[256,128]{1,0:T(8,128)}', space=vmem, size = 0x20000, scoped, tag = 'scratch operand']
  %s0 = inlined_call_operand.hbm [shape: f32[2,16,16,128], index: 0, kind: input, shape index: {}]
  %s1 = inlined_call_operand.vmem [shape: f32[1,128], index: 1, kind: input, shape index: {}]
  %s2 = inlined_call_operand.vmem [shape: f32[1,128], index: 2, kind: input, shape index: {}]
  %s3 = inlined_call_operand.vmem [shape: f32[1,128], index: 3, kind: input, shape index: {}]
  %s4 = inlined_call_operand.vmem [shape: f32[3,3,128], index: 4, kind: input, shape index: {}]
  %s5 = inlined_call_operand.hbm [shape: f32[5,5,128], index: 5, kind: input, shape index: {}]
  %s6 = inlined_call_operand.hbm [shape: bf16[3,128,128], index: 6, kind: input, shape index: {}]
  %s7 = inlined_call_operand.vmem [shape: f32[1,128], index: 7, kind: input, shape index: {}]
  %s8 = inlined_call_operand.hbm [shape: f32[2,256,128], index: 8, kind: output, shape index: {}]
  %s9 = sld [smem:[#allocation0]]
  $region77: #{tpu_custom_call.1} parent=0
    _
  %s11 = ssub.s32 1, %s9
  %s12 = scalar_select 0, %s11, %s9
  $region1: #{tpu_custom_call.1} parent=0
    #allocation4 [shape = 'u8[262144]{0}', space=vmem, size = 0x40000, scoped, tag = 'input window, operand 0']
    #allocation5 [shape = 's32[2]{0}', space=sflag, size = 0x8, scoped, tag = 'scoped memory for tpu_custom_call.1']
    #allocation6 [shape = 's32[2]{0}', space=sflag, size = 0x8, scoped, tag = 'scoped memory for tpu_custom_call.1']
    #allocation7 [shape = 'u8[20480]{0}', space=vmem, size = 0x5000, scoped, tag = 'input window, operand 5, single buffered']
    #allocation8 [shape = 's32[1]{0}', space=sflag, size = 0x4, scoped, tag = 'scoped memory for tpu_custom_call.1']
    #allocation9 [shape = 'u8[98304]{0}', space=vmem, size = 0x18000, scoped, tag = 'input window, operand 6, single buffered']
    #allocation10 [shape = 'u8[262144]{0}', space=vmem, size = 0x40000, scoped, tag = 'output window, operand 0']
    %13 = vsyncpa [#allocation5], 0
    %s14 = scalar_lea.sflag [#allocation5], 1
    %15 = vsyncpa %s14, 0
    %16 = vsyncpa [#allocation8], 0
    %17 = vsyncpa [#allocation6], 0
    %s18 = scalar_lea.sflag [#allocation6], 1
    %19 = vsyncpa %s18, 0
    loop: start=0, step=1, limit=4
    $region2: #{tpu_custom_call.1} parent=1 // loop_pre_header
      _
    $region3: #{tpu_custom_call.1} parent=1 // loop_header
      %s21 = sphi 0, %s25
      %p22 = scmp.ge.s32.totalorder %s21, 4
      %s31 = sphi 0, %s33
      %s34 = sphi 0, %s31
      %s35 = sphi 0, %s34
      %s51 = sphi 0, %s35
      %s55 = sphi 0, %s55
      %s57 = sphi 0, %s55
      %s58 = sphi 0, %s57
      %s72 = sphi 0, %s58
      %s76 = sphi 0, %s76
      %s78 = sphi 0, %s76
      %s79 = sphi 0, %s78
      %s93 = sphi 0, %s79
      %s97 = sphi 0, %s97
      %s99 = sphi 0, %s97
      %s100 = sphi 0, %s99
      %s114 = sphi 0, %s100
      %s118 = sphi 0, %s118
      %s120 = sphi 0, %s118
      %s121 = sphi 0, %s120
      %s135 = sphi 0, %s121
      %s139 = sphi 0, %s139
      %s141 = sphi 0, %s139
      %s142 = sphi 0, %s141
      %s156 = sphi 0, %s142
      %s160 = sphi 0, %s160
      %s162 = sphi 0, %s160
      %s163 = sphi 0, %s162
      %s177 = sphi 0, %s163
      %s181 = sphi 0, %s181
      %s183 = sphi 0, %s181
      %s184 = sphi 0, %s183
      %s198 = sphi 0, %s184
      %s204 = sphi 0, %s206
      %s207 = sphi 0, %s204
      %s208 = sphi 0, %s207
      %s224 = sphi 0, %s208
    $region4: #{tpu_custom_call.1} parent=1 // loop_header_branch
      %24 = sbr.rel (%p22) target = $region8
    $region5: #{tpu_custom_call.1} parent=1 // loop_body
      %s26 = ssub.s32 %s21, 1
      %s27 = ssub.s32 %s21, 2
      %s28 = sadd.s32 %s21, 1
      %s29 = ssub.s32 %s21, %s28
      %p30 = scmp.eq.s32.totalorder %s29, 0
      %s32 = sadd.s32 %s31, 1
      %s33 = scalar_select %p30, %s31, %s32
      %p36 = pneg %p30
      %p37 = scmp.eq.s32.totalorder %s21, 1
      %p38 = por %p36, %p37
      %p39 = scmp.ne.s32.totalorder %s31, %s34
      %p40 = scmp.eq.s32.totalorder %s21, 0
      %p41 = por %p39, %p40
      %p42 = scmp.ne.s32.totalorder %s31, %s34
      %p43 = scmp.eq.s32.totalorder %s26, 1
      %p44 = por %p42, %p43
      %p45 = scmp.ne.s32.totalorder %s34, %s35
      %p46 = scmp.eq.s32.totalorder %s26, 0
      %p47 = por %p45, %p46
      %p48 = scmp.ne.s32.totalorder %s34, %s35
      %p49 = scmp.eq.s32.totalorder %s27, 1
      %p50 = por %p48, %p49
      %p52 = scmp.ne.s32.totalorder %s35, %s51
      %p53 = scmp.eq.s32.totalorder %s27, 0
      %p54 = por %p52, %p53
      %s56 = sadd.s32 %s55, 1
      %p59 = scmp.eq.s32.totalorder %s21, 1
      %p60 = scmp.ne.s32.totalorder %s55, %s57
      %p61 = scmp.eq.s32.totalorder %s21, 0
      %p62 = por %p60, %p61
      %p63 = scmp.ne.s32.totalorder %s55, %s57
      %p64 = scmp.eq.s32.totalorder %s26, 1
      %p65 = por %p63, %p64
      %p66 = scmp.ne.s32.totalorder %s57, %s58
      %p67 = scmp.eq.s32.totalorder %s26, 0
      %p68 = por %p66, %p67
      %p69 = scmp.ne.s32.totalorder %s57, %s58
      %p70 = scmp.eq.s32.totalorder %s27, 1
      %p71 = por %p69, %p70
      %p73 = scmp.ne.s32.totalorder %s58, %s72
      %p74 = scmp.eq.s32.totalorder %s27, 0
      %p75 = por %p73, %p74
      %s77 = sadd.s32 %s76, 1
      %p80 = scmp.eq.s32.totalorder %s21, 1
      %p81 = scmp.ne.s32.totalorder %s76, %s78
      %p82 = scmp.eq.s32.totalorder %s21, 0
      %p83 = por %p81, %p82
      %p84 = scmp.ne.s32.totalorder %s76, %s78
      %p85 = scmp.eq.s32.totalorder %s26, 1
      %p86 = por %p84, %p85
      %p87 = scmp.ne.s32.totalorder %s78, %s79
      %p88 = scmp.eq.s32.totalorder %s26, 0
      %p89 = por %p87, %p88
      %p90 = scmp.ne.s32.totalorder %s78, %s79
      %p91 = scmp.eq.s32.totalorder %s27, 1
      %p92 = por %p90, %p91
      %p94 = scmp.ne.s32.totalorder %s79, %s93
      %p95 = scmp.eq.s32.totalorder %s27, 0
      %p96 = por %p94, %p95
      %s98 = sadd.s32 %s97, 1
      %p101 = scmp.eq.s32.totalorder %s21, 1
      %p102 = scmp.ne.s32.totalorder %s97, %s99
      %p103 = scmp.eq.s32.totalorder %s21, 0
      %p104 = por %p102, %p103
      %p105 = scmp.ne.s32.totalorder %s97, %s99
      %p106 = scmp.eq.s32.totalorder %s26, 1
      %p107 = por %p105, %p106
      %p108 = scmp.ne.s32.totalorder %s99, %s100
      %p109 = scmp.eq.s32.totalorder %s26, 0
      %p110 = por %p108, %p109
      %p111 = scmp.ne.s32.totalorder %s99, %s100
      %p112 = scmp.eq.s32.totalorder %s27, 1
      %p113 = por %p111, %p112
      %p115 = scmp.ne.s32.totalorder %s100, %s114
      %p116 = scmp.eq.s32.totalorder %s27, 0
      %p117 = por %p115, %p116
      %s119 = sadd.s32 %s118, 1
      %p122 = scmp.eq.s32.totalorder %s21, 1
      %p123 = scmp.ne.s32.totalorder %s118, %s120
      %p124 = scmp.eq.s32.totalorder %s21, 0
      %p125 = por %p123, %p124
      %p126 = scmp.ne.s32.totalorder %s118, %s120
      %p127 = scmp.eq.s32.totalorder %s26, 1
      %p128 = por %p126, %p127
      %p129 = scmp.ne.s32.totalorder %s120, %s121
      %p130 = scmp.eq.s32.totalorder %s26, 0
      %p131 = por %p129, %p130
      %p132 = scmp.ne.s32.totalorder %s120, %s121
      %p133 = scmp.eq.s32.totalorder %s27, 1
      %p134 = por %p132, %p133
      %p136 = scmp.ne.s32.totalorder %s121, %s135
      %p137 = scmp.eq.s32.totalorder %s27, 0
      %p138 = por %p136, %p137
      %s140 = sadd.s32 %s139, 1
      %p143 = scmp.eq.s32.totalorder %s21, 1
      %p144 = scmp.ne.s32.totalorder %s139, %s141
      %p145 = scmp.eq.s32.totalorder %s21, 0
      %p146 = por %p144, %p145
      %p147 = scmp.ne.s32.totalorder %s139, %s141
      %p148 = scmp.eq.s32.totalorder %s26, 1
      %p149 = por %p147, %p148
      %p150 = scmp.ne.s32.totalorder %s141, %s142
      %p151 = scmp.eq.s32.totalorder %s26, 0
      %p152 = por %p150, %p151
      %p153 = scmp.ne.s32.totalorder %s141, %s142
      %p154 = scmp.eq.s32.totalorder %s27, 1
      %p155 = por %p153, %p154
      %p157 = scmp.ne.s32.totalorder %s142, %s156
      %p158 = scmp.eq.s32.totalorder %s27, 0
      %p159 = por %p157, %p158
      %s161 = sadd.s32 %s160, 1
      %p164 = scmp.eq.s32.totalorder %s21, 1
      %p165 = scmp.ne.s32.totalorder %s160, %s162
      %p166 = scmp.eq.s32.totalorder %s21, 0
      %p167 = por %p165, %p166
      %p168 = scmp.ne.s32.totalorder %s160, %s162
      %p169 = scmp.eq.s32.totalorder %s26, 1
      %p170 = por %p168, %p169
      %p171 = scmp.ne.s32.totalorder %s162, %s163
      %p172 = scmp.eq.s32.totalorder %s26, 0
      %p173 = por %p171, %p172
      %p174 = scmp.ne.s32.totalorder %s162, %s163
      %p175 = scmp.eq.s32.totalorder %s27, 1
      %p176 = por %p174, %p175
      %p178 = scmp.ne.s32.totalorder %s163, %s177
      %p179 = scmp.eq.s32.totalorder %s27, 0
      %p180 = por %p178, %p179
      %s182 = sadd.s32 %s181, 1
      %p185 = scmp.eq.s32.totalorder %s21, 1
      %p186 = scmp.ne.s32.totalorder %s181, %s183
      %p187 = scmp.eq.s32.totalorder %s21, 0
      %p188 = por %p186, %p187
      %p189 = scmp.ne.s32.totalorder %s181, %s183
      %p190 = scmp.eq.s32.totalorder %s26, 1
      %p191 = por %p189, %p190
      %p192 = scmp.ne.s32.totalorder %s183, %s184
      %p193 = scmp.eq.s32.totalorder %s26, 0
      %p194 = por %p192, %p193
      %p195 = scmp.ne.s32.totalorder %s183, %s184
      %p196 = scmp.eq.s32.totalorder %s27, 1
      %p197 = por %p195, %p196
      %p199 = scmp.ne.s32.totalorder %s184, %s198
      %p200 = scmp.eq.s32.totalorder %s27, 0
      %p201 = por %p199, %p200
      %s202 = ssub.s32 %s21, %s28
      %p203 = scmp.eq.s32.totalorder %s202, 0
      %s205 = sadd.s32 %s204, 1
      %s206 = scalar_select %p203, %s204, %s205
      %p209 = pneg %p203
      %p210 = scmp.eq.s32.totalorder %s21, 1
      %p211 = por %p209, %p210
      %p212 = scmp.ne.s32.totalorder %s204, %s207
      %p213 = scmp.eq.s32.totalorder %s21, 0
      %p214 = por %p212, %p213
      %p215 = scmp.ne.s32.totalorder %s204, %s207
      %p216 = scmp.eq.s32.totalorder %s26, 1
      %p217 = por %p215, %p216
      %p218 = scmp.ne.s32.totalorder %s207, %s208
      %p219 = scmp.eq.s32.totalorder %s26, 0
      %p220 = por %p218, %p219
      %p221 = scmp.ne.s32.totalorder %s207, %s208
      %p222 = scmp.eq.s32.totalorder %s27, 1
      %p223 = por %p221, %p222
      %p225 = scmp.ne.s32.totalorder %s208, %s224
      %p226 = scmp.eq.s32.totalorder %s27, 0
      %p227 = por %p225, %p226
      %p228 = scmp.le.s32.totalorder 1, %s21
      %p229 = scmp.lt.s32.totalorder %s21, 3
      %p230 = pnand %p228, %p229
      %p231 = pneg %p230
      // Predicated region
      $region9: #{tpu_custom_call.1} parent=5 // pred_check
        _
      $region10: #{tpu_custom_call.1} parent=5 // pred_check_branch
        %233 = sbr.rel (%p230) target = $region12
      $region11: #{tpu_custom_call.1} parent=5 // pred_region
        %s234 = ssub.s32 %s21, 1
        // Predicated region
        $region13: #{tpu_custom_call.1} parent=11 // pred_check
          %p235 = pneg %p68
        $region14: #{tpu_custom_call.1} parent=11 // pred_check_branch
          %237 = sbr.rel (%p235) target = $region16
        $region15: #{tpu_custom_call.1} parent=11 // pred_region
          _
        $region16: #{tpu_custom_call.1} parent=11 // pred_fallthru
          _
        // Predicated region
        $region17: #{tpu_custom_call.1} parent=11 // pred_check
          %p238 = pneg %p89
        $region18: #{tpu_custom_call.1} parent=11 // pred_check_branch
          %240 = sbr.rel (%p238) target = $region20
        $region19: #{tpu_custom_call.1} parent=11 // pred_region
          _
        $region20: #{tpu_custom_call.1} parent=11 // pred_fallthru
          _
        // Predicated region
        $region21: #{tpu_custom_call.1} parent=11 // pred_check
          %p241 = pneg %p110
        $region22: #{tpu_custom_call.1} parent=11 // pred_check_branch
          %243 = sbr.rel (%p241) target = $region24
        $region23: #{tpu_custom_call.1} parent=11 // pred_region
          _
        $region24: #{tpu_custom_call.1} parent=11 // pred_fallthru
          _
        // Predicated region
        $region25: #{tpu_custom_call.1} parent=11 // pred_check
          %p244 = pneg %p131
        $region26: #{tpu_custom_call.1} parent=11 // pred_check_branch
          %246 = sbr.rel (%p244) target = $region28
        $region27: #{tpu_custom_call.1} parent=11 // pred_region
          _
        $region28: #{tpu_custom_call.1} parent=11 // pred_fallthru
          _
        // Predicated region
        $region29: #{tpu_custom_call.1} parent=11 // pred_check
          %p247 = pneg %p152
        $region30: #{tpu_custom_call.1} parent=11 // pred_check_branch
          %249 = sbr.rel (%p247) target = $region32
        $region31: #{tpu_custom_call.1} parent=11 // pred_region
          %s251 = ssub.s32 640, 640
          %252 = vsyncadd [#allocation8], %s251
          %s253 = sshll.u32 [#allocation7], 4
          %s254 = int_to_ptr.vmem [resolvable:$true] %s253
          %259 = dma.hbm_to_vmem [thread:$0]  %s5, 640, %s254, [#allocation8], 128, 128, 8
        $region32: #{tpu_custom_call.1} parent=11 // pred_fallthru
          _
        // Predicated region
        $region33: #{tpu_custom_call.1} parent=11 // pred_check
          %p260 = pneg %p173
        $region34: #{tpu_custom_call.1} parent=11 // pred_check_branch
          %262 = sbr.rel (%p260) target = $region36
        $region35: #{tpu_custom_call.1} parent=11 // pred_region
          %s264 = ssub.s32 3072, 3072
          %265 = vsyncadd [#allocation8], %s264
          %s266 = sshll.u32 [#allocation9], 4
          %s267 = int_to_ptr.vmem [resolvable:$true] %s266
          %272 = dma.hbm_to_vmem [thread:$0]  %s6, 3072, %s267, [#allocation8], 64, 64, 4
        $region36: #{tpu_custom_call.1} parent=11 // pred_fallthru
          _
        // Predicated region
        $region37: #{tpu_custom_call.1} parent=11 // pred_check
          %p273 = pneg %p194
        $region38: #{tpu_custom_call.1} parent=11 // pred_check_branch
          %275 = sbr.rel (%p273) target = $region40
        $region39: #{tpu_custom_call.1} parent=11 // pred_region
          _
        $region40: #{tpu_custom_call.1} parent=11 // pred_fallthru
          _
      $region12: #{tpu_custom_call.1} parent=5 // pred_fallthru
        _
      %p276 = scmp.lt.s32.totalorder %s21, 2
      // Predicated region
      $region41: #{tpu_custom_call.1} parent=5 // pred_check
        %p277 = pneg %p276
      $region42: #{tpu_custom_call.1} parent=5 // pred_check_branch
        %279 = sbr.rel (%p277) target = $region44
      $region43: #{tpu_custom_call.1} parent=5 // pred_region
        // Predicated region
        $region45: #{tpu_custom_call.1} parent=43 // pred_check
          %p280 = pneg %p41
        $region46: #{tpu_custom_call.1} parent=43 // pred_check_branch
          %282 = sbr.rel (%p280) target = $region48
        $region47: #{tpu_custom_call.1} parent=43 // pred_region
          %s283 = sand.u32 %s31, 1
          %s284 = scalar_lea.sflag [#allocation5], %s283
          %s285 = sand.u32 %s31, 1
          %s286 = smul.addr %s285, 256
          %s287 = scalar_lea.vmem [#allocation4], %s286
          %s289 = ssub.s32 4096, 4096
          %290 = vsyncadd %s284, %s289
          %s291 = smul.addr %s21, 32
          %s292 = smul.addr %s291, 128
          %s293 = scalar_lea.hbm %s0, %s292
          %s294 = sshll.u32 %s287, 4
          %s295 = int_to_ptr.vmem [resolvable:$true] %s294
          %300 = dma.hbm_to_vmem [thread:$0]  %s293, 4096, %s295, %s284, 128, 128, 8
        $region48: #{tpu_custom_call.1} parent=43 // pred_fallthru
          _
      $region44: #{tpu_custom_call.1} parent=5 // pred_fallthru
        _
      %p301 = scmp.le.s32.totalorder 1, %s21
      %p302 = scmp.lt.s32.totalorder %s21, 3
      %p303 = pnand %p301, %p302
      %p304 = pneg %p303
      // Predicated region
      $region49: #{tpu_custom_call.1} parent=5 // pred_check
        _
      $region50: #{tpu_custom_call.1} parent=5 // pred_check_branch
        %306 = sbr.rel (%p303) target = $region52
      $region51: #{tpu_custom_call.1} parent=5 // pred_region
        %s307 = ssub.s32 %s21, 1
        %s308 = sand.u32 %s34, 1
        %s309 = scalar_lea.sflag [#allocation5], %s308
        %s310 = sand.u32 %s34, 1
        %s311 = smul.addr %s310, 256
        %s312 = scalar_lea.vmem [#allocation4], %s311
        // Predicated region
        $region53: #{tpu_custom_call.1} parent=51 // pred_check
          %p313 = pneg %p47
        $region54: #{tpu_custom_call.1} parent=51 // pred_check_branch
          %315 = sbr.rel (%p313) target = $region56
        $region55: #{tpu_custom_call.1} parent=51 // pred_region
          %316 = dma.done %s309, 4096
        $region56: #{tpu_custom_call.1} parent=51 // pred_fallthru
          _
        // Predicated region
        $region57: #{tpu_custom_call.1} parent=51 // pred_check
          %p317 = pneg %p152
        $region58: #{tpu_custom_call.1} parent=51 // pred_check_branch
          %319 = sbr.rel (%p317) target = $region60
        $region59: #{tpu_custom_call.1} parent=51 // pred_region
          %320 = dma.done [#allocation8], 640
        $region60: #{tpu_custom_call.1} parent=51 // pred_fallthru
          _
        // Predicated region
        $region61: #{tpu_custom_call.1} parent=51 // pred_check
          %p321 = pneg %p173
        $region62: #{tpu_custom_call.1} parent=51 // pred_check_branch
          %323 = sbr.rel (%p321) target = $region64
        $region63: #{tpu_custom_call.1} parent=51 // pred_region
          %324 = dma.done [#allocation8], 3072
        $region64: #{tpu_custom_call.1} parent=51 // pred_fallthru
          _
        %s325 = sand.u32 %s34, 1
        %s326 = scalar_lea.sflag [#allocation5], %s325
        %s327 = sand.u32 %s34, 1
        %s328 = smul.addr %s327, 256
        %s329 = scalar_lea.vmem [#allocation4], %s328
        %p330 = pneg %p47
        %p331 = pneg %p44
        %p332 = pneg %p68
        %p333 = pneg %p65
        %p334 = pneg %p89
        %p335 = pneg %p86
        %p336 = pneg %p110
        %p337 = pneg %p107
        %p338 = pneg %p131
        %p339 = pneg %p128
        %p340 = pneg %p152
        %p341 = pneg %p149
        %p342 = pneg %p173
        %p343 = pneg %p170
        %p344 = pneg %p194
        %p345 = pneg %p191
        %p346 = pneg %p220
        %p347 = pneg %p217
        %s348 = sand.u32 %s207, 1
        %s349 = scalar_lea.sflag [#allocation6], %s348
        %s350 = sand.u32 %s207, 1
        %s351 = smul.addr %s350, 256
        %s352 = scalar_lea.vmem [#allocation10], %s351
        %v354 = vld [vmem:[%s312] sm:$0xff]
        %v355 = vld [vmem:[%s312 + $0x8] sm:$0xff]
        %v356 = vld [vmem:[%s312 + $0x10] sm:$0xff]
        %v357 = vld [vmem:[%s312 + $0x18] sm:$0xff]
        %v358 = vld [vmem:[%s312 + $0x20] sm:$0xff]
        %v359 = vld [vmem:[%s312 + $0x28] sm:$0xff]
        %v360 = vld [vmem:[%s312 + $0x30] sm:$0xff]
        %v361 = vld [vmem:[%s312 + $0x38] sm:$0xff]
        %v362 = vld [vmem:[%s312 + $0x40] sm:$0xff]
        %v363 = vld [vmem:[%s312 + $0x48] sm:$0xff]
        %v364 = vld [vmem:[%s312 + $0x50] sm:$0xff]
        %v365 = vld [vmem:[%s312 + $0x58] sm:$0xff]
        %v366 = vld [vmem:[%s312 + $0x60] sm:$0xff]
        %v367 = vld [vmem:[%s312 + $0x68] sm:$0xff]
        %v368 = vld [vmem:[%s312 + $0x70] sm:$0xff]
        %v369 = vld [vmem:[%s312 + $0x78] sm:$0xff]
        %v370 = vld [vmem:[%s312 + $0x80] sm:$0xff]
        %v371 = vld [vmem:[%s312 + $0x88] sm:$0xff]
        %v372 = vld [vmem:[%s312 + $0x90] sm:$0xff]
        %v373 = vld [vmem:[%s312 + $0x98] sm:$0xff]
        %v374 = vld [vmem:[%s312 + $0xa0] sm:$0xff]
        %v375 = vld [vmem:[%s312 + $0xa8] sm:$0xff]
        %v376 = vld [vmem:[%s312 + $0xb0] sm:$0xff]
        %v377 = vld [vmem:[%s312 + $0xb8] sm:$0xff]
        %v378 = vld [vmem:[%s312 + $0xc0] sm:$0xff]
        %v379 = vld [vmem:[%s312 + $0xc8] sm:$0xff]
        %v380 = vld [vmem:[%s312 + $0xd0] sm:$0xff]
        %v381 = vld [vmem:[%s312 + $0xd8] sm:$0xff]
        %v382 = vld [vmem:[%s312 + $0xe0] sm:$0xff]
        %v383 = vld [vmem:[%s312 + $0xe8] sm:$0xff]
        %v384 = vld [vmem:[%s312 + $0xf0] sm:$0xff]
        %v385 = vld [vmem:[%s312 + $0xf8] sm:$0xff]
        %v386 = vld [vmem:[%s1] sm:$0x1]
        %v388 = vlaneseq
        %v389 = vshrl.u32 %v388, 7
        %v390 = vsub.s32 0, %v389
        %v391 = vrot.slane %v386, %v390
        %v393 = vmul.f32 %v354, %v391
        %v394 = vmul.f32 %v355, %v391
        %v395 = vmul.f32 %v356, %v391
        %v396 = vmul.f32 %v357, %v391
        %v397 = vmul.f32 %v358, %v391
        %v398 = vmul.f32 %v359, %v391
        %v399 = vmul.f32 %v360, %v391
        %v400 = vmul.f32 %v361, %v391
        %v401 = vmul.f32 %v362, %v391
        %v402 = vmul.f32 %v363, %v391
        %v403 = vmul.f32 %v364, %v391
        %v404 = vmul.f32 %v365, %v391
        %v405 = vmul.f32 %v366, %v391
        %v406 = vmul.f32 %v367, %v391
        %v407 = vmul.f32 %v368, %v391
        %v408 = vmul.f32 %v369, %v391
        %v409 = vmul.f32 %v370, %v391
        %v410 = vmul.f32 %v371, %v391
        %v411 = vmul.f32 %v372, %v391
        %v412 = vmul.f32 %v373, %v391
        %v413 = vmul.f32 %v374, %v391
        %v414 = vmul.f32 %v375, %v391
        %v415 = vmul.f32 %v376, %v391
        %v416 = vmul.f32 %v377, %v391
        %v417 = vmul.f32 %v378, %v391
        %v418 = vmul.f32 %v379, %v391
        %v419 = vmul.f32 %v380, %v391
        %v420 = vmul.f32 %v381, %v391
        %v421 = vmul.f32 %v382, %v391
        %v422 = vmul.f32 %v383, %v391
        %v423 = vmul.f32 %v384, %v391
        %v424 = vmul.f32 %v385, %v391
        %v425 = vld [vmem:[%s2] sm:$0x1]
        %v427 = vlaneseq
        %v428 = vshrl.u32 %v427, 7
        %v429 = vsub.s32 0, %v428
        %v430 = vrot.slane %v425, %v429
        %v432 = vadd.f32 %v393, %v430
        %v433 = vadd.f32 %v394, %v430
        %v434 = vadd.f32 %v395, %v430
        %v435 = vadd.f32 %v396, %v430
        %v436 = vadd.f32 %v397, %v430
        %v437 = vadd.f32 %v398, %v430
        %v438 = vadd.f32 %v399, %v430
        %v439 = vadd.f32 %v400, %v430
        %v440 = vadd.f32 %v401, %v430
        %v441 = vadd.f32 %v402, %v430
        %v442 = vadd.f32 %v403, %v430
        %v443 = vadd.f32 %v404, %v430
        %v444 = vadd.f32 %v405, %v430
        %v445 = vadd.f32 %v406, %v430
        %v446 = vadd.f32 %v407, %v430
        %v447 = vadd.f32 %v408, %v430
        %v448 = vadd.f32 %v409, %v430
        %v449 = vadd.f32 %v410, %v430
        %v450 = vadd.f32 %v411, %v430
        %v451 = vadd.f32 %v412, %v430
        %v452 = vadd.f32 %v413, %v430
        %v453 = vadd.f32 %v414, %v430
        %v454 = vadd.f32 %v415, %v430
        %v455 = vadd.f32 %v416, %v430
        %v456 = vadd.f32 %v417, %v430
        %v457 = vadd.f32 %v418, %v430
        %v458 = vadd.f32 %v419, %v430
        %v459 = vadd.f32 %v420, %v430
        %v460 = vadd.f32 %v421, %v430
        %v461 = vadd.f32 %v422, %v430
        %v462 = vadd.f32 %v423, %v430
        %v463 = vadd.f32 %v424, %v430
        %v464 = vld [vmem:[%s3] sm:$0x1]
        %v466 = vlaneseq
        %v467 = vshrl.u32 %v466, 7
        %v468 = vsub.s32 0, %v467
        %v469 = vrot.slane %v464, %v468
        %v471 = vmul.f32 %v432, %v469
        %v472 = vmul.f32 %v433, %v469
        %v473 = vmul.f32 %v434, %v469
        %v474 = vmul.f32 %v435, %v469
        %v475 = vmul.f32 %v436, %v469
        %v476 = vmul.f32 %v437, %v469
        %v477 = vmul.f32 %v438, %v469
        %v478 = vmul.f32 %v439, %v469
        %v479 = vmul.f32 %v440, %v469
        %v480 = vmul.f32 %v441, %v469
        %v481 = vmul.f32 %v442, %v469
        %v482 = vmul.f32 %v443, %v469
        %v483 = vmul.f32 %v444, %v469
        %v484 = vmul.f32 %v445, %v469
        %v485 = vmul.f32 %v446, %v469
        %v486 = vmul.f32 %v447, %v469
        %v487 = vmul.f32 %v448, %v469
        %v488 = vmul.f32 %v449, %v469
        %v489 = vmul.f32 %v450, %v469
        %v490 = vmul.f32 %v451, %v469
        %v491 = vmul.f32 %v452, %v469
        %v492 = vmul.f32 %v453, %v469
        %v493 = vmul.f32 %v454, %v469
        %v494 = vmul.f32 %v455, %v469
        %v495 = vmul.f32 %v456, %v469
        %v496 = vmul.f32 %v457, %v469
        %v497 = vmul.f32 %v458, %v469
        %v498 = vmul.f32 %v459, %v469
        %v499 = vmul.f32 %v460, %v469
        %v500 = vmul.f32 %v461, %v469
        %v501 = vmul.f32 %v462, %v469
        %v502 = vmul.f32 %v463, %v469
        %v503 = vpack.c.bf16 %v472, %v471
        %v504 = vpack.c.bf16 %v474, %v473
        %v505 = vpack.c.bf16 %v476, %v475
        %v506 = vpack.c.bf16 %v478, %v477
        %v507 = vpack.c.bf16 %v480, %v479
        %v508 = vpack.c.bf16 %v482, %v481
        %v509 = vpack.c.bf16 %v484, %v483
        %v510 = vpack.c.bf16 %v486, %v485
        %v511 = vpack.c.bf16 %v488, %v487
        %v512 = vpack.c.bf16 %v490, %v489
        %v513 = vpack.c.bf16 %v492, %v491
        %v514 = vpack.c.bf16 %v494, %v493
        %v515 = vpack.c.bf16 %v496, %v495
        %v516 = vpack.c.bf16 %v498, %v497
        %v517 = vpack.c.bf16 %v500, %v499
        %v518 = vpack.c.bf16 %v502, %v501
        %v519 = vld [vmem:[#allocation9] sm:$0xf]
        %v520 = vld [vmem:[#allocation9 + $0x4] sm:$0xf]
        %v521 = vld [vmem:[#allocation9 + $0x8] sm:$0xf]
        %v522 = vld [vmem:[#allocation9 + $0xc] sm:$0xf]
        %v523 = vld [vmem:[#allocation9 + $0x10] sm:$0xf]
        %v524 = vld [vmem:[#allocation9 + $0x14] sm:$0xf]
        %v525 = vld [vmem:[#allocation9 + $0x18] sm:$0xf]
        %v526 = vld [vmem:[#allocation9 + $0x1c] sm:$0xf]
        %v527 = vld [vmem:[#allocation9 + $0x20] sm:$0xf]
        %v528 = vld [vmem:[#allocation9 + $0x24] sm:$0xf]
        %v529 = vld [vmem:[#allocation9 + $0x28] sm:$0xf]
        %v530 = vld [vmem:[#allocation9 + $0x2c] sm:$0xf]
        %v531 = vld [vmem:[#allocation9 + $0x30] sm:$0xf]
        %v532 = vld [vmem:[#allocation9 + $0x34] sm:$0xf]
        %v533 = vld [vmem:[#allocation9 + $0x38] sm:$0xf]
        %v534 = vld [vmem:[#allocation9 + $0x3c] sm:$0xf]
        %v551 = vunpack.c.l.b16 %v519
        %v552 = vunpack.c.l.b16 %v520
        %v553 = vunpack.c.l.b16 %v521
        %v554 = vunpack.c.l.b16 %v522
        %v555 = vunpack.c.l.b16 %v523
        %v556 = vunpack.c.l.b16 %v524
        %v557 = vunpack.c.l.b16 %v525
        %v558 = vunpack.c.l.b16 %v526
        %v559 = vunpack.c.l.b16 %v527
        %v560 = vunpack.c.l.b16 %v528
        %v561 = vunpack.c.l.b16 %v529
        %v562 = vunpack.c.l.b16 %v530
        %v563 = vunpack.c.l.b16 %v531
        %v564 = vunpack.c.l.b16 %v532
        %v565 = vunpack.c.l.b16 %v533
        %v566 = vunpack.c.l.b16 %v534
        %v567 = vpack.c.b16 %v552, %v551
        %v568 = vpack.c.b16 %v554, %v553
        %v569 = vpack.c.b16 %v556, %v555
        %v570 = vpack.c.b16 %v558, %v557
        %v571 = vpack.c.b16 %v560, %v559
        %v572 = vpack.c.b16 %v562, %v561
        %v573 = vpack.c.b16 %v564, %v563
        %v574 = vpack.c.b16 %v566, %v565
        %583 = vmatprep.subr.bf16.mxu0 0
        %584 = vmatpush1.bf16.msra.mxu0 %v567
        %585 = vmatprep.subr.bf16.mxu0 0
        %586 = vmatpush1.bf16.msra.mxu0 %v568
        %587 = vmatprep.subr.bf16.mxu0 0
        %588 = vmatpush1.bf16.msra.mxu0 %v569
        %589 = vmatprep.subr.bf16.mxu0 0
        %590 = vmatpush1.bf16.msra.mxu0 %v570
        %591 = vmatprep.subr.bf16.mxu0 0
        %592 = vmatpush1.bf16.msra.mxu0 %v571
        %593 = vmatprep.subr.bf16.mxu0 0
        %594 = vmatpush1.bf16.msra.mxu0 %v572
        %595 = vmatprep.subr.bf16.mxu0 0
        %596 = vmatpush1.bf16.msra.mxu0 %v573
        %597 = vmatprep.subr.bf16.mxu0 0
        %598 = vmatpush1.bf16.msra.mxu0 %v574
        %599 = vmatprep.subr.bf16.mxu0 0
        %600 = vmatpush1.bf16.msra.mxu0 0
        %601 = vmatprep.subr.bf16.mxu0 0
        %602 = vmatpush1.bf16.msra.mxu0 0
        %603 = vmatprep.subr.bf16.mxu0 0
        %604 = vmatpush1.bf16.msra.mxu0 0
        %605 = vmatprep.subr.bf16.mxu0 0
        %606 = vmatpush1.bf16.msra.mxu0 0
        %607 = vmatprep.subr.bf16.mxu0 0
        %608 = vmatpush1.bf16.msra.mxu0 0
        %609 = vmatprep.subr.bf16.mxu0 0
        %610 = vmatpush1.bf16.msra.mxu0 0
        %611 = vmatprep.subr.bf16.mxu0 0
        %612 = vmatpush1.bf16.msra.mxu0 0
        %613 = vmatprep.subr.bf16.mxu0 0
        %614 = vmatpush1.bf16.msra.mxu0 0
        %615 = vmatprep.mubr.bf16.mxu0 0
        %616 = vmatmul.mubr.bf16.gmra.mrb[0].mxu0 %v503
        %v617 = vpop.f32.mrb[0].mxu0
        %v618 = vadd.f32 0.0, %v617
        %v619 = vpop.f32.mrb[0].mxu0
        %v620 = vpop.f32.mrb[0].mxu0
        %v621 = vadd.f32 0.0, %v620
        %v622 = vpop.f32.mrb[0].mxu0
        %623 = vmatprep.mubr.bf16.mxu0 0
        %624 = vmatmul.mubr.bf16.gmra.mrb[0].mxu0 %v504
        %v625 = vpop.f32.mrb[0].mxu0
        %v626 = vadd.f32 0.0, %v625
        %v627 = vpop.f32.mrb[0].mxu0
        %v628 = vpop.f32.mrb[0].mxu0
        %v629 = vadd.f32 0.0, %v628
        %v630 = vpop.f32.mrb[0].mxu0
        %631 = vmatprep.mubr.bf16.mxu0 0
        %632 = vmatmul.mubr.bf16.gmra.mrb[0].mxu0 %v505
        %v633 = vpop.f32.mrb[0].mxu0
        %v634 = vadd.f32 0.0, %v633
        %v635 = vpop.f32.mrb[0].mxu0
        %v636 = vpop.f32.mrb[0].mxu0
        %v637 = vadd.f32 0.0, %v636
        %v638 = vpop.f32.mrb[0].mxu0
        %639 = vmatprep.mubr.bf16.mxu0 0
        %640 = vmatmul.mubr.bf16.gmra.mrb[0].mxu0 %v506
        %v641 = vpop.f32.mrb[0].mxu0
        %v642 = vadd.f32 0.0, %v641
        %v643 = vpop.f32.mrb[0].mxu0
        %v644 = vpop.f32.mrb[0].mxu0
        %v645 = vadd.f32 0.0, %v644
        %v646 = vpop.f32.mrb[0].mxu0
        %647 = vmatprep.mubr.bf16.mxu0 0
        %648 = vmatmul.mubr.bf16.gmra.mrb[0].mxu0 %v507
        %v649 = vpop.f32.mrb[0].mxu0
        %v650 = vadd.f32 0.0, %v649
        %v651 = vpop.f32.mrb[0].mxu0
        %v652 = vpop.f32.mrb[0].mxu0
        %v653 = vadd.f32 0.0, %v652
        %v654 = vpop.f32.mrb[0].mxu0
        %655 = vmatprep.mubr.bf16.mxu0 0
        %656 = vmatmul.mubr.bf16.gmra.mrb[0].mxu0 %v508
        %v657 = vpop.f32.mrb[0].mxu0
        %v658 = vadd.f32 0.0, %v657
        %v659 = vpop.f32.mrb[0].mxu0
        %v660 = vpop.f32.mrb[0].mxu0
        %v661 = vadd.f32 0.0, %v660
        %v662 = vpop.f32.mrb[0].mxu0
        %663 = vmatprep.mubr.bf16.mxu0 0
        %664 = vmatmul.mubr.bf16.gmra.mrb[0].mxu0 %v509
        %v665 = vpop.f32.mrb[0].mxu0
        %v666 = vadd.f32 0.0, %v665
        %v667 = vpop.f32.mrb[0].mxu0
        %v668 = vpop.f32.mrb[0].mxu0
        %v669 = vadd.f32 0.0, %v668
        %v670 = vpop.f32.mrb[0].mxu0
        %671 = vmatprep.mubr.bf16.mxu0 0
        %672 = vmatmul.mubr.bf16.gmra.mrb[0].mxu0 %v510
        %v673 = vpop.f32.mrb[0].mxu0
        %v674 = vadd.f32 0.0, %v673
        %v675 = vpop.f32.mrb[0].mxu0
        %v676 = vpop.f32.mrb[0].mxu0
        %v677 = vadd.f32 0.0, %v676
        %v678 = vpop.f32.mrb[0].mxu0
        %679 = vmatprep.mubr.bf16.mxu0 0
        %680 = vmatmul.mubr.bf16.gmra.mrb[0].mxu0 %v511
        %v681 = vpop.f32.mrb[0].mxu0
        %v682 = vadd.f32 0.0, %v681
        %v683 = vpop.f32.mrb[0].mxu0
        %v684 = vpop.f32.mrb[0].mxu0
        %v685 = vadd.f32 0.0, %v684
        %v686 = vpop.f32.mrb[0].mxu0
        %687 = vmatprep.mubr.bf16.mxu0 0
        %688 = vmatmul.mubr.bf16.gmra.mrb[0].mxu0 %v512
        %v689 = vpop.f32.mrb[0].mxu0
        %v690 = vadd.f32 0.0, %v689
        %v691 = vpop.f32.mrb[0].mxu0
        %v692 = vpop.f32.mrb[0].mxu0
        %v693 = vadd.f32 0.0, %v692
        %v694 = vpop.f32.mrb[0].mxu0
        %695 = vmatprep.mubr.bf16.mxu0 0
        %696 = vmatmul.mubr.bf16.gmra.mrb[0].mxu0 %v513
        %v697 = vpop.f32.mrb[0].mxu0
        %v698 = vadd.f32 0.0, %v697
        %v699 = vpop.f32.mrb[0].mxu0
        %v700 = vpop.f32.mrb[0].mxu0
        %v701 = vadd.f32 0.0, %v700
        %v702 = vpop.f32.mrb[0].mxu0
        %703 = vmatprep.mubr.bf16.mxu0 0
        %704 = vmatmul.mubr.bf16.gmra.mrb[0].mxu0 %v514
        %v705 = vpop.f32.mrb[0].mxu0
        %v706 = vadd.f32 0.0, %v705
        %v707 = vpop.f32.mrb[0].mxu0
        %v708 = vpop.f32.mrb[0].mxu0
        %v709 = vadd.f32 0.0, %v708
        %v710 = vpop.f32.mrb[0].mxu0
        %711 = vmatprep.mubr.bf16.mxu0 0
        %712 = vmatmul.mubr.bf16.gmra.mrb[0].mxu0 %v515
        %v713 = vpop.f32.mrb[0].mxu0
        %v714 = vadd.f32 0.0, %v713
        %v715 = vpop.f32.mrb[0].mxu0
        %v716 = vpop.f32.mrb[0].mxu0
        %v717 = vadd.f32 0.0, %v716
        %v718 = vpop.f32.mrb[0].mxu0
        %719 = vmatprep.mubr.bf16.mxu0 0
        %720 = vmatmul.mubr.bf16.gmra.mrb[0].mxu0 %v516
        %v721 = vpop.f32.mrb[0].mxu0
        %v722 = vadd.f32 0.0, %v721
        %v723 = vpop.f32.mrb[0].mxu0
        %v724 = vpop.f32.mrb[0].mxu0
        %v725 = vadd.f32 0.0, %v724
        %v726 = vpop.f32.mrb[0].mxu0
        %727 = vmatprep.mubr.bf16.mxu0 0
        %728 = vmatmul.mubr.bf16.gmra.mrb[0].mxu0 %v517
        %v729 = vpop.f32.mrb[0].mxu0
        %v730 = vadd.f32 0.0, %v729
        %v731 = vpop.f32.mrb[0].mxu0
        %v732 = vpop.f32.mrb[0].mxu0
        %v733 = vadd.f32 0.0, %v732
        %v734 = vpop.f32.mrb[0].mxu0
        %735 = vmatprep.mubr.bf16.mxu0 0
        %736 = vmatmul.mubr.bf16.gmra.mrb[0].mxu0 %v518
        %v737 = vpop.f32.mrb[0].mxu0
        %v738 = vadd.f32 0.0, %v737
        %v739 = vpop.f32.mrb[0].mxu0
        %v740 = vpop.f32.mrb[0].mxu0
        %v741 = vadd.f32 0.0, %v740
        %v742 = vpop.f32.mrb[0].mxu0
        %743 = vdwg.mxu0
        %744 = vst [vmem:[#allocation3] sm:$0xff] %v618
        %745 = vst [vmem:[#allocation3 + $0x8] sm:$0xff] %v621
        %746 = vst [vmem:[#allocation3 + $0x10] sm:$0xff] %v626
        %747 = vst [vmem:[#allocation3 + $0x18] sm:$0xff] %v629
        %748 = vst [vmem:[#allocation3 + $0x20] sm:$0xff] %v634
        %749 = vst [vmem:[#allocation3 + $0x28] sm:$0xff] %v637
        %750 = vst [vmem:[#allocation3 + $0x30] sm:$0xff] %v642
        %751 = vst [vmem:[#allocation3 + $0x38] sm:$0xff] %v645
        %752 = vst [vmem:[#allocation3 + $0x40] sm:$0xff] %v650
        %753 = vst [vmem:[#allocation3 + $0x48] sm:$0xff] %v653
        %754 = vst [vmem:[#allocation3 + $0x50] sm:$0xff] %v658
        %755 = vst [vmem:[#allocation3 + $0x58] sm:$0xff] %v661
        %756 = vst [vmem:[#allocation3 + $0x60] sm:$0xff] %v666
        %757 = vst [vmem:[#allocation3 + $0x68] sm:$0xff] %v669
        %758 = vst [vmem:[#allocation3 + $0x70] sm:$0xff] %v674
        %759 = vst [vmem:[#allocation3 + $0x78] sm:$0xff] %v677
        %760 = vst [vmem:[#allocation3 + $0x80] sm:$0xff] %v682
        %761 = vst [vmem:[#allocation3 + $0x88] sm:$0xff] %v685
        %762 = vst [vmem:[#allocation3 + $0x90] sm:$0xff] %v690
        %763 = vst [vmem:[#allocation3 + $0x98] sm:$0xff] %v693
        %764 = vst [vmem:[#allocation3 + $0xa0] sm:$0xff] %v698
        %765 = vst [vmem:[#allocation3 + $0xa8] sm:$0xff] %v701
        %766 = vst [vmem:[#allocation3 + $0xb0] sm:$0xff] %v706
        %767 = vst [vmem:[#allocation3 + $0xb8] sm:$0xff] %v709
        %768 = vst [vmem:[#allocation3 + $0xc0] sm:$0xff] %v714
        %769 = vst [vmem:[#allocation3 + $0xc8] sm:$0xff] %v717
        %770 = vst [vmem:[#allocation3 + $0xd0] sm:$0xff] %v722
        %771 = vst [vmem:[#allocation3 + $0xd8] sm:$0xff] %v725
        %772 = vst [vmem:[#allocation3 + $0xe0] sm:$0xff] %v730
        %773 = vst [vmem:[#allocation3 + $0xe8] sm:$0xff] %v733
        %774 = vst [vmem:[#allocation3 + $0xf0] sm:$0xff] %v738
        %775 = vst [vmem:[#allocation3 + $0xf8] sm:$0xff] %v741
        %776 = vst [vmem:[#allocation2] sm:$0xff] 0.0
        %777 = vst [vmem:[#allocation2 + $0x8] sm:$0xff] 0.0
        %778 = vst [vmem:[#allocation2 + $0x10] sm:$0xff] 0.0
        %779 = vst [vmem:[#allocation2 + $0x18] sm:$0xff] 0.0
        %780 = vst [vmem:[#allocation2 + $0x20] sm:$0xff] 0.0
        %781 = vst [vmem:[#allocation2 + $0x28] sm:$0xff] 0.0
        %782 = vst [vmem:[#allocation2 + $0x30] sm:$0xff] 0.0
        %783 = vst [vmem:[#allocation2 + $0x38] sm:$0xff] 0.0
        %s784 = scalar_lea.vmem [#allocation2], 576
        %785 = vst [vmem:[%s784] sm:$0xff] 0.0
        %786 = vst [vmem:[%s784 + $0x8] sm:$0xff] 0.0
        %787 = vst [vmem:[%s784 + $0x10] sm:$0xff] 0.0
        %788 = vst [vmem:[%s784 + $0x18] sm:$0xff] 0.0
        %789 = vst [vmem:[%s784 + $0x20] sm:$0xff] 0.0
        %790 = vst [vmem:[%s784 + $0x28] sm:$0xff] 0.0
        %791 = vst [vmem:[%s784 + $0x30] sm:$0xff] 0.0
        %792 = vst [vmem:[%s784 + $0x38] sm:$0xff] 0.0
        %s793 = scalar_lea.vmem [#allocation2], 64
        %794 = vst [vmem:[%s793] sm:$0xff] 0.0
        %795 = vst [vmem:[%s793 + $0x20] sm:$0xff] 0.0
        %796 = vst [vmem:[%s793 + $0x40] sm:$0xff] 0.0
        %797 = vst [vmem:[%s793 + $0x60] sm:$0xff] 0.0
        %798 = vst [vmem:[%s793 + $0x80] sm:$0xff] 0.0
        %799 = vst [vmem:[%s793 + $0xa0] sm:$0xff] 0.0
        %800 = vst [vmem:[%s793 + $0xc0] sm:$0xff] 0.0
        %801 = vst [vmem:[%s793 + $0xe0] sm:$0xff] 0.0
        %802 = vst [vmem:[%s793 + $0x100] sm:$0xff] 0.0
        %803 = vst [vmem:[%s793 + $0x120] sm:$0xff] 0.0
        %804 = vst [vmem:[%s793 + $0x140] sm:$0xff] 0.0
        %805 = vst [vmem:[%s793 + $0x160] sm:$0xff] 0.0
        %806 = vst [vmem:[%s793 + $0x180] sm:$0xff] 0.0
        %807 = vst [vmem:[%s793 + $0x1a0] sm:$0xff] 0.0
        %808 = vst [vmem:[%s793 + $0x1c0] sm:$0xff] 0.0
        %809 = vst [vmem:[%s793 + $0x1e0] sm:$0xff] 0.0
        %810 = vst [vmem:[%s793 + $0x18] sm:$0xff] 0.0
        %811 = vst [vmem:[%s793 + $0x38] sm:$0xff] 0.0
        %812 = vst [vmem:[%s793 + $0x58] sm:$0xff] 0.0
        %813 = vst [vmem:[%s793 + $0x78] sm:$0xff] 0.0
        %814 = vst [vmem:[%s793 + $0x98] sm:$0xff] 0.0
        %815 = vst [vmem:[%s793 + $0xb8] sm:$0xff] 0.0
        %816 = vst [vmem:[%s793 + $0xd8] sm:$0xff] 0.0
        %817 = vst [vmem:[%s793 + $0xf8] sm:$0xff] 0.0
        %818 = vst [vmem:[%s793 + $0x118] sm:$0xff] 0.0
        %819 = vst [vmem:[%s793 + $0x138] sm:$0xff] 0.0
        %820 = vst [vmem:[%s793 + $0x158] sm:$0xff] 0.0
        %821 = vst [vmem:[%s793 + $0x178] sm:$0xff] 0.0
        %822 = vst [vmem:[%s793 + $0x198] sm:$0xff] 0.0
        %823 = vst [vmem:[%s793 + $0x1b8] sm:$0xff] 0.0
        %824 = vst [vmem:[%s793 + $0x1d8] sm:$0xff] 0.0
        %825 = vst [vmem:[%s793 + $0x1f8] sm:$0xff] 0.0
        %826 = vst [vmem:[%s793 + $0x8] sm:$0xff] %v432
        %827 = vst [vmem:[%s793 + $0x10] sm:$0xff] %v433
        %828 = vst [vmem:[%s793 + $0x28] sm:$0xff] %v434
        %829 = vst [vmem:[%s793 + $0x30] sm:$0xff] %v435
        %830 = vst [vmem:[%s793 + $0x48] sm:$0xff] %v436
        %831 = vst [vmem:[%s793 + $0x50] sm:$0xff] %v437
        %832 = vst [vmem:[%s793 + $0x68] sm:$0xff] %v438
        %833 = vst [vmem:[%s793 + $0x70] sm:$0xff] %v439
        %834 = vst [vmem:[%s793 + $0x88] sm:$0xff] %v440
        %835 = vst [vmem:[%s793 + $0x90] sm:$0xff] %v441
        %836 = vst [vmem:[%s793 + $0xa8] sm:$0xff] %v442
        %837 = vst [vmem:[%s793 + $0xb0] sm:$0xff] %v443
        %838 = vst [vmem:[%s793 + $0xc8] sm:$0xff] %v444
        %839 = vst [vmem:[%s793 + $0xd0] sm:$0xff] %v445
        %840 = vst [vmem:[%s793 + $0xe8] sm:$0xff] %v446
        %841 = vst [vmem:[%s793 + $0xf0] sm:$0xff] %v447
        %842 = vst [vmem:[%s793 + $0x108] sm:$0xff] %v448
        %843 = vst [vmem:[%s793 + $0x110] sm:$0xff] %v449
        %844 = vst [vmem:[%s793 + $0x128] sm:$0xff] %v450
        %845 = vst [vmem:[%s793 + $0x130] sm:$0xff] %v451
        %846 = vst [vmem:[%s793 + $0x148] sm:$0xff] %v452
        %847 = vst [vmem:[%s793 + $0x150] sm:$0xff] %v453
        %848 = vst [vmem:[%s793 + $0x168] sm:$0xff] %v454
        %849 = vst [vmem:[%s793 + $0x170] sm:$0xff] %v455
        %850 = vst [vmem:[%s793 + $0x188] sm:$0xff] %v456
        %851 = vst [vmem:[%s793 + $0x190] sm:$0xff] %v457
        %852 = vst [vmem:[%s793 + $0x1a8] sm:$0xff] %v458
        %853 = vst [vmem:[%s793 + $0x1b0] sm:$0xff] %v459
        %854 = vst [vmem:[%s793 + $0x1c8] sm:$0xff] %v460
        %855 = vst [vmem:[%s793 + $0x1d0] sm:$0xff] %v461
        %856 = vst [vmem:[%s793 + $0x1e8] sm:$0xff] %v462
        %857 = vst [vmem:[%s793 + $0x1f0] sm:$0xff] %v463
        %v858 = vld [vmem:[#allocation2 + $0x6] sm:$0xff]
        %v859 = vld [vmem:[#allocation2 + $0xe] sm:$0xff]
        %v860 = vld [vmem:[#allocation2 + $0x26] sm:$0xff]
        %v861 = vld [vmem:[#allocation2 + $0x2e] sm:$0xff]
        %v862 = vld [vmem:[#allocation2 + $0x46] sm:$0xff]
        %v863 = vld [vmem:[#allocation2 + $0x4e] sm:$0xff]
        %v864 = vld [vmem:[#allocation2 + $0x66] sm:$0xff]
        %v865 = vld [vmem:[#allocation2 + $0x6e] sm:$0xff]
        %v866 = vld [vmem:[#allocation2 + $0x86] sm:$0xff]
        %v867 = vld [vmem:[#allocation2 + $0x8e] sm:$0xff]
        %v868 = vld [vmem:[#allocation2 + $0xa6] sm:$0xff]
        %v869 = vld [vmem:[#allocation2 + $0xae] sm:$0xff]
        %v870 = vld [vmem:[#allocation2 + $0xc6] sm:$0xff]
        %v871 = vld [vmem:[#allocation2 + $0xce] sm:$0xff]
        %v872 = vld [vmem:[#allocation2 + $0xe6] sm:$0xff]
        %v873 = vld [vmem:[#allocation2 + $0xee] sm:$0xff]
        %v874 = vld [vmem:[#allocation2 + $0x106] sm:$0xff]
        %v875 = vld [vmem:[#allocation2 + $0x10e] sm:$0xff]
        %v876 = vld [vmem:[#allocation2 + $0x126] sm:$0xff]
        %v877 = vld [vmem:[#allocation2 + $0x12e] sm:$0xff]
        %v878 = vld [vmem:[#allocation2 + $0x146] sm:$0xff]
        %v879 = vld [vmem:[#allocation2 + $0x14e] sm:$0xff]
        %v880 = vld [vmem:[#allocation2 + $0x166] sm:$0xff]
        %v881 = vld [vmem:[#allocation2 + $0x16e] sm:$0xff]
        %v882 = vld [vmem:[#allocation2 + $0x186] sm:$0xff]
        %v883 = vld [vmem:[#allocation2 + $0x18e] sm:$0xff]
        %v884 = vld [vmem:[#allocation2 + $0x1a6] sm:$0xff]
        %v885 = vld [vmem:[#allocation2 + $0x1ae] sm:$0xff]
        %v886 = vld [vmem:[#allocation2 + $0x1c6] sm:$0xff]
        %v887 = vld [vmem:[#allocation2 + $0x1ce] sm:$0xff]
        %v888 = vld [vmem:[#allocation2 + $0x1e6] sm:$0xff]
        %v889 = vld [vmem:[#allocation2 + $0x1ee] sm:$0xff]
        %v890 = vld [vmem:[#allocation2 + $0x206] sm:$0xff]
        %v891 = vld [vmem:[#allocation2 + $0x20e] sm:$0xff]
        %v892 = vld [vmem:[#allocation2 + $0x226] sm:$0xff]
        %v893 = vld [vmem:[#allocation2 + $0x22e] sm:$0xff]
        %v894 = vld [vmem:[#allocation2 + $0x246] sm:$0xff]
        %v895 = vld [vmem:[#allocation2 + $0x24e] sm:$0xff]
        %v896 = vld [vmem:[#allocation2 + $0x266] sm:$0xff]
        %v897 = vld [vmem:[#allocation2 + $0x26e] sm:$0xff]
        %v898 = vld [vmem:[#allocation2 + $0x7] sm:$0xff]
        %v899 = vld [vmem:[#allocation2 + $0xf] sm:$0xff]
        %v900 = vld [vmem:[#allocation2 + $0x27] sm:$0xff]
        %v901 = vld [vmem:[#allocation2 + $0x2f] sm:$0xff]
        %v902 = vld [vmem:[#allocation2 + $0x47] sm:$0xff]
        %v903 = vld [vmem:[#allocation2 + $0x4f] sm:$0xff]
        %v904 = vld [vmem:[#allocation2 + $0x67] sm:$0xff]
        %v905 = vld [vmem:[#allocation2 + $0x6f] sm:$0xff]
        %v906 = vld [vmem:[#allocation2 + $0x87] sm:$0xff]
        %v907 = vld [vmem:[#allocation2 + $0x8f] sm:$0xff]
        %v908 = vld [vmem:[#allocation2 + $0xa7] sm:$0xff]
        %v909 = vld [vmem:[#allocation2 + $0xaf] sm:$0xff]
        %v910 = vld [vmem:[#allocation2 + $0xc7] sm:$0xff]
        %v911 = vld [vmem:[#allocation2 + $0xcf] sm:$0xff]
        %v912 = vld [vmem:[#allocation2 + $0xe7] sm:$0xff]
        %v913 = vld [vmem:[#allocation2 + $0xef] sm:$0xff]
        %v914 = vld [vmem:[#allocation2 + $0x107] sm:$0xff]
        %v915 = vld [vmem:[#allocation2 + $0x10f] sm:$0xff]
        %v916 = vld [vmem:[#allocation2 + $0x127] sm:$0xff]
        %v917 = vld [vmem:[#allocation2 + $0x12f] sm:$0xff]
        %v918 = vld [vmem:[#allocation2 + $0x147] sm:$0xff]
        %v919 = vld [vmem:[#allocation2 + $0x14f] sm:$0xff]
        %v920 = vld [vmem:[#allocation2 + $0x167] sm:$0xff]
        %v921 = vld [vmem:[#allocation2 + $0x16f] sm:$0xff]
        %v922 = vld [vmem:[#allocation2 + $0x187] sm:$0xff]
        %v923 = vld [vmem:[#allocation2 + $0x18f] sm:$0xff]
        %v924 = vld [vmem:[#allocation2 + $0x1a7] sm:$0xff]
        %v925 = vld [vmem:[#allocation2 + $0x1af] sm:$0xff]
        %v926 = vld [vmem:[#allocation2 + $0x1c7] sm:$0xff]
        %v927 = vld [vmem:[#allocation2 + $0x1cf] sm:$0xff]
        %v928 = vld [vmem:[#allocation2 + $0x1e7] sm:$0xff]
        %v929 = vld [vmem:[#allocation2 + $0x1ef] sm:$0xff]
        %v930 = vld [vmem:[#allocation2 + $0x207] sm:$0xff]
        %v931 = vld [vmem:[#allocation2 + $0x20f] sm:$0xff]
        %v932 = vld [vmem:[#allocation2 + $0x227] sm:$0xff]
        %v933 = vld [vmem:[#allocation2 + $0x22f] sm:$0xff]
        %v934 = vld [vmem:[#allocation2 + $0x247] sm:$0xff]
        %v935 = vld [vmem:[#allocation2 + $0x24f] sm:$0xff]
        %v936 = vld [vmem:[#allocation2 + $0x267] sm:$0xff]
        %v937 = vld [vmem:[#allocation2 + $0x26f] sm:$0xff]
        %v938 = vld [vmem:[#allocation2 + $0x8] sm:$0xff]
        %v939 = vld [vmem:[#allocation2 + $0x10] sm:$0xff]
        %v940 = vld [vmem:[#allocation2 + $0x28] sm:$0xff]
        %v941 = vld [vmem:[#allocation2 + $0x30] sm:$0xff]
        %v942 = vld [vmem:[#allocation2 + $0x48] sm:$0xff]
        %v943 = vld [vmem:[#allocation2 + $0x50] sm:$0xff]
        %v944 = vld [vmem:[#allocation2 + $0x68] sm:$0xff]
        %v945 = vld [vmem:[#allocation2 + $0x70] sm:$0xff]
        %v946 = vld [vmem:[#allocation2 + $0x88] sm:$0xff]
        %v947 = vld [vmem:[#allocation2 + $0x90] sm:$0xff]
        %v948 = vld [vmem:[#allocation2 + $0xa8] sm:$0xff]
        %v949 = vld [vmem:[#allocation2 + $0xb0] sm:$0xff]
        %v950 = vld [vmem:[#allocation2 + $0xc8] sm:$0xff]
        %v951 = vld [vmem:[#allocation2 + $0xd0] sm:$0xff]
        %v952 = vld [vmem:[#allocation2 + $0xe8] sm:$0xff]
        %v953 = vld [vmem:[#allocation2 + $0xf0] sm:$0xff]
        %v954 = vld [vmem:[#allocation2 + $0x108] sm:$0xff]
        %v955 = vld [vmem:[#allocation2 + $0x110] sm:$0xff]
        %v956 = vld [vmem:[#allocation2 + $0x128] sm:$0xff]
        %v957 = vld [vmem:[#allocation2 + $0x130] sm:$0xff]
        %v958 = vld [vmem:[#allocation2 + $0x148] sm:$0xff]
        %v959 = vld [vmem:[#allocation2 + $0x150] sm:$0xff]
        %v960 = vld [vmem:[#allocation2 + $0x168] sm:$0xff]
        %v961 = vld [vmem:[#allocation2 + $0x170] sm:$0xff]
        %v962 = vld [vmem:[#allocation2 + $0x188] sm:$0xff]
        %v963 = vld [vmem:[#allocation2 + $0x190] sm:$0xff]
        %v964 = vld [vmem:[#allocation2 + $0x1a8] sm:$0xff]
        %v965 = vld [vmem:[#allocation2 + $0x1b0] sm:$0xff]
        %v966 = vld [vmem:[#allocation2 + $0x1c8] sm:$0xff]
        %v967 = vld [vmem:[#allocation2 + $0x1d0] sm:$0xff]
        %v968 = vld [vmem:[#allocation2 + $0x1e8] sm:$0xff]
        %v969 = vld [vmem:[#allocation2 + $0x1f0] sm:$0xff]
        %v970 = vld [vmem:[#allocation2 + $0x208] sm:$0xff]
        %v971 = vld [vmem:[#allocation2 + $0x210] sm:$0xff]
        %v972 = vld [vmem:[#allocation2 + $0x228] sm:$0xff]
        %v973 = vld [vmem:[#allocation2 + $0x230] sm:$0xff]
        %v974 = vld [vmem:[#allocation2 + $0x248] sm:$0xff]
        %v975 = vld [vmem:[#allocation2 + $0x250] sm:$0xff]
        %v976 = vld [vmem:[#allocation2 + $0x268] sm:$0xff]
        %v977 = vld [vmem:[#allocation2 + $0x270] sm:$0xff]
        %v978 = vld [vmem:[#allocation2 + $0x9] sm:$0xff]
        %v979 = vld [vmem:[#allocation2 + $0x11] sm:$0xff]
        %v980 = vld [vmem:[#allocation2 + $0x29] sm:$0xff]
        %v981 = vld [vmem:[#allocation2 + $0x31] sm:$0xff]
        %v982 = vld [vmem:[#allocation2 + $0x49] sm:$0xff]
        %v983 = vld [vmem:[#allocation2 + $0x51] sm:$0xff]
        %v984 = vld [vmem:[#allocation2 + $0x69] sm:$0xff]
        %v985 = vld [vmem:[#allocation2 + $0x71] sm:$0xff]
        %v986 = vld [vmem:[#allocation2 + $0x89] sm:$0xff]
        %v987 = vld [vmem:[#allocation2 + $0x91] sm:$0xff]
        %v988 = vld [vmem:[#allocation2 + $0xa9] sm:$0xff]
        %v989 = vld [vmem:[#allocation2 + $0xb1] sm:$0xff]
        %v990 = vld [vmem:[#allocation2 + $0xc9] sm:$0xff]
        %v991 = vld [vmem:[#allocation2 + $0xd1] sm:$0xff]
        %v992 = vld [vmem:[#allocation2 + $0xe9] sm:$0xff]
        %v993 = vld [vmem:[#allocation2 + $0xf1] sm:$0xff]
        %v994 = vld [vmem:[#allocation2 + $0x109] sm:$0xff]
        %v995 = vld [vmem:[#allocation2 + $0x111] sm:$0xff]
        %v996 = vld [vmem:[#allocation2 + $0x129] sm:$0xff]
        %v997 = vld [vmem:[#allocation2 + $0x131] sm:$0xff]
        %v998 = vld [vmem:[#allocation2 + $0x149] sm:$0xff]
        %v999 = vld [vmem:[#allocation2 + $0x151] sm:$0xff]
        %v1000 = vld [vmem:[#allocation2 + $0x169] sm:$0xff]
        %v1001 = vld [vmem:[#allocation2 + $0x171] sm:$0xff]
        %v1002 = vld [vmem:[#allocation2 + $0x189] sm:$0xff]
        %v1003 = vld [vmem:[#allocation2 + $0x191] sm:$0xff]
        %v1004 = vld [vmem:[#allocation2 + $0x1a9] sm:$0xff]
        %v1005 = vld [vmem:[#allocation2 + $0x1b1] sm:$0xff]
        %v1006 = vld [vmem:[#allocation2 + $0x1c9] sm:$0xff]
        %v1007 = vld [vmem:[#allocation2 + $0x1d1] sm:$0xff]
        %v1008 = vld [vmem:[#allocation2 + $0x1e9] sm:$0xff]
        %v1009 = vld [vmem:[#allocation2 + $0x1f1] sm:$0xff]
        %v1010 = vld [vmem:[#allocation2 + $0x209] sm:$0xff]
        %v1011 = vld [vmem:[#allocation2 + $0x211] sm:$0xff]
        %v1012 = vld [vmem:[#allocation2 + $0x229] sm:$0xff]
        %v1013 = vld [vmem:[#allocation2 + $0x231] sm:$0xff]
        %v1014 = vld [vmem:[#allocation2 + $0x249] sm:$0xff]
        %v1015 = vld [vmem:[#allocation2 + $0x251] sm:$0xff]
        %v1016 = vld [vmem:[#allocation2 + $0x269] sm:$0xff]
        %v1017 = vld [vmem:[#allocation2 + $0x271] sm:$0xff]
        %v1018 = vld [vmem:[#allocation2 + $0xa] sm:$0xff]
        %v1019 = vld [vmem:[#allocation2 + $0x12] sm:$0xff]
        %v1020 = vld [vmem:[#allocation2 + $0x2a] sm:$0xff]
        %v1021 = vld [vmem:[#allocation2 + $0x32] sm:$0xff]
        %v1022 = vld [vmem:[#allocation2 + $0x4a] sm:$0xff]
        %v1023 = vld [vmem:[#allocation2 + $0x52] sm:$0xff]
        %v1024 = vld [vmem:[#allocation2 + $0x6a] sm:$0xff]
        %v1025 = vld [vmem:[#allocation2 + $0x72] sm:$0xff]
        %v1026 = vld [vmem:[#allocation2 + $0x8a] sm:$0xff]
        %v1027 = vld [vmem:[#allocation2 + $0x92] sm:$0xff]
        %v1028 = vld [vmem:[#allocation2 + $0xaa] sm:$0xff]
        %v1029 = vld [vmem:[#allocation2 + $0xb2] sm:$0xff]
        %v1030 = vld [vmem:[#allocation2 + $0xca] sm:$0xff]
        %v1031 = vld [vmem:[#allocation2 + $0xd2] sm:$0xff]
        %v1032 = vld [vmem:[#allocation2 + $0xea] sm:$0xff]
        %v1033 = vld [vmem:[#allocation2 + $0xf2] sm:$0xff]
        %v1034 = vld [vmem:[#allocation2 + $0x10a] sm:$0xff]
        %v1035 = vld [vmem:[#allocation2 + $0x112] sm:$0xff]
        %v1036 = vld [vmem:[#allocation2 + $0x12a] sm:$0xff]
        %v1037 = vld [vmem:[#allocation2 + $0x132] sm:$0xff]
        %v1038 = vld [vmem:[#allocation2 + $0x14a] sm:$0xff]
        %v1039 = vld [vmem:[#allocation2 + $0x152] sm:$0xff]
        %v1040 = vld [vmem:[#allocation2 + $0x16a] sm:$0xff]
        %v1041 = vld [vmem:[#allocation2 + $0x172] sm:$0xff]
        %v1042 = vld [vmem:[#allocation2 + $0x18a] sm:$0xff]
        %v1043 = vld [vmem:[#allocation2 + $0x192] sm:$0xff]
        %v1044 = vld [vmem:[#allocation2 + $0x1aa] sm:$0xff]
        %v1045 = vld [vmem:[#allocation2 + $0x1b2] sm:$0xff]
        %v1046 = vld [vmem:[#allocation2 + $0x1ca] sm:$0xff]
        %v1047 = vld [vmem:[#allocation2 + $0x1d2] sm:$0xff]
        %v1048 = vld [vmem:[#allocation2 + $0x1ea] sm:$0xff]
        %v1049 = vld [vmem:[#allocation2 + $0x1f2] sm:$0xff]
        %v1050 = vld [vmem:[#allocation2 + $0x20a] sm:$0xff]
        %v1051 = vld [vmem:[#allocation2 + $0x212] sm:$0xff]
        %v1052 = vld [vmem:[#allocation2 + $0x22a] sm:$0xff]
        %v1053 = vld [vmem:[#allocation2 + $0x232] sm:$0xff]
        %v1054 = vld [vmem:[#allocation2 + $0x24a] sm:$0xff]
        %v1055 = vld [vmem:[#allocation2 + $0x252] sm:$0xff]
        %v1056 = vld [vmem:[#allocation2 + $0x26a] sm:$0xff]
        %v1057 = vld [vmem:[#allocation2 + $0x272] sm:$0xff]
        %v1058 = vld [vmem:[%s4] sm:$0x7]
        %v1059 = vld [vmem:[%s4 + $0x4] sm:$0x7]
        %v1060 = vld [vmem:[%s4 + $0x8] sm:$0x7]
        %v1061 = vlaneseq
        %v1062 = vshrl.u32 %v1061, 7
        %v1063 = vsub.s32 0, %v1062
        %v1064 = vrot.slane %v1058, %v1063
        %v1065 = vmul.f32 %v900, %v1064
        %v1066 = vmul.f32 %v901, %v1064
        %v1067 = vmul.f32 %v902, %v1064
        %v1068 = vmul.f32 %v903, %v1064
        %v1069 = vmul.f32 %v904, %v1064
        %v1070 = vmul.f32 %v905, %v1064
        %v1071 = vmul.f32 %v906, %v1064
        %v1072 = vmul.f32 %v907, %v1064
        %v1073 = vmul.f32 %v908, %v1064
        %v1074 = vmul.f32 %v909, %v1064
        %v1075 = vmul.f32 %v910, %v1064
        %v1076 = vmul.f32 %v911, %v1064
        %v1077 = vmul.f32 %v912, %v1064
        %v1078 = vmul.f32 %v913, %v1064
        %v1079 = vmul.f32 %v914, %v1064
        %v1080 = vmul.f32 %v915, %v1064
        %v1081 = vmul.f32 %v916, %v1064
        %v1082 = vmul.f32 %v917, %v1064
        %v1083 = vmul.f32 %v918, %v1064
        %v1084 = vmul.f32 %v919, %v1064
        %v1085 = vmul.f32 %v920, %v1064
        %v1086 = vmul.f32 %v921, %v1064
        %v1087 = vmul.f32 %v922, %v1064
        %v1088 = vmul.f32 %v923, %v1064
        %v1089 = vmul.f32 %v924, %v1064
        %v1090 = vmul.f32 %v925, %v1064
        %v1091 = vmul.f32 %v926, %v1064
        %v1092 = vmul.f32 %v927, %v1064
        %v1093 = vmul.f32 %v928, %v1064
        %v1094 = vmul.f32 %v929, %v1064
        %v1095 = vmul.f32 %v930, %v1064
        %v1096 = vmul.f32 %v931, %v1064
        %v1097 = vadd.f32 %v1065, 0.0
        %v1098 = vadd.f32 %v1066, 0.0
        %v1099 = vadd.f32 %v1067, 0.0
        %v1100 = vadd.f32 %v1068, 0.0
        %v1101 = vadd.f32 %v1069, 0.0
        %v1102 = vadd.f32 %v1070, 0.0
        %v1103 = vadd.f32 %v1071, 0.0
        %v1104 = vadd.f32 %v1072, 0.0
        %v1105 = vadd.f32 %v1073, 0.0
        %v1106 = vadd.f32 %v1074, 0.0
        %v1107 = vadd.f32 %v1075, 0.0
        %v1108 = vadd.f32 %v1076, 0.0
        %v1109 = vadd.f32 %v1077, 0.0
        %v1110 = vadd.f32 %v1078, 0.0
        %v1111 = vadd.f32 %v1079, 0.0
        %v1112 = vadd.f32 %v1080, 0.0
        %v1113 = vadd.f32 %v1081, 0.0
        %v1114 = vadd.f32 %v1082, 0.0
        %v1115 = vadd.f32 %v1083, 0.0
        %v1116 = vadd.f32 %v1084, 0.0
        %v1117 = vadd.f32 %v1085, 0.0
        %v1118 = vadd.f32 %v1086, 0.0
        %v1119 = vadd.f32 %v1087, 0.0
        %v1120 = vadd.f32 %v1088, 0.0
        %v1121 = vadd.f32 %v1089, 0.0
        %v1122 = vadd.f32 %v1090, 0.0
        %v1123 = vadd.f32 %v1091, 0.0
        %v1124 = vadd.f32 %v1092, 0.0
        %v1125 = vadd.f32 %v1093, 0.0
        %v1126 = vadd.f32 %v1094, 0.0
        %v1127 = vadd.f32 %v1095, 0.0
        %v1128 = vadd.f32 %v1096, 0.0
        %v1129 = vlaneseq
        %v1130 = vshrl.u32 %v1129, 7
        %v1131 = vsub.s32 1, %v1130
        %v1132 = vrot.slane %v1058, %v1131
        %v1133 = vmul.f32 %v940, %v1132
        %v1134 = vmul.f32 %v941, %v1132
        %v1135 = vmul.f32 %v942, %v1132
        %v1136 = vmul.f32 %v943, %v1132
        %v1137 = vmul.f32 %v944, %v1132
        %v1138 = vmul.f32 %v945, %v1132
        %v1139 = vmul.f32 %v946, %v1132
        %v1140 = vmul.f32 %v947, %v1132
        %v1141 = vmul.f32 %v948, %v1132
        %v1142 = vmul.f32 %v949, %v1132
        %v1143 = vmul.f32 %v950, %v1132
        %v1144 = vmul.f32 %v951, %v1132
        %v1145 = vmul.f32 %v952, %v1132
        %v1146 = vmul.f32 %v953, %v1132
        %v1147 = vmul.f32 %v954, %v1132
        %v1148 = vmul.f32 %v955, %v1132
        %v1149 = vmul.f32 %v956, %v1132
        %v1150 = vmul.f32 %v957, %v1132
        %v1151 = vmul.f32 %v958, %v1132
        %v1152 = vmul.f32 %v959, %v1132
        %v1153 = vmul.f32 %v960, %v1132
        %v1154 = vmul.f32 %v961, %v1132
        %v1155 = vmul.f32 %v962, %v1132
        %v1156 = vmul.f32 %v963, %v1132
        %v1157 = vmul.f32 %v964, %v1132
        %v1158 = vmul.f32 %v965, %v1132
        %v1159 = vmul.f32 %v966, %v1132
        %v1160 = vmul.f32 %v967, %v1132
        %v1161 = vmul.f32 %v968, %v1132
        %v1162 = vmul.f32 %v969, %v1132
        %v1163 = vmul.f32 %v970, %v1132
        %v1164 = vmul.f32 %v971, %v1132
        %v1165 = vadd.f32 %v1097, %v1133
        %v1166 = vadd.f32 %v1098, %v1134
        %v1167 = vadd.f32 %v1099, %v1135
        %v1168 = vadd.f32 %v1100, %v1136
        %v1169 = vadd.f32 %v1101, %v1137
        %v1170 = vadd.f32 %v1102, %v1138
        %v1171 = vadd.f32 %v1103, %v1139
        %v1172 = vadd.f32 %v1104, %v1140
        %v1173 = vadd.f32 %v1105, %v1141
        %v1174 = vadd.f32 %v1106, %v1142
        %v1175 = vadd.f32 %v1107, %v1143
        %v1176 = vadd.f32 %v1108, %v1144
        %v1177 = vadd.f32 %v1109, %v1145
        %v1178 = vadd.f32 %v1110, %v1146
        %v1179 = vadd.f32 %v1111, %v1147
        %v1180 = vadd.f32 %v1112, %v1148
        %v1181 = vadd.f32 %v1113, %v1149
        %v1182 = vadd.f32 %v1114, %v1150
        %v1183 = vadd.f32 %v1115, %v1151
        %v1184 = vadd.f32 %v1116, %v1152
        %v1185 = vadd.f32 %v1117, %v1153
        %v1186 = vadd.f32 %v1118, %v1154
        %v1187 = vadd.f32 %v1119, %v1155
        %v1188 = vadd.f32 %v1120, %v1156
        %v1189 = vadd.f32 %v1121, %v1157
        %v1190 = vadd.f32 %v1122, %v1158
        %v1191 = vadd.f32 %v1123, %v1159
        %v1192 = vadd.f32 %v1124, %v1160
        %v1193 = vadd.f32 %v1125, %v1161
        %v1194 = vadd.f32 %v1126, %v1162
        %v1195 = vadd.f32 %v1127, %v1163
        %v1196 = vadd.f32 %v1128, %v1164
        %v1197 = vlaneseq
        %v1198 = vshrl.u32 %v1197, 7
        %v1199 = vsub.s32 2, %v1198
        %v1200 = vrot.slane %v1058, %v1199
        %v1201 = vmul.f32 %v980, %v1200
        %v1202 = vmul.f32 %v981, %v1200
        %v1203 = vmul.f32 %v982, %v1200
        %v1204 = vmul.f32 %v983, %v1200
        %v1205 = vmul.f32 %v984, %v1200
        %v1206 = vmul.f32 %v985, %v1200
        %v1207 = vmul.f32 %v986, %v1200
        %v1208 = vmul.f32 %v987, %v1200
        %v1209 = vmul.f32 %v988, %v1200
        %v1210 = vmul.f32 %v989, %v1200
        %v1211 = vmul.f32 %v990, %v1200
        %v1212 = vmul.f32 %v991, %v1200
        %v1213 = vmul.f32 %v992, %v1200
        %v1214 = vmul.f32 %v993, %v1200
        %v1215 = vmul.f32 %v994, %v1200
        %v1216 = vmul.f32 %v995, %v1200
        %v1217 = vmul.f32 %v996, %v1200
        %v1218 = vmul.f32 %v997, %v1200
        %v1219 = vmul.f32 %v998, %v1200
        %v1220 = vmul.f32 %v999, %v1200
        %v1221 = vmul.f32 %v1000, %v1200
        %v1222 = vmul.f32 %v1001, %v1200
        %v1223 = vmul.f32 %v1002, %v1200
        %v1224 = vmul.f32 %v1003, %v1200
        %v1225 = vmul.f32 %v1004, %v1200
        %v1226 = vmul.f32 %v1005, %v1200
        %v1227 = vmul.f32 %v1006, %v1200
        %v1228 = vmul.f32 %v1007, %v1200
        %v1229 = vmul.f32 %v1008, %v1200
        %v1230 = vmul.f32 %v1009, %v1200
        %v1231 = vmul.f32 %v1010, %v1200
        %v1232 = vmul.f32 %v1011, %v1200
        %v1233 = vadd.f32 %v1165, %v1201
        %v1234 = vadd.f32 %v1166, %v1202
        %v1235 = vadd.f32 %v1167, %v1203
        %v1236 = vadd.f32 %v1168, %v1204
        %v1237 = vadd.f32 %v1169, %v1205
        %v1238 = vadd.f32 %v1170, %v1206
        %v1239 = vadd.f32 %v1171, %v1207
        %v1240 = vadd.f32 %v1172, %v1208
        %v1241 = vadd.f32 %v1173, %v1209
        %v1242 = vadd.f32 %v1174, %v1210
        %v1243 = vadd.f32 %v1175, %v1211
        %v1244 = vadd.f32 %v1176, %v1212
        %v1245 = vadd.f32 %v1177, %v1213
        %v1246 = vadd.f32 %v1178, %v1214
        %v1247 = vadd.f32 %v1179, %v1215
        %v1248 = vadd.f32 %v1180, %v1216
        %v1249 = vadd.f32 %v1181, %v1217
        %v1250 = vadd.f32 %v1182, %v1218
        %v1251 = vadd.f32 %v1183, %v1219
        %v1252 = vadd.f32 %v1184, %v1220
        %v1253 = vadd.f32 %v1185, %v1221
        %v1254 = vadd.f32 %v1186, %v1222
        %v1255 = vadd.f32 %v1187, %v1223
        %v1256 = vadd.f32 %v1188, %v1224
        %v1257 = vadd.f32 %v1189, %v1225
        %v1258 = vadd.f32 %v1190, %v1226
        %v1259 = vadd.f32 %v1191, %v1227
        %v1260 = vadd.f32 %v1192, %v1228
        %v1261 = vadd.f32 %v1193, %v1229
        %v1262 = vadd.f32 %v1194, %v1230
        %v1263 = vadd.f32 %v1195, %v1231
        %v1264 = vadd.f32 %v1196, %v1232
        %v1265 = vlaneseq
        %v1266 = vshrl.u32 %v1265, 7
        %v1267 = vsub.s32 0, %v1266
        %v1268 = vrot.slane %v1059, %v1267
        %v1269 = vmul.f32 %v902, %v1268
        %v1270 = vmul.f32 %v903, %v1268
        %v1271 = vmul.f32 %v904, %v1268
        %v1272 = vmul.f32 %v905, %v1268
        %v1273 = vmul.f32 %v906, %v1268
        %v1274 = vmul.f32 %v907, %v1268
        %v1275 = vmul.f32 %v908, %v1268
        %v1276 = vmul.f32 %v909, %v1268
        %v1277 = vmul.f32 %v910, %v1268
        %v1278 = vmul.f32 %v911, %v1268
        %v1279 = vmul.f32 %v912, %v1268
        %v1280 = vmul.f32 %v913, %v1268
        %v1281 = vmul.f32 %v914, %v1268
        %v1282 = vmul.f32 %v915, %v1268
        %v1283 = vmul.f32 %v916, %v1268
        %v1284 = vmul.f32 %v917, %v1268
        %v1285 = vmul.f32 %v918, %v1268
        %v1286 = vmul.f32 %v919, %v1268
        %v1287 = vmul.f32 %v920, %v1268
        %v1288 = vmul.f32 %v921, %v1268
        %v1289 = vmul.f32 %v922, %v1268
        %v1290 = vmul.f32 %v923, %v1268
        %v1291 = vmul.f32 %v924, %v1268
        %v1292 = vmul.f32 %v925, %v1268
        %v1293 = vmul.f32 %v926, %v1268
        %v1294 = vmul.f32 %v927, %v1268
        %v1295 = vmul.f32 %v928, %v1268
        %v1296 = vmul.f32 %v929, %v1268
        %v1297 = vmul.f32 %v930, %v1268
        %v1298 = vmul.f32 %v931, %v1268
        %v1299 = vmul.f32 %v932, %v1268
        %v1300 = vmul.f32 %v933, %v1268
        %v1301 = vadd.f32 %v1233, %v1269
        %v1302 = vadd.f32 %v1234, %v1270
        %v1303 = vadd.f32 %v1235, %v1271
        %v1304 = vadd.f32 %v1236, %v1272
        %v1305 = vadd.f32 %v1237, %v1273
        %v1306 = vadd.f32 %v1238, %v1274
        %v1307 = vadd.f32 %v1239, %v1275
        %v1308 = vadd.f32 %v1240, %v1276
        %v1309 = vadd.f32 %v1241, %v1277
        %v1310 = vadd.f32 %v1242, %v1278
        %v1311 = vadd.f32 %v1243, %v1279
        %v1312 = vadd.f32 %v1244, %v1280
        %v1313 = vadd.f32 %v1245, %v1281
        %v1314 = vadd.f32 %v1246, %v1282
        %v1315 = vadd.f32 %v1247, %v1283
        %v1316 = vadd.f32 %v1248, %v1284
        %v1317 = vadd.f32 %v1249, %v1285
        %v1318 = vadd.f32 %v1250, %v1286
        %v1319 = vadd.f32 %v1251, %v1287
        %v1320 = vadd.f32 %v1252, %v1288
        %v1321 = vadd.f32 %v1253, %v1289
        %v1322 = vadd.f32 %v1254, %v1290
        %v1323 = vadd.f32 %v1255, %v1291
        %v1324 = vadd.f32 %v1256, %v1292
        %v1325 = vadd.f32 %v1257, %v1293
        %v1326 = vadd.f32 %v1258, %v1294
        %v1327 = vadd.f32 %v1259, %v1295
        %v1328 = vadd.f32 %v1260, %v1296
        %v1329 = vadd.f32 %v1261, %v1297
        %v1330 = vadd.f32 %v1262, %v1298
        %v1331 = vadd.f32 %v1263, %v1299
        %v1332 = vadd.f32 %v1264, %v1300
        %v1333 = vlaneseq
        %v1334 = vshrl.u32 %v1333, 7
        %v1335 = vsub.s32 1, %v1334
        %v1336 = vrot.slane %v1059, %v1335
        %v1337 = vmul.f32 %v942, %v1336
        %v1338 = vmul.f32 %v943, %v1336
        %v1339 = vmul.f32 %v944, %v1336
        %v1340 = vmul.f32 %v945, %v1336
        %v1341 = vmul.f32 %v946, %v1336
        %v1342 = vmul.f32 %v947, %v1336
        %v1343 = vmul.f32 %v948, %v1336
        %v1344 = vmul.f32 %v949, %v1336
        %v1345 = vmul.f32 %v950, %v1336
        %v1346 = vmul.f32 %v951, %v1336
        %v1347 = vmul.f32 %v952, %v1336
        %v1348 = vmul.f32 %v953, %v1336
        %v1349 = vmul.f32 %v954, %v1336
        %v1350 = vmul.f32 %v955, %v1336
        %v1351 = vmul.f32 %v956, %v1336
        %v1352 = vmul.f32 %v957, %v1336
        %v1353 = vmul.f32 %v958, %v1336
        %v1354 = vmul.f32 %v959, %v1336
        %v1355 = vmul.f32 %v960, %v1336
        %v1356 = vmul.f32 %v961, %v1336
        %v1357 = vmul.f32 %v962, %v1336
        %v1358 = vmul.f32 %v963, %v1336
        %v1359 = vmul.f32 %v964, %v1336
        %v1360 = vmul.f32 %v965, %v1336
        %v1361 = vmul.f32 %v966, %v1336
        %v1362 = vmul.f32 %v967, %v1336
        %v1363 = vmul.f32 %v968, %v1336
        %v1364 = vmul.f32 %v969, %v1336
        %v1365 = vmul.f32 %v970, %v1336
        %v1366 = vmul.f32 %v971, %v1336
        %v1367 = vmul.f32 %v972, %v1336
        %v1368 = vmul.f32 %v973, %v1336
        %v1369 = vadd.f32 %v1301, %v1337
        %v1370 = vadd.f32 %v1302, %v1338
        %v1371 = vadd.f32 %v1303, %v1339
        %v1372 = vadd.f32 %v1304, %v1340
        %v1373 = vadd.f32 %v1305, %v1341
        %v1374 = vadd.f32 %v1306, %v1342
        %v1375 = vadd.f32 %v1307, %v1343
        %v1376 = vadd.f32 %v1308, %v1344
        %v1377 = vadd.f32 %v1309, %v1345
        %v1378 = vadd.f32 %v1310, %v1346
        %v1379 = vadd.f32 %v1311, %v1347
        %v1380 = vadd.f32 %v1312, %v1348
        %v1381 = vadd.f32 %v1313, %v1349
        %v1382 = vadd.f32 %v1314, %v1350
        %v1383 = vadd.f32 %v1315, %v1351
        %v1384 = vadd.f32 %v1316, %v1352
        %v1385 = vadd.f32 %v1317, %v1353
        %v1386 = vadd.f32 %v1318, %v1354
        %v1387 = vadd.f32 %v1319, %v1355
        %v1388 = vadd.f32 %v1320, %v1356
        %v1389 = vadd.f32 %v1321, %v1357
        %v1390 = vadd.f32 %v1322, %v1358
        %v1391 = vadd.f32 %v1323, %v1359
        %v1392 = vadd.f32 %v1324, %v1360
        %v1393 = vadd.f32 %v1325, %v1361
        %v1394 = vadd.f32 %v1326, %v1362
        %v1395 = vadd.f32 %v1327, %v1363
        %v1396 = vadd.f32 %v1328, %v1364
        %v1397 = vadd.f32 %v1329, %v1365
        %v1398 = vadd.f32 %v1330, %v1366
        %v1399 = vadd.f32 %v1331, %v1367
        %v1400 = vadd.f32 %v1332, %v1368
        %v1401 = vlaneseq
        %v1402 = vshrl.u32 %v1401, 7
        %v1403 = vsub.s32 2, %v1402
        %v1404 = vrot.slane %v1059, %v1403
        %v1405 = vmul.f32 %v982, %v1404
        %v1406 = vmul.f32 %v983, %v1404
        %v1407 = vmul.f32 %v984, %v1404
        %v1408 = vmul.f32 %v985, %v1404
        %v1409 = vmul.f32 %v986, %v1404
        %v1410 = vmul.f32 %v987, %v1404
        %v1411 = vmul.f32 %v988, %v1404
        %v1412 = vmul.f32 %v989, %v1404
        %v1413 = vmul.f32 %v990, %v1404
        %v1414 = vmul.f32 %v991, %v1404
        %v1415 = vmul.f32 %v992, %v1404
        %v1416 = vmul.f32 %v993, %v1404
        %v1417 = vmul.f32 %v994, %v1404
        %v1418 = vmul.f32 %v995, %v1404
        %v1419 = vmul.f32 %v996, %v1404
        %v1420 = vmul.f32 %v997, %v1404
        %v1421 = vmul.f32 %v998, %v1404
        %v1422 = vmul.f32 %v999, %v1404
        %v1423 = vmul.f32 %v1000, %v1404
        %v1424 = vmul.f32 %v1001, %v1404
        %v1425 = vmul.f32 %v1002, %v1404
        %v1426 = vmul.f32 %v1003, %v1404
        %v1427 = vmul.f32 %v1004, %v1404
        %v1428 = vmul.f32 %v1005, %v1404
        %v1429 = vmul.f32 %v1006, %v1404
        %v1430 = vmul.f32 %v1007, %v1404
        %v1431 = vmul.f32 %v1008, %v1404
        %v1432 = vmul.f32 %v1009, %v1404
        %v1433 = vmul.f32 %v1010, %v1404
        %v1434 = vmul.f32 %v1011, %v1404
        %v1435 = vmul.f32 %v1012, %v1404
        %v1436 = vmul.f32 %v1013, %v1404
        %v1437 = vadd.f32 %v1369, %v1405
        %v1438 = vadd.f32 %v1370, %v1406
        %v1439 = vadd.f32 %v1371, %v1407
        %v1440 = vadd.f32 %v1372, %v1408
        %v1441 = vadd.f32 %v1373, %v1409
        %v1442 = vadd.f32 %v1374, %v1410
        %v1443 = vadd.f32 %v1375, %v1411
        %v1444 = vadd.f32 %v1376, %v1412
        %v1445 = vadd.f32 %v1377, %v1413
        %v1446 = vadd.f32 %v1378, %v1414
        %v1447 = vadd.f32 %v1379, %v1415
        %v1448 = vadd.f32 %v1380, %v1416
        %v1449 = vadd.f32 %v1381, %v1417
        %v1450 = vadd.f32 %v1382, %v1418
        %v1451 = vadd.f32 %v1383, %v1419
        %v1452 = vadd.f32 %v1384, %v1420
        %v1453 = vadd.f32 %v1385, %v1421
        %v1454 = vadd.f32 %v1386, %v1422
        %v1455 = vadd.f32 %v1387, %v1423
        %v1456 = vadd.f32 %v1388, %v1424
        %v1457 = vadd.f32 %v1389, %v1425
        %v1458 = vadd.f32 %v1390, %v1426
        %v1459 = vadd.f32 %v1391, %v1427
        %v1460 = vadd.f32 %v1392, %v1428
        %v1461 = vadd.f32 %v1393, %v1429
        %v1462 = vadd.f32 %v1394, %v1430
        %v1463 = vadd.f32 %v1395, %v1431
        %v1464 = vadd.f32 %v1396, %v1432
        %v1465 = vadd.f32 %v1397, %v1433
        %v1466 = vadd.f32 %v1398, %v1434
        %v1467 = vadd.f32 %v1399, %v1435
        %v1468 = vadd.f32 %v1400, %v1436
        %v1469 = vlaneseq
        %v1470 = vshrl.u32 %v1469, 7
        %v1471 = vsub.s32 0, %v1470
        %v1472 = vrot.slane %v1060, %v1471
        %v1473 = vmul.f32 %v904, %v1472
        %v1474 = vmul.f32 %v905, %v1472
        %v1475 = vmul.f32 %v906, %v1472
        %v1476 = vmul.f32 %v907, %v1472
        %v1477 = vmul.f32 %v908, %v1472
        %v1478 = vmul.f32 %v909, %v1472
        %v1479 = vmul.f32 %v910, %v1472
        %v1480 = vmul.f32 %v911, %v1472
        %v1481 = vmul.f32 %v912, %v1472
        %v1482 = vmul.f32 %v913, %v1472
        %v1483 = vmul.f32 %v914, %v1472
        %v1484 = vmul.f32 %v915, %v1472
        %v1485 = vmul.f32 %v916, %v1472
        %v1486 = vmul.f32 %v917, %v1472
        %v1487 = vmul.f32 %v918, %v1472
        %v1488 = vmul.f32 %v919, %v1472
        %v1489 = vmul.f32 %v920, %v1472
        %v1490 = vmul.f32 %v921, %v1472
        %v1491 = vmul.f32 %v922, %v1472
        %v1492 = vmul.f32 %v923, %v1472
        %v1493 = vmul.f32 %v924, %v1472
        %v1494 = vmul.f32 %v925, %v1472
        %v1495 = vmul.f32 %v926, %v1472
        %v1496 = vmul.f32 %v927, %v1472
        %v1497 = vmul.f32 %v928, %v1472
        %v1498 = vmul.f32 %v929, %v1472
        %v1499 = vmul.f32 %v930, %v1472
        %v1500 = vmul.f32 %v931, %v1472
        %v1501 = vmul.f32 %v932, %v1472
        %v1502 = vmul.f32 %v933, %v1472
        %v1503 = vmul.f32 %v934, %v1472
        %v1504 = vmul.f32 %v935, %v1472
        %v1505 = vadd.f32 %v1437, %v1473
        %v1506 = vadd.f32 %v1438, %v1474
        %v1507 = vadd.f32 %v1439, %v1475
        %v1508 = vadd.f32 %v1440, %v1476
        %v1509 = vadd.f32 %v1441, %v1477
        %v1510 = vadd.f32 %v1442, %v1478
        %v1511 = vadd.f32 %v1443, %v1479
        %v1512 = vadd.f32 %v1444, %v1480
        %v1513 = vadd.f32 %v1445, %v1481
        %v1514 = vadd.f32 %v1446, %v1482
        %v1515 = vadd.f32 %v1447, %v1483
        %v1516 = vadd.f32 %v1448, %v1484
        %v1517 = vadd.f32 %v1449, %v1485
        %v1518 = vadd.f32 %v1450, %v1486
        %v1519 = vadd.f32 %v1451, %v1487
        %v1520 = vadd.f32 %v1452, %v1488
        %v1521 = vadd.f32 %v1453, %v1489
        %v1522 = vadd.f32 %v1454, %v1490
        %v1523 = vadd.f32 %v1455, %v1491
        %v1524 = vadd.f32 %v1456, %v1492
        %v1525 = vadd.f32 %v1457, %v1493
        %v1526 = vadd.f32 %v1458, %v1494
        %v1527 = vadd.f32 %v1459, %v1495
        %v1528 = vadd.f32 %v1460, %v1496
        %v1529 = vadd.f32 %v1461, %v1497
        %v1530 = vadd.f32 %v1462, %v1498
        %v1531 = vadd.f32 %v1463, %v1499
        %v1532 = vadd.f32 %v1464, %v1500
        %v1533 = vadd.f32 %v1465, %v1501
        %v1534 = vadd.f32 %v1466, %v1502
        %v1535 = vadd.f32 %v1467, %v1503
        %v1536 = vadd.f32 %v1468, %v1504
        %v1537 = vlaneseq
        %v1538 = vshrl.u32 %v1537, 7
        %v1539 = vsub.s32 1, %v1538
        %v1540 = vrot.slane %v1060, %v1539
        %v1541 = vmul.f32 %v944, %v1540
        %v1542 = vmul.f32 %v945, %v1540
        %v1543 = vmul.f32 %v946, %v1540
        %v1544 = vmul.f32 %v947, %v1540
        %v1545 = vmul.f32 %v948, %v1540
        %v1546 = vmul.f32 %v949, %v1540
        %v1547 = vmul.f32 %v950, %v1540
        %v1548 = vmul.f32 %v951, %v1540
        %v1549 = vmul.f32 %v952, %v1540
        %v1550 = vmul.f32 %v953, %v1540
        %v1551 = vmul.f32 %v954, %v1540
        %v1552 = vmul.f32 %v955, %v1540
        %v1553 = vmul.f32 %v956, %v1540
        %v1554 = vmul.f32 %v957, %v1540
        %v1555 = vmul.f32 %v958, %v1540
        %v1556 = vmul.f32 %v959, %v1540
        %v1557 = vmul.f32 %v960, %v1540
        %v1558 = vmul.f32 %v961, %v1540
        %v1559 = vmul.f32 %v962, %v1540
        %v1560 = vmul.f32 %v963, %v1540
        %v1561 = vmul.f32 %v964, %v1540
        %v1562 = vmul.f32 %v965, %v1540
        %v1563 = vmul.f32 %v966, %v1540
        %v1564 = vmul.f32 %v967, %v1540
        %v1565 = vmul.f32 %v968, %v1540
        %v1566 = vmul.f32 %v969, %v1540
        %v1567 = vmul.f32 %v970, %v1540
        %v1568 = vmul.f32 %v971, %v1540
        %v1569 = vmul.f32 %v972, %v1540
        %v1570 = vmul.f32 %v973, %v1540
        %v1571 = vmul.f32 %v974, %v1540
        %v1572 = vmul.f32 %v975, %v1540
        %v1573 = vadd.f32 %v1505, %v1541
        %v1574 = vadd.f32 %v1506, %v1542
        %v1575 = vadd.f32 %v1507, %v1543
        %v1576 = vadd.f32 %v1508, %v1544
        %v1577 = vadd.f32 %v1509, %v1545
        %v1578 = vadd.f32 %v1510, %v1546
        %v1579 = vadd.f32 %v1511, %v1547
        %v1580 = vadd.f32 %v1512, %v1548
        %v1581 = vadd.f32 %v1513, %v1549
        %v1582 = vadd.f32 %v1514, %v1550
        %v1583 = vadd.f32 %v1515, %v1551
        %v1584 = vadd.f32 %v1516, %v1552
        %v1585 = vadd.f32 %v1517, %v1553
        %v1586 = vadd.f32 %v1518, %v1554
        %v1587 = vadd.f32 %v1519, %v1555
        %v1588 = vadd.f32 %v1520, %v1556
        %v1589 = vadd.f32 %v1521, %v1557
        %v1590 = vadd.f32 %v1522, %v1558
        %v1591 = vadd.f32 %v1523, %v1559
        %v1592 = vadd.f32 %v1524, %v1560
        %v1593 = vadd.f32 %v1525, %v1561
        %v1594 = vadd.f32 %v1526, %v1562
        %v1595 = vadd.f32 %v1527, %v1563
        %v1596 = vadd.f32 %v1528, %v1564
        %v1597 = vadd.f32 %v1529, %v1565
        %v1598 = vadd.f32 %v1530, %v1566
        %v1599 = vadd.f32 %v1531, %v1567
        %v1600 = vadd.f32 %v1532, %v1568
        %v1601 = vadd.f32 %v1533, %v1569
        %v1602 = vadd.f32 %v1534, %v1570
        %v1603 = vadd.f32 %v1535, %v1571
        %v1604 = vadd.f32 %v1536, %v1572
        %v1605 = vlaneseq
        %v1606 = vshrl.u32 %v1605, 7
        %v1607 = vsub.s32 2, %v1606
        %v1608 = vrot.slane %v1060, %v1607
        %v1609 = vmul.f32 %v984, %v1608
        %v1610 = vmul.f32 %v985, %v1608
        %v1611 = vmul.f32 %v986, %v1608
        %v1612 = vmul.f32 %v987, %v1608
        %v1613 = vmul.f32 %v988, %v1608
        %v1614 = vmul.f32 %v989, %v1608
        %v1615 = vmul.f32 %v990, %v1608
        %v1616 = vmul.f32 %v991, %v1608
        %v1617 = vmul.f32 %v992, %v1608
        %v1618 = vmul.f32 %v993, %v1608
        %v1619 = vmul.f32 %v994, %v1608
        %v1620 = vmul.f32 %v995, %v1608
        %v1621 = vmul.f32 %v996, %v1608
        %v1622 = vmul.f32 %v997, %v1608
        %v1623 = vmul.f32 %v998, %v1608
        %v1624 = vmul.f32 %v999, %v1608
        %v1625 = vmul.f32 %v1000, %v1608
        %v1626 = vmul.f32 %v1001, %v1608
        %v1627 = vmul.f32 %v1002, %v1608
        %v1628 = vmul.f32 %v1003, %v1608
        %v1629 = vmul.f32 %v1004, %v1608
        %v1630 = vmul.f32 %v1005, %v1608
        %v1631 = vmul.f32 %v1006, %v1608
        %v1632 = vmul.f32 %v1007, %v1608
        %v1633 = vmul.f32 %v1008, %v1608
        %v1634 = vmul.f32 %v1009, %v1608
        %v1635 = vmul.f32 %v1010, %v1608
        %v1636 = vmul.f32 %v1011, %v1608
        %v1637 = vmul.f32 %v1012, %v1608
        %v1638 = vmul.f32 %v1013, %v1608
        %v1639 = vmul.f32 %v1014, %v1608
        %v1640 = vmul.f32 %v1015, %v1608
        %v1641 = vadd.f32 %v1573, %v1609
        %v1642 = vadd.f32 %v1574, %v1610
        %v1643 = vadd.f32 %v1575, %v1611
        %v1644 = vadd.f32 %v1576, %v1612
        %v1645 = vadd.f32 %v1577, %v1613
        %v1646 = vadd.f32 %v1578, %v1614
        %v1647 = vadd.f32 %v1579, %v1615
        %v1648 = vadd.f32 %v1580, %v1616
        %v1649 = vadd.f32 %v1581, %v1617
        %v1650 = vadd.f32 %v1582, %v1618
        %v1651 = vadd.f32 %v1583, %v1619
        %v1652 = vadd.f32 %v1584, %v1620
        %v1653 = vadd.f32 %v1585, %v1621
        %v1654 = vadd.f32 %v1586, %v1622
        %v1655 = vadd.f32 %v1587, %v1623
        %v1656 = vadd.f32 %v1588, %v1624
        %v1657 = vadd.f32 %v1589, %v1625
        %v1658 = vadd.f32 %v1590, %v1626
        %v1659 = vadd.f32 %v1591, %v1627
        %v1660 = vadd.f32 %v1592, %v1628
        %v1661 = vadd.f32 %v1593, %v1629
        %v1662 = vadd.f32 %v1594, %v1630
        %v1663 = vadd.f32 %v1595, %v1631
        %v1664 = vadd.f32 %v1596, %v1632
        %v1665 = vadd.f32 %v1597, %v1633
        %v1666 = vadd.f32 %v1598, %v1634
        %v1667 = vadd.f32 %v1599, %v1635
        %v1668 = vadd.f32 %v1600, %v1636
        %v1669 = vadd.f32 %v1601, %v1637
        %v1670 = vadd.f32 %v1602, %v1638
        %v1671 = vadd.f32 %v1603, %v1639
        %v1672 = vadd.f32 %v1604, %v1640
        %v1673 = vld [vmem:[#allocation3] sm:$0xff]
        %v1674 = vld [vmem:[#allocation3 + $0x8] sm:$0xff]
        %v1675 = vld [vmem:[#allocation3 + $0x10] sm:$0xff]
        %v1676 = vld [vmem:[#allocation3 + $0x18] sm:$0xff]
        %v1677 = vld [vmem:[#allocation3 + $0x20] sm:$0xff]
        %v1678 = vld [vmem:[#allocation3 + $0x28] sm:$0xff]
        %v1679 = vld [vmem:[#allocation3 + $0x30] sm:$0xff]
        %v1680 = vld [vmem:[#allocation3 + $0x38] sm:$0xff]
        %v1681 = vld [vmem:[#allocation3 + $0x40] sm:$0xff]
        %v1682 = vld [vmem:[#allocation3 + $0x48] sm:$0xff]
        %v1683 = vld [vmem:[#allocation3 + $0x50] sm:$0xff]
        %v1684 = vld [vmem:[#allocation3 + $0x58] sm:$0xff]
        %v1685 = vld [vmem:[#allocation3 + $0x60] sm:$0xff]
        %v1686 = vld [vmem:[#allocation3 + $0x68] sm:$0xff]
        %v1687 = vld [vmem:[#allocation3 + $0x70] sm:$0xff]
        %v1688 = vld [vmem:[#allocation3 + $0x78] sm:$0xff]
        %v1689 = vld [vmem:[#allocation3 + $0x80] sm:$0xff]
        %v1690 = vld [vmem:[#allocation3 + $0x88] sm:$0xff]
        %v1691 = vld [vmem:[#allocation3 + $0x90] sm:$0xff]
        %v1692 = vld [vmem:[#allocation3 + $0x98] sm:$0xff]
        %v1693 = vld [vmem:[#allocation3 + $0xa0] sm:$0xff]
        %v1694 = vld [vmem:[#allocation3 + $0xa8] sm:$0xff]
        %v1695 = vld [vmem:[#allocation3 + $0xb0] sm:$0xff]
        %v1696 = vld [vmem:[#allocation3 + $0xb8] sm:$0xff]
        %v1697 = vld [vmem:[#allocation3 + $0xc0] sm:$0xff]
        %v1698 = vld [vmem:[#allocation3 + $0xc8] sm:$0xff]
        %v1699 = vld [vmem:[#allocation3 + $0xd0] sm:$0xff]
        %v1700 = vld [vmem:[#allocation3 + $0xd8] sm:$0xff]
        %v1701 = vld [vmem:[#allocation3 + $0xe0] sm:$0xff]
        %v1702 = vld [vmem:[#allocation3 + $0xe8] sm:$0xff]
        %v1703 = vld [vmem:[#allocation3 + $0xf0] sm:$0xff]
        %v1704 = vld [vmem:[#allocation3 + $0xf8] sm:$0xff]
        %v1705 = vpack.c.bf16 %v1642, %v1641
        %v1706 = vpack.c.bf16 %v1644, %v1643
        %v1707 = vpack.c.bf16 %v1646, %v1645
        %v1708 = vpack.c.bf16 %v1648, %v1647
        %v1709 = vpack.c.bf16 %v1650, %v1649
        %v1710 = vpack.c.bf16 %v1652, %v1651
        %v1711 = vpack.c.bf16 %v1654, %v1653
        %v1712 = vpack.c.bf16 %v1656, %v1655
        %v1713 = vpack.c.bf16 %v1658, %v1657
        %v1714 = vpack.c.bf16 %v1660, %v1659
        %v1715 = vpack.c.bf16 %v1662, %v1661
        %v1716 = vpack.c.bf16 %v1664, %v1663
        %v1717 = vpack.c.bf16 %v1666, %v1665
        %v1718 = vpack.c.bf16 %v1668, %v1667
        %v1719 = vpack.c.bf16 %v1670, %v1669
        %v1720 = vpack.c.bf16 %v1672, %v1671
        %s1721 = scalar_lea.vmem [#allocation9], 64
        %v1722 = vld [vmem:[%s1721] sm:$0xf]
        %v1723 = vld [vmem:[%s1721 + $0x4] sm:$0xf]
        %v1724 = vld [vmem:[%s1721 + $0x8] sm:$0xf]
        %v1725 = vld [vmem:[%s1721 + $0xc] sm:$0xf]
        %v1726 = vld [vmem:[%s1721 + $0x10] sm:$0xf]
        %v1727 = vld [vmem:[%s1721 + $0x14] sm:$0xf]
        %v1728 = vld [vmem:[%s1721 + $0x18] sm:$0xf]
        %v1729 = vld [vmem:[%s1721 + $0x1c] sm:$0xf]
        %v1730 = vld [vmem:[%s1721 + $0x20] sm:$0xf]
        %v1731 = vld [vmem:[%s1721 + $0x24] sm:$0xf]
        %v1732 = vld [vmem:[%s1721 + $0x28] sm:$0xf]
        %v1733 = vld [vmem:[%s1721 + $0x2c] sm:$0xf]
        %v1734 = vld [vmem:[%s1721 + $0x30] sm:$0xf]
        %v1735 = vld [vmem:[%s1721 + $0x34] sm:$0xf]
        %v1736 = vld [vmem:[%s1721 + $0x38] sm:$0xf]
        %v1737 = vld [vmem:[%s1721 + $0x3c] sm:$0xf]
        %v1754 = vunpack.c.l.b16 %v1722
        %v1755 = vunpack.c.l.b16 %v1723
        %v1756 = vunpack.c.l.b16 %v1724
        %v1757 = vunpack.c.l.b16 %v1725
        %v1758 = vunpack.c.l.b16 %v1726
        %v1759 = vunpack.c.l.b16 %v1727
        %v1760 = vunpack.c.l.b16 %v1728
        %v1761 = vunpack.c.l.b16 %v1729
        %v1762 = vunpack.c.l.b16 %v1730
        %v1763 = vunpack.c.l.b16 %v1731
        %v1764 = vunpack.c.l.b16 %v1732
        %v1765 = vunpack.c.l.b16 %v1733
        %v1766 = vunpack.c.l.b16 %v1734
        %v1767 = vunpack.c.l.b16 %v1735
        %v1768 = vunpack.c.l.b16 %v1736
        %v1769 = vunpack.c.l.b16 %v1737
        %v1770 = vpack.c.b16 %v1755, %v1754
        %v1771 = vpack.c.b16 %v1757, %v1756
        %v1772 = vpack.c.b16 %v1759, %v1758
        %v1773 = vpack.c.b16 %v1761, %v1760
        %v1774 = vpack.c.b16 %v1763, %v1762
        %v1775 = vpack.c.b16 %v1765, %v1764
        %v1776 = vpack.c.b16 %v1767, %v1766
        %v1777 = vpack.c.b16 %v1769, %v1768
        %1786 = vmatprep.subr.bf16.mxu0 0
        %1787 = vmatpush1.bf16.msra.mxu0 %v1770
        %1788 = vmatprep.subr.bf16.mxu0 0
        %1789 = vmatpush1.bf16.msra.mxu0 %v1771
        %1790 = vmatprep.subr.bf16.mxu0 0
        %1791 = vmatpush1.bf16.msra.mxu0 %v1772
        %1792 = vmatprep.subr.bf16.mxu0 0
        %1793 = vmatpush1.bf16.msra.mxu0 %v1773
        %1794 = vmatprep.subr.bf16.mxu0 0
        %1795 = vmatpush1.bf16.msra.mxu0 %v1774
        %1796 = vmatprep.subr.bf16.mxu0 0
        %1797 = vmatpush1.bf16.msra.mxu0 %v1775
        %1798 = vmatprep.subr.bf16.mxu0 0
        %1799 = vmatpush1.bf16.msra.mxu0 %v1776
        %1800 = vmatprep.subr.bf16.mxu0 0
        %1801 = vmatpush1.bf16.msra.mxu0 %v1777
        %1802 = vmatprep.subr.bf16.mxu0 0
        %1803 = vmatpush1.bf16.msra.mxu0 0
        %1804 = vmatprep.subr.bf16.mxu0 0
        %1805 = vmatpush1.bf16.msra.mxu0 0
        %1806 = vmatprep.subr.bf16.mxu0 0
        %1807 = vmatpush1.bf16.msra.mxu0 0
        %1808 = vmatprep.subr.bf16.mxu0 0
        %1809 = vmatpush1.bf16.msra.mxu0 0
        %1810 = vmatprep.subr.bf16.mxu0 0
        %1811 = vmatpush1.bf16.msra.mxu0 0
        %1812 = vmatprep.subr.bf16.mxu0 0
        %1813 = vmatpush1.bf16.msra.mxu0 0
        %1814 = vmatprep.subr.bf16.mxu0 0
        %1815 = vmatpush1.bf16.msra.mxu0 0
        %1816 = vmatprep.subr.bf16.mxu0 0
        %1817 = vmatpush1.bf16.msra.mxu0 0
        %1818 = vmatprep.mubr.bf16.mxu0 0
        %1819 = vmatmul.mubr.bf16.gmra.mrb[0].mxu0 %v1705
        %v1820 = vpop.f32.mrb[0].mxu0
        %v1821 = vadd.f32 0.0, %v1820
        %v1822 = vpop.f32.mrb[0].mxu0
        %v1823 = vpop.f32.mrb[0].mxu0
        %v1824 = vadd.f32 0.0, %v1823
        %v1825 = vpop.f32.mrb[0].mxu0
        %1826 = vmatprep.mubr.bf16.mxu0 0
        %1827 = vmatmul.mubr.bf16.gmra.mrb[0].mxu0 %v1706
        %v1828 = vpop.f32.mrb[0].mxu0
        %v1829 = vadd.f32 0.0, %v1828
        %v1830 = vpop.f32.mrb[0].mxu0
        %v1831 = vpop.f32.mrb[0].mxu0
        %v1832 = vadd.f32 0.0, %v1831
        %v1833 = vpop.f32.mrb[0].mxu0
        %1834 = vmatprep.mubr.bf16.mxu0 0
        %1835 = vmatmul.mubr.bf16.gmra.mrb[0].mxu0 %v1707
        %v1836 = vpop.f32.mrb[0].mxu0
        %v1837 = vadd.f32 0.0, %v1836
        %v1838 = vpop.f32.mrb[0].mxu0
        %v1839 = vpop.f32.mrb[0].mxu0
        %v1840 = vadd.f32 0.0, %v1839
        %v1841 = vpop.f32.mrb[0].mxu0
        %1842 = vmatprep.mubr.bf16.mxu0 0
        %1843 = vmatmul.mubr.bf16.gmra.mrb[0].mxu0 %v1708
        %v1844 = vpop.f32.mrb[0].mxu0
        %v1845 = vadd.f32 0.0, %v1844
        %v1846 = vpop.f32.mrb[0].mxu0
        %v1847 = vpop.f32.mrb[0].mxu0
        %v1848 = vadd.f32 0.0, %v1847
        %v1849 = vpop.f32.mrb[0].mxu0
        %1850 = vmatprep.mubr.bf16.mxu0 0
        %1851 = vmatmul.mubr.bf16.gmra.mrb[0].mxu0 %v1709
        %v1852 = vpop.f32.mrb[0].mxu0
        %v1853 = vadd.f32 0.0, %v1852
        %v1854 = vpop.f32.mrb[0].mxu0
        %v1855 = vpop.f32.mrb[0].mxu0
        %v1856 = vadd.f32 0.0, %v1855
        %v1857 = vpop.f32.mrb[0].mxu0
        %1858 = vmatprep.mubr.bf16.mxu0 0
        %1859 = vmatmul.mubr.bf16.gmra.mrb[0].mxu0 %v1710
        %v1860 = vpop.f32.mrb[0].mxu0
        %v1861 = vadd.f32 0.0, %v1860
        %v1862 = vpop.f32.mrb[0].mxu0
        %v1863 = vpop.f32.mrb[0].mxu0
        %v1864 = vadd.f32 0.0, %v1863
        %v1865 = vpop.f32.mrb[0].mxu0
        %1866 = vmatprep.mubr.bf16.mxu0 0
        %1867 = vmatmul.mubr.bf16.gmra.mrb[0].mxu0 %v1711
        %v1868 = vpop.f32.mrb[0].mxu0
        %v1869 = vadd.f32 0.0, %v1868
        %v1870 = vpop.f32.mrb[0].mxu0
        %v1871 = vpop.f32.mrb[0].mxu0
        %v1872 = vadd.f32 0.0, %v1871
        %v1873 = vpop.f32.mrb[0].mxu0
        %1874 = vmatprep.mubr.bf16.mxu0 0
        %1875 = vmatmul.mubr.bf16.gmra.mrb[0].mxu0 %v1712
        %v1876 = vpop.f32.mrb[0].mxu0
        %v1877 = vadd.f32 0.0, %v1876
        %v1878 = vpop.f32.mrb[0].mxu0
        %v1879 = vpop.f32.mrb[0].mxu0
        %v1880 = vadd.f32 0.0, %v1879
        %v1881 = vpop.f32.mrb[0].mxu0
        %1882 = vmatprep.mubr.bf16.mxu0 0
        %1883 = vmatmul.mubr.bf16.gmra.mrb[0].mxu0 %v1713
        %v1884 = vpop.f32.mrb[0].mxu0
        %v1885 = vadd.f32 0.0, %v1884
        %v1886 = vpop.f32.mrb[0].mxu0
        %v1887 = vpop.f32.mrb[0].mxu0
        %v1888 = vadd.f32 0.0, %v1887
        %v1889 = vpop.f32.mrb[0].mxu0
        %1890 = vmatprep.mubr.bf16.mxu0 0
        %1891 = vmatmul.mubr.bf16.gmra.mrb[0].mxu0 %v1714
        %v1892 = vpop.f32.mrb[0].mxu0
        %v1893 = vadd.f32 0.0, %v1892
        %v1894 = vpop.f32.mrb[0].mxu0
        %v1895 = vpop.f32.mrb[0].mxu0
        %v1896 = vadd.f32 0.0, %v1895
        %v1897 = vpop.f32.mrb[0].mxu0
        %1898 = vmatprep.mubr.bf16.mxu0 0
        %1899 = vmatmul.mubr.bf16.gmra.mrb[0].mxu0 %v1715
        %v1900 = vpop.f32.mrb[0].mxu0
        %v1901 = vadd.f32 0.0, %v1900
        %v1902 = vpop.f32.mrb[0].mxu0
        %v1903 = vpop.f32.mrb[0].mxu0
        %v1904 = vadd.f32 0.0, %v1903
        %v1905 = vpop.f32.mrb[0].mxu0
        %1906 = vmatprep.mubr.bf16.mxu0 0
        %1907 = vmatmul.mubr.bf16.gmra.mrb[0].mxu0 %v1716
        %v1908 = vpop.f32.mrb[0].mxu0
        %v1909 = vadd.f32 0.0, %v1908
        %v1910 = vpop.f32.mrb[0].mxu0
        %v1911 = vpop.f32.mrb[0].mxu0
        %v1912 = vadd.f32 0.0, %v1911
        %v1913 = vpop.f32.mrb[0].mxu0
        %1914 = vmatprep.mubr.bf16.mxu0 0
        %1915 = vmatmul.mubr.bf16.gmra.mrb[0].mxu0 %v1717
        %v1916 = vpop.f32.mrb[0].mxu0
        %v1917 = vadd.f32 0.0, %v1916
        %v1918 = vpop.f32.mrb[0].mxu0
        %v1919 = vpop.f32.mrb[0].mxu0
        %v1920 = vadd.f32 0.0, %v1919
        %v1921 = vpop.f32.mrb[0].mxu0
        %1922 = vmatprep.mubr.bf16.mxu0 0
        %1923 = vmatmul.mubr.bf16.gmra.mrb[0].mxu0 %v1718
        %v1924 = vpop.f32.mrb[0].mxu0
        %v1925 = vadd.f32 0.0, %v1924
        %v1926 = vpop.f32.mrb[0].mxu0
        %v1927 = vpop.f32.mrb[0].mxu0
        %v1928 = vadd.f32 0.0, %v1927
        %v1929 = vpop.f32.mrb[0].mxu0
        %1930 = vmatprep.mubr.bf16.mxu0 0
        %1931 = vmatmul.mubr.bf16.gmra.mrb[0].mxu0 %v1719
        %v1932 = vpop.f32.mrb[0].mxu0
        %v1933 = vadd.f32 0.0, %v1932
        %v1934 = vpop.f32.mrb[0].mxu0
        %v1935 = vpop.f32.mrb[0].mxu0
        %v1936 = vadd.f32 0.0, %v1935
        %v1937 = vpop.f32.mrb[0].mxu0
        %1938 = vmatprep.mubr.bf16.mxu0 0
        %1939 = vmatmul.mubr.bf16.gmra.mrb[0].mxu0 %v1720
        %v1940 = vpop.f32.mrb[0].mxu0
        %v1941 = vadd.f32 0.0, %v1940
        %v1942 = vpop.f32.mrb[0].mxu0
        %v1943 = vpop.f32.mrb[0].mxu0
        %v1944 = vadd.f32 0.0, %v1943
        %v1945 = vpop.f32.mrb[0].mxu0
        %1946 = vdwg.mxu0
        %v1947 = vadd.f32 %v1673, %v1821
        %v1948 = vadd.f32 %v1674, %v1824
        %v1949 = vadd.f32 %v1675, %v1829
        %v1950 = vadd.f32 %v1676, %v1832
        %v1951 = vadd.f32 %v1677, %v1837
        %v1952 = vadd.f32 %v1678, %v1840
        %v1953 = vadd.f32 %v1679, %v1845
        %v1954 = vadd.f32 %v1680, %v1848
        %v1955 = vadd.f32 %v1681, %v1853
        %v1956 = vadd.f32 %v1682, %v1856
        %v1957 = vadd.f32 %v1683, %v1861
        %v1958 = vadd.f32 %v1684, %v1864
        %v1959 = vadd.f32 %v1685, %v1869
        %v1960 = vadd.f32 %v1686, %v1872
        %v1961 = vadd.f32 %v1687, %v1877
        %v1962 = vadd.f32 %v1688, %v1880
        %v1963 = vadd.f32 %v1689, %v1885
        %v1964 = vadd.f32 %v1690, %v1888
        %v1965 = vadd.f32 %v1691, %v1893
        %v1966 = vadd.f32 %v1692, %v1896
        %v1967 = vadd.f32 %v1693, %v1901
        %v1968 = vadd.f32 %v1694, %v1904
        %v1969 = vadd.f32 %v1695, %v1909
        %v1970 = vadd.f32 %v1696, %v1912
        %v1971 = vadd.f32 %v1697, %v1917
        %v1972 = vadd.f32 %v1698, %v1920
        %v1973 = vadd.f32 %v1699, %v1925
        %v1974 = vadd.f32 %v1700, %v1928
        %v1975 = vadd.f32 %v1701, %v1933
        %v1976 = vadd.f32 %v1702, %v1936
        %v1977 = vadd.f32 %v1703, %v1941
        %v1978 = vadd.f32 %v1704, %v1944
        %1979 = vst [vmem:[#allocation3] sm:$0xff] %v1947
        %1980 = vst [vmem:[#allocation3 + $0x8] sm:$0xff] %v1948
        %1981 = vst [vmem:[#allocation3 + $0x10] sm:$0xff] %v1949
        %1982 = vst [vmem:[#allocation3 + $0x18] sm:$0xff] %v1950
        %1983 = vst [vmem:[#allocation3 + $0x20] sm:$0xff] %v1951
        %1984 = vst [vmem:[#allocation3 + $0x28] sm:$0xff] %v1952
        %1985 = vst [vmem:[#allocation3 + $0x30] sm:$0xff] %v1953
        %1986 = vst [vmem:[#allocation3 + $0x38] sm:$0xff] %v1954
        %1987 = vst [vmem:[#allocation3 + $0x40] sm:$0xff] %v1955
        %1988 = vst [vmem:[#allocation3 + $0x48] sm:$0xff] %v1956
        %1989 = vst [vmem:[#allocation3 + $0x50] sm:$0xff] %v1957
        %1990 = vst [vmem:[#allocation3 + $0x58] sm:$0xff] %v1958
        %1991 = vst [vmem:[#allocation3 + $0x60] sm:$0xff] %v1959
        %1992 = vst [vmem:[#allocation3 + $0x68] sm:$0xff] %v1960
        %1993 = vst [vmem:[#allocation3 + $0x70] sm:$0xff] %v1961
        %1994 = vst [vmem:[#allocation3 + $0x78] sm:$0xff] %v1962
        %1995 = vst [vmem:[#allocation3 + $0x80] sm:$0xff] %v1963
        %1996 = vst [vmem:[#allocation3 + $0x88] sm:$0xff] %v1964
        %1997 = vst [vmem:[#allocation3 + $0x90] sm:$0xff] %v1965
        %1998 = vst [vmem:[#allocation3 + $0x98] sm:$0xff] %v1966
        %1999 = vst [vmem:[#allocation3 + $0xa0] sm:$0xff] %v1967
        %2000 = vst [vmem:[#allocation3 + $0xa8] sm:$0xff] %v1968
        %2001 = vst [vmem:[#allocation3 + $0xb0] sm:$0xff] %v1969
        %2002 = vst [vmem:[#allocation3 + $0xb8] sm:$0xff] %v1970
        %2003 = vst [vmem:[#allocation3 + $0xc0] sm:$0xff] %v1971
        %2004 = vst [vmem:[#allocation3 + $0xc8] sm:$0xff] %v1972
        %2005 = vst [vmem:[#allocation3 + $0xd0] sm:$0xff] %v1973
        %2006 = vst [vmem:[#allocation3 + $0xd8] sm:$0xff] %v1974
        %2007 = vst [vmem:[#allocation3 + $0xe0] sm:$0xff] %v1975
        %2008 = vst [vmem:[#allocation3 + $0xe8] sm:$0xff] %v1976
        %2009 = vst [vmem:[#allocation3 + $0xf0] sm:$0xff] %v1977
        %2010 = vst [vmem:[#allocation3 + $0xf8] sm:$0xff] %v1978
        %v2011 = vld [vmem:[#allocation7] sm:$0x1f]
        %v2012 = vld [vmem:[#allocation7 + $0x8] sm:$0x1f]
        %v2013 = vld [vmem:[#allocation7 + $0x10] sm:$0x1f]
        %v2014 = vld [vmem:[#allocation7 + $0x18] sm:$0x1f]
        %v2015 = vld [vmem:[#allocation7 + $0x20] sm:$0x1f]
        %v2016 = vlaneseq
        %v2017 = vshrl.u32 %v2016, 7
        %v2018 = vsub.s32 0, %v2017
        %v2019 = vrot.slane %v2011, %v2018
        %v2020 = vmul.f32 %v858, %v2019
        %v2021 = vmul.f32 %v859, %v2019
        %v2022 = vmul.f32 %v860, %v2019
        %v2023 = vmul.f32 %v861, %v2019
        %v2024 = vmul.f32 %v862, %v2019
        %v2025 = vmul.f32 %v863, %v2019
        %v2026 = vmul.f32 %v864, %v2019
        %v2027 = vmul.f32 %v865, %v2019
        %v2028 = vmul.f32 %v866, %v2019
        %v2029 = vmul.f32 %v867, %v2019
        %v2030 = vmul.f32 %v868, %v2019
        %v2031 = vmul.f32 %v869, %v2019
        %v2032 = vmul.f32 %v870, %v2019
        %v2033 = vmul.f32 %v871, %v2019
        %v2034 = vmul.f32 %v872, %v2019
        %v2035 = vmul.f32 %v873, %v2019
        %v2036 = vmul.f32 %v874, %v2019
        %v2037 = vmul.f32 %v875, %v2019
        %v2038 = vmul.f32 %v876, %v2019
        %v2039 = vmul.f32 %v877, %v2019
        %v2040 = vmul.f32 %v878, %v2019
        %v2041 = vmul.f32 %v879, %v2019
        %v2042 = vmul.f32 %v880, %v2019
        %v2043 = vmul.f32 %v881, %v2019
        %v2044 = vmul.f32 %v882, %v2019
        %v2045 = vmul.f32 %v883, %v2019
        %v2046 = vmul.f32 %v884, %v2019
        %v2047 = vmul.f32 %v885, %v2019
        %v2048 = vmul.f32 %v886, %v2019
        %v2049 = vmul.f32 %v887, %v2019
        %v2050 = vmul.f32 %v888, %v2019
        %v2051 = vmul.f32 %v889, %v2019
        %v2052 = vadd.f32 %v2020, 0.0
        %v2053 = vadd.f32 %v2021, 0.0
        %v2054 = vadd.f32 %v2022, 0.0
        %v2055 = vadd.f32 %v2023, 0.0
        %v2056 = vadd.f32 %v2024, 0.0
        %v2057 = vadd.f32 %v2025, 0.0
        %v2058 = vadd.f32 %v2026, 0.0
        %v2059 = vadd.f32 %v2027, 0.0
        %v2060 = vadd.f32 %v2028, 0.0
        %v2061 = vadd.f32 %v2029, 0.0
        %v2062 = vadd.f32 %v2030, 0.0
        %v2063 = vadd.f32 %v2031, 0.0
        %v2064 = vadd.f32 %v2032, 0.0
        %v2065 = vadd.f32 %v2033, 0.0
        %v2066 = vadd.f32 %v2034, 0.0
        %v2067 = vadd.f32 %v2035, 0.0
        %v2068 = vadd.f32 %v2036, 0.0
        %v2069 = vadd.f32 %v2037, 0.0
        %v2070 = vadd.f32 %v2038, 0.0
        %v2071 = vadd.f32 %v2039, 0.0
        %v2072 = vadd.f32 %v2040, 0.0
        %v2073 = vadd.f32 %v2041, 0.0
        %v2074 = vadd.f32 %v2042, 0.0
        %v2075 = vadd.f32 %v2043, 0.0
        %v2076 = vadd.f32 %v2044, 0.0
        %v2077 = vadd.f32 %v2045, 0.0
        %v2078 = vadd.f32 %v2046, 0.0
        %v2079 = vadd.f32 %v2047, 0.0
        %v2080 = vadd.f32 %v2048, 0.0
        %v2081 = vadd.f32 %v2049, 0.0
        %v2082 = vadd.f32 %v2050, 0.0
        %v2083 = vadd.f32 %v2051, 0.0
        %v2084 = vlaneseq
        %v2085 = vshrl.u32 %v2084, 7
        %v2086 = vsub.s32 1, %v2085
        %v2087 = vrot.slane %v2011, %v2086
        %v2088 = vmul.f32 %v898, %v2087
        %v2089 = vmul.f32 %v899, %v2087
        %v2090 = vmul.f32 %v900, %v2087
        %v2091 = vmul.f32 %v901, %v2087
        %v2092 = vmul.f32 %v902, %v2087
        %v2093 = vmul.f32 %v903, %v2087
        %v2094 = vmul.f32 %v904, %v2087
        %v2095 = vmul.f32 %v905, %v2087
        %v2096 = vmul.f32 %v906, %v2087
        %v2097 = vmul.f32 %v907, %v2087
        %v2098 = vmul.f32 %v908, %v2087
        %v2099 = vmul.f32 %v909, %v2087
        %v2100 = vmul.f32 %v910, %v2087
        %v2101 = vmul.f32 %v911, %v2087
        %v2102 = vmul.f32 %v912, %v2087
        %v2103 = vmul.f32 %v913, %v2087
        %v2104 = vmul.f32 %v914, %v2087
        %v2105 = vmul.f32 %v915, %v2087
        %v2106 = vmul.f32 %v916, %v2087
        %v2107 = vmul.f32 %v917, %v2087
        %v2108 = vmul.f32 %v918, %v2087
        %v2109 = vmul.f32 %v919, %v2087
        %v2110 = vmul.f32 %v920, %v2087
        %v2111 = vmul.f32 %v921, %v2087
        %v2112 = vmul.f32 %v922, %v2087
        %v2113 = vmul.f32 %v923, %v2087
        %v2114 = vmul.f32 %v924, %v2087
        %v2115 = vmul.f32 %v925, %v2087
        %v2116 = vmul.f32 %v926, %v2087
        %v2117 = vmul.f32 %v927, %v2087
        %v2118 = vmul.f32 %v928, %v2087
        %v2119 = vmul.f32 %v929, %v2087
        %v2120 = vadd.f32 %v2052, %v2088
        %v2121 = vadd.f32 %v2053, %v2089
        %v2122 = vadd.f32 %v2054, %v2090
        %v2123 = vadd.f32 %v2055, %v2091
        %v2124 = vadd.f32 %v2056, %v2092
        %v2125 = vadd.f32 %v2057, %v2093
        %v2126 = vadd.f32 %v2058, %v2094
        %v2127 = vadd.f32 %v2059, %v2095
        %v2128 = vadd.f32 %v2060, %v2096
        %v2129 = vadd.f32 %v2061, %v2097
        %v2130 = vadd.f32 %v2062, %v2098
        %v2131 = vadd.f32 %v2063, %v2099
        %v2132 = vadd.f32 %v2064, %v2100
        %v2133 = vadd.f32 %v2065, %v2101
        %v2134 = vadd.f32 %v2066, %v2102
        %v2135 = vadd.f32 %v2067, %v2103
        %v2136 = vadd.f32 %v2068, %v2104
        %v2137 = vadd.f32 %v2069, %v2105
        %v2138 = vadd.f32 %v2070, %v2106
        %v2139 = vadd.f32 %v2071, %v2107
        %v2140 = vadd.f32 %v2072, %v2108
        %v2141 = vadd.f32 %v2073, %v2109
        %v2142 = vadd.f32 %v2074, %v2110
        %v2143 = vadd.f32 %v2075, %v2111
        %v2144 = vadd.f32 %v2076, %v2112
        %v2145 = vadd.f32 %v2077, %v2113
        %v2146 = vadd.f32 %v2078, %v2114
        %v2147 = vadd.f32 %v2079, %v2115
        %v2148 = vadd.f32 %v2080, %v2116
        %v2149 = vadd.f32 %v2081, %v2117
        %v2150 = vadd.f32 %v2082, %v2118
        %v2151 = vadd.f32 %v2083, %v2119
        %v2152 = vlaneseq
        %v2153 = vshrl.u32 %v2152, 7
        %v2154 = vsub.s32 2, %v2153
        %v2155 = vrot.slane %v2011, %v2154
        %v2156 = vmul.f32 %v938, %v2155
        %v2157 = vmul.f32 %v939, %v2155
        %v2158 = vmul.f32 %v940, %v2155
        %v2159 = vmul.f32 %v941, %v2155
        %v2160 = vmul.f32 %v942, %v2155
        %v2161 = vmul.f32 %v943, %v2155
        %v2162 = vmul.f32 %v944, %v2155
        %v2163 = vmul.f32 %v945, %v2155
        %v2164 = vmul.f32 %v946, %v2155
        %v2165 = vmul.f32 %v947, %v2155
        %v2166 = vmul.f32 %v948, %v2155
        %v2167 = vmul.f32 %v949, %v2155
        %v2168 = vmul.f32 %v950, %v2155
        %v2169 = vmul.f32 %v951, %v2155
        %v2170 = vmul.f32 %v952, %v2155
        %v2171 = vmul.f32 %v953, %v2155
        %v2172 = vmul.f32 %v954, %v2155
        %v2173 = vmul.f32 %v955, %v2155
        %v2174 = vmul.f32 %v956, %v2155
        %v2175 = vmul.f32 %v957, %v2155
        %v2176 = vmul.f32 %v958, %v2155
        %v2177 = vmul.f32 %v959, %v2155
        %v2178 = vmul.f32 %v960, %v2155
        %v2179 = vmul.f32 %v961, %v2155
        %v2180 = vmul.f32 %v962, %v2155
        %v2181 = vmul.f32 %v963, %v2155
        %v2182 = vmul.f32 %v964, %v2155
        %v2183 = vmul.f32 %v965, %v2155
        %v2184 = vmul.f32 %v966, %v2155
        %v2185 = vmul.f32 %v967, %v2155
        %v2186 = vmul.f32 %v968, %v2155
        %v2187 = vmul.f32 %v969, %v2155
        %v2188 = vadd.f32 %v2120, %v2156
        %v2189 = vadd.f32 %v2121, %v2157
        %v2190 = vadd.f32 %v2122, %v2158
        %v2191 = vadd.f32 %v2123, %v2159
        %v2192 = vadd.f32 %v2124, %v2160
        %v2193 = vadd.f32 %v2125, %v2161
        %v2194 = vadd.f32 %v2126, %v2162
        %v2195 = vadd.f32 %v2127, %v2163
        %v2196 = vadd.f32 %v2128, %v2164
        %v2197 = vadd.f32 %v2129, %v2165
        %v2198 = vadd.f32 %v2130, %v2166
        %v2199 = vadd.f32 %v2131, %v2167
        %v2200 = vadd.f32 %v2132, %v2168
        %v2201 = vadd.f32 %v2133, %v2169
        %v2202 = vadd.f32 %v2134, %v2170
        %v2203 = vadd.f32 %v2135, %v2171
        %v2204 = vadd.f32 %v2136, %v2172
        %v2205 = vadd.f32 %v2137, %v2173
        %v2206 = vadd.f32 %v2138, %v2174
        %v2207 = vadd.f32 %v2139, %v2175
        %v2208 = vadd.f32 %v2140, %v2176
        %v2209 = vadd.f32 %v2141, %v2177
        %v2210 = vadd.f32 %v2142, %v2178
        %v2211 = vadd.f32 %v2143, %v2179
        %v2212 = vadd.f32 %v2144, %v2180
        %v2213 = vadd.f32 %v2145, %v2181
        %v2214 = vadd.f32 %v2146, %v2182
        %v2215 = vadd.f32 %v2147, %v2183
        %v2216 = vadd.f32 %v2148, %v2184
        %v2217 = vadd.f32 %v2149, %v2185
        %v2218 = vadd.f32 %v2150, %v2186
        %v2219 = vadd.f32 %v2151, %v2187
        %v2220 = vlaneseq
        %v2221 = vshrl.u32 %v2220, 7
        %v2222 = vsub.s32 3, %v2221
        %v2223 = vrot.slane %v2011, %v2222
        %v2224 = vmul.f32 %v978, %v2223
        %v2225 = vmul.f32 %v979, %v2223
        %v2226 = vmul.f32 %v980, %v2223
        %v2227 = vmul.f32 %v981, %v2223
        %v2228 = vmul.f32 %v982, %v2223
        %v2229 = vmul.f32 %v983, %v2223
        %v2230 = vmul.f32 %v984, %v2223
        %v2231 = vmul.f32 %v985, %v2223
        %v2232 = vmul.f32 %v986, %v2223
        %v2233 = vmul.f32 %v987, %v2223
        %v2234 = vmul.f32 %v988, %v2223
        %v2235 = vmul.f32 %v989, %v2223
        %v2236 = vmul.f32 %v990, %v2223
        %v2237 = vmul.f32 %v991, %v2223
        %v2238 = vmul.f32 %v992, %v2223
        %v2239 = vmul.f32 %v993, %v2223
        %v2240 = vmul.f32 %v994, %v2223
        %v2241 = vmul.f32 %v995, %v2223
        %v2242 = vmul.f32 %v996, %v2223
        %v2243 = vmul.f32 %v997, %v2223
        %v2244 = vmul.f32 %v998, %v2223
        %v2245 = vmul.f32 %v999, %v2223
        %v2246 = vmul.f32 %v1000, %v2223
        %v2247 = vmul.f32 %v1001, %v2223
        %v2248 = vmul.f32 %v1002, %v2223
        %v2249 = vmul.f32 %v1003, %v2223
        %v2250 = vmul.f32 %v1004, %v2223
        %v2251 = vmul.f32 %v1005, %v2223
        %v2252 = vmul.f32 %v1006, %v2223
        %v2253 = vmul.f32 %v1007, %v2223
        %v2254 = vmul.f32 %v1008, %v2223
        %v2255 = vmul.f32 %v1009, %v2223
        %v2256 = vadd.f32 %v2188, %v2224
        %v2257 = vadd.f32 %v2189, %v2225
        %v2258 = vadd.f32 %v2190, %v2226
        %v2259 = vadd.f32 %v2191, %v2227
        %v2260 = vadd.f32 %v2192, %v2228
        %v2261 = vadd.f32 %v2193, %v2229
        %v2262 = vadd.f32 %v2194, %v2230
        %v2263 = vadd.f32 %v2195, %v2231
        %v2264 = vadd.f32 %v2196, %v2232
        %v2265 = vadd.f32 %v2197, %v2233
        %v2266 = vadd.f32 %v2198, %v2234
        %v2267 = vadd.f32 %v2199, %v2235
        %v2268 = vadd.f32 %v2200, %v2236
        %v2269 = vadd.f32 %v2201, %v2237
        %v2270 = vadd.f32 %v2202, %v2238
        %v2271 = vadd.f32 %v2203, %v2239
        %v2272 = vadd.f32 %v2204, %v2240
        %v2273 = vadd.f32 %v2205, %v2241
        %v2274 = vadd.f32 %v2206, %v2242
        %v2275 = vadd.f32 %v2207, %v2243
        %v2276 = vadd.f32 %v2208, %v2244
        %v2277 = vadd.f32 %v2209, %v2245
        %v2278 = vadd.f32 %v2210, %v2246
        %v2279 = vadd.f32 %v2211, %v2247
        %v2280 = vadd.f32 %v2212, %v2248
        %v2281 = vadd.f32 %v2213, %v2249
        %v2282 = vadd.f32 %v2214, %v2250
        %v2283 = vadd.f32 %v2215, %v2251
        %v2284 = vadd.f32 %v2216, %v2252
        %v2285 = vadd.f32 %v2217, %v2253
        %v2286 = vadd.f32 %v2218, %v2254
        %v2287 = vadd.f32 %v2219, %v2255
        %v2288 = vlaneseq
        %v2289 = vshrl.u32 %v2288, 7
        %v2290 = vsub.s32 4, %v2289
        %v2291 = vrot.slane %v2011, %v2290
        %v2292 = vmul.f32 %v1018, %v2291
        %v2293 = vmul.f32 %v1019, %v2291
        %v2294 = vmul.f32 %v1020, %v2291
        %v2295 = vmul.f32 %v1021, %v2291
        %v2296 = vmul.f32 %v1022, %v2291
        %v2297 = vmul.f32 %v1023, %v2291
        %v2298 = vmul.f32 %v1024, %v2291
        %v2299 = vmul.f32 %v1025, %v2291
        %v2300 = vmul.f32 %v1026, %v2291
        %v2301 = vmul.f32 %v1027, %v2291
        %v2302 = vmul.f32 %v1028, %v2291
        %v2303 = vmul.f32 %v1029, %v2291
        %v2304 = vmul.f32 %v1030, %v2291
        %v2305 = vmul.f32 %v1031, %v2291
        %v2306 = vmul.f32 %v1032, %v2291
        %v2307 = vmul.f32 %v1033, %v2291
        %v2308 = vmul.f32 %v1034, %v2291
        %v2309 = vmul.f32 %v1035, %v2291
        %v2310 = vmul.f32 %v1036, %v2291
        %v2311 = vmul.f32 %v1037, %v2291
        %v2312 = vmul.f32 %v1038, %v2291
        %v2313 = vmul.f32 %v1039, %v2291
        %v2314 = vmul.f32 %v1040, %v2291
        %v2315 = vmul.f32 %v1041, %v2291
        %v2316 = vmul.f32 %v1042, %v2291
        %v2317 = vmul.f32 %v1043, %v2291
        %v2318 = vmul.f32 %v1044, %v2291
        %v2319 = vmul.f32 %v1045, %v2291
        %v2320 = vmul.f32 %v1046, %v2291
        %v2321 = vmul.f32 %v1047, %v2291
        %v2322 = vmul.f32 %v1048, %v2291
        %v2323 = vmul.f32 %v1049, %v2291
        %v2324 = vadd.f32 %v2256, %v2292
        %v2325 = vadd.f32 %v2257, %v2293
        %v2326 = vadd.f32 %v2258, %v2294
        %v2327 = vadd.f32 %v2259, %v2295
        %v2328 = vadd.f32 %v2260, %v2296
        %v2329 = vadd.f32 %v2261, %v2297
        %v2330 = vadd.f32 %v2262, %v2298
        %v2331 = vadd.f32 %v2263, %v2299
        %v2332 = vadd.f32 %v2264, %v2300
        %v2333 = vadd.f32 %v2265, %v2301
        %v2334 = vadd.f32 %v2266, %v2302
        %v2335 = vadd.f32 %v2267, %v2303
        %v2336 = vadd.f32 %v2268, %v2304
        %v2337 = vadd.f32 %v2269, %v2305
        %v2338 = vadd.f32 %v2270, %v2306
        %v2339 = vadd.f32 %v2271, %v2307
        %v2340 = vadd.f32 %v2272, %v2308
        %v2341 = vadd.f32 %v2273, %v2309
        %v2342 = vadd.f32 %v2274, %v2310
        %v2343 = vadd.f32 %v2275, %v2311
        %v2344 = vadd.f32 %v2276, %v2312
        %v2345 = vadd.f32 %v2277, %v2313
        %v2346 = vadd.f32 %v2278, %v2314
        %v2347 = vadd.f32 %v2279, %v2315
        %v2348 = vadd.f32 %v2280, %v2316
        %v2349 = vadd.f32 %v2281, %v2317
        %v2350 = vadd.f32 %v2282, %v2318
        %v2351 = vadd.f32 %v2283, %v2319
        %v2352 = vadd.f32 %v2284, %v2320
        %v2353 = vadd.f32 %v2285, %v2321
        %v2354 = vadd.f32 %v2286, %v2322
        %v2355 = vadd.f32 %v2287, %v2323
        %v2356 = vlaneseq
        %v2357 = vshrl.u32 %v2356, 7
        %v2358 = vsub.s32 0, %v2357
        %v2359 = vrot.slane %v2012, %v2358
        %v2360 = vmul.f32 %v860, %v2359
        %v2361 = vmul.f32 %v861, %v2359
        %v2362 = vmul.f32 %v862, %v2359
        %v2363 = vmul.f32 %v863, %v2359
        %v2364 = vmul.f32 %v864, %v2359
        %v2365 = vmul.f32 %v865, %v2359
        %v2366 = vmul.f32 %v866, %v2359
        %v2367 = vmul.f32 %v867, %v2359
        %v2368 = vmul.f32 %v868, %v2359
        %v2369 = vmul.f32 %v869, %v2359
        %v2370 = vmul.f32 %v870, %v2359
        %v2371 = vmul.f32 %v871, %v2359
        %v2372 = vmul.f32 %v872, %v2359
        %v2373 = vmul.f32 %v873, %v2359
        %v2374 = vmul.f32 %v874, %v2359
        %v2375 = vmul.f32 %v875, %v2359
        %v2376 = vmul.f32 %v876, %v2359
        %v2377 = vmul.f32 %v877, %v2359
        %v2378 = vmul.f32 %v878, %v2359
        %v2379 = vmul.f32 %v879, %v2359
        %v2380 = vmul.f32 %v880, %v2359
        %v2381 = vmul.f32 %v881, %v2359
        %v2382 = vmul.f32 %v882, %v2359
        %v2383 = vmul.f32 %v883, %v2359
        %v2384 = vmul.f32 %v884, %v2359
        %v2385 = vmul.f32 %v885, %v2359
        %v2386 = vmul.f32 %v886, %v2359
        %v2387 = vmul.f32 %v887, %v2359
        %v2388 = vmul.f32 %v888, %v2359
        %v2389 = vmul.f32 %v889, %v2359
        %v2390 = vmul.f32 %v890, %v2359
        %v2391 = vmul.f32 %v891, %v2359
        %v2392 = vadd.f32 %v2324, %v2360
        %v2393 = vadd.f32 %v2325, %v2361
        %v2394 = vadd.f32 %v2326, %v2362
        %v2395 = vadd.f32 %v2327, %v2363
        %v2396 = vadd.f32 %v2328, %v2364
        %v2397 = vadd.f32 %v2329, %v2365
        %v2398 = vadd.f32 %v2330, %v2366
        %v2399 = vadd.f32 %v2331, %v2367
        %v2400 = vadd.f32 %v2332, %v2368
        %v2401 = vadd.f32 %v2333, %v2369
        %v2402 = vadd.f32 %v2334, %v2370
        %v2403 = vadd.f32 %v2335, %v2371
        %v2404 = vadd.f32 %v2336, %v2372
        %v2405 = vadd.f32 %v2337, %v2373
        %v2406 = vadd.f32 %v2338, %v2374
        %v2407 = vadd.f32 %v2339, %v2375
        %v2408 = vadd.f32 %v2340, %v2376
        %v2409 = vadd.f32 %v2341, %v2377
        %v2410 = vadd.f32 %v2342, %v2378
        %v2411 = vadd.f32 %v2343, %v2379
        %v2412 = vadd.f32 %v2344, %v2380
        %v2413 = vadd.f32 %v2345, %v2381
        %v2414 = vadd.f32 %v2346, %v2382
        %v2415 = vadd.f32 %v2347, %v2383
        %v2416 = vadd.f32 %v2348, %v2384
        %v2417 = vadd.f32 %v2349, %v2385
        %v2418 = vadd.f32 %v2350, %v2386
        %v2419 = vadd.f32 %v2351, %v2387
        %v2420 = vadd.f32 %v2352, %v2388
        %v2421 = vadd.f32 %v2353, %v2389
        %v2422 = vadd.f32 %v2354, %v2390
        %v2423 = vadd.f32 %v2355, %v2391
        %v2424 = vlaneseq
        %v2425 = vshrl.u32 %v2424, 7
        %v2426 = vsub.s32 1, %v2425
        %v2427 = vrot.slane %v2012, %v2426
        %v2428 = vmul.f32 %v900, %v2427
        %v2429 = vmul.f32 %v901, %v2427
        %v2430 = vmul.f32 %v902, %v2427
        %v2431 = vmul.f32 %v903, %v2427
        %v2432 = vmul.f32 %v904, %v2427
        %v2433 = vmul.f32 %v905, %v2427
        %v2434 = vmul.f32 %v906, %v2427
        %v2435 = vmul.f32 %v907, %v2427
        %v2436 = vmul.f32 %v908, %v2427
        %v2437 = vmul.f32 %v909, %v2427
        %v2438 = vmul.f32 %v910, %v2427
        %v2439 = vmul.f32 %v911, %v2427
        %v2440 = vmul.f32 %v912, %v2427
        %v2441 = vmul.f32 %v913, %v2427
        %v2442 = vmul.f32 %v914, %v2427
        %v2443 = vmul.f32 %v915, %v2427
        %v2444 = vmul.f32 %v916, %v2427
        %v2445 = vmul.f32 %v917, %v2427
        %v2446 = vmul.f32 %v918, %v2427
        %v2447 = vmul.f32 %v919, %v2427
        %v2448 = vmul.f32 %v920, %v2427
        %v2449 = vmul.f32 %v921, %v2427
        %v2450 = vmul.f32 %v922, %v2427
        %v2451 = vmul.f32 %v923, %v2427
        %v2452 = vmul.f32 %v924, %v2427
        %v2453 = vmul.f32 %v925, %v2427
        %v2454 = vmul.f32 %v926, %v2427
        %v2455 = vmul.f32 %v927, %v2427
        %v2456 = vmul.f32 %v928, %v2427
        %v2457 = vmul.f32 %v929, %v2427
        %v2458 = vmul.f32 %v930, %v2427
        %v2459 = vmul.f32 %v931, %v2427
        %v2460 = vadd.f32 %v2392, %v2428
        %v2461 = vadd.f32 %v2393, %v2429
        %v2462 = vadd.f32 %v2394, %v2430
        %v2463 = vadd.f32 %v2395, %v2431
        %v2464 = vadd.f32 %v2396, %v2432
        %v2465 = vadd.f32 %v2397, %v2433
        %v2466 = vadd.f32 %v2398, %v2434
        %v2467 = vadd.f32 %v2399, %v2435
        %v2468 = vadd.f32 %v2400, %v2436
        %v2469 = vadd.f32 %v2401, %v2437
        %v2470 = vadd.f32 %v2402, %v2438
        %v2471 = vadd.f32 %v2403, %v2439
        %v2472 = vadd.f32 %v2404, %v2440
        %v2473 = vadd.f32 %v2405, %v2441
        %v2474 = vadd.f32 %v2406, %v2442
        %v2475 = vadd.f32 %v2407, %v2443
        %v2476 = vadd.f32 %v2408, %v2444
        %v2477 = vadd.f32 %v2409, %v2445
        %v2478 = vadd.f32 %v2410, %v2446
        %v2479 = vadd.f32 %v2411, %v2447
        %v2480 = vadd.f32 %v2412, %v2448
        %v2481 = vadd.f32 %v2413, %v2449
        %v2482 = vadd.f32 %v2414, %v2450
        %v2483 = vadd.f32 %v2415, %v2451
        %v2484 = vadd.f32 %v2416, %v2452
        %v2485 = vadd.f32 %v2417, %v2453
        %v2486 = vadd.f32 %v2418, %v2454
        %v2487 = vadd.f32 %v2419, %v2455
        %v2488 = vadd.f32 %v2420, %v2456
        %v2489 = vadd.f32 %v2421, %v2457
        %v2490 = vadd.f32 %v2422, %v2458
        %v2491 = vadd.f32 %v2423, %v2459
        %v2492 = vlaneseq
        %v2493 = vshrl.u32 %v2492, 7
        %v2494 = vsub.s32 2, %v2493
        %v2495 = vrot.slane %v2012, %v2494
        %v2496 = vmul.f32 %v940, %v2495
        %v2497 = vmul.f32 %v941, %v2495
        %v2498 = vmul.f32 %v942, %v2495
        %v2499 = vmul.f32 %v943, %v2495
        %v2500 = vmul.f32 %v944, %v2495
        %v2501 = vmul.f32 %v945, %v2495
        %v2502 = vmul.f32 %v946, %v2495
        %v2503 = vmul.f32 %v947, %v2495
        %v2504 = vmul.f32 %v948, %v2495
        %v2505 = vmul.f32 %v949, %v2495
        %v2506 = vmul.f32 %v950, %v2495
        %v2507 = vmul.f32 %v951, %v2495
        %v2508 = vmul.f32 %v952, %v2495
        %v2509 = vmul.f32 %v953, %v2495
        %v2510 = vmul.f32 %v954, %v2495
        %v2511 = vmul.f32 %v955, %v2495
        %v2512 = vmul.f32 %v956, %v2495
        %v2513 = vmul.f32 %v957, %v2495
        %v2514 = vmul.f32 %v958, %v2495
        %v2515 = vmul.f32 %v959, %v2495
        %v2516 = vmul.f32 %v960, %v2495
        %v2517 = vmul.f32 %v961, %v2495
        %v2518 = vmul.f32 %v962, %v2495
        %v2519 = vmul.f32 %v963, %v2495
        %v2520 = vmul.f32 %v964, %v2495
        %v2521 = vmul.f32 %v965, %v2495
        %v2522 = vmul.f32 %v966, %v2495
        %v2523 = vmul.f32 %v967, %v2495
        %v2524 = vmul.f32 %v968, %v2495
        %v2525 = vmul.f32 %v969, %v2495
        %v2526 = vmul.f32 %v970, %v2495
        %v2527 = vmul.f32 %v971, %v2495
        %v2528 = vadd.f32 %v2460, %v2496
        %v2529 = vadd.f32 %v2461, %v2497
        %v2530 = vadd.f32 %v2462, %v2498
        %v2531 = vadd.f32 %v2463, %v2499
        %v2532 = vadd.f32 %v2464, %v2500
        %v2533 = vadd.f32 %v2465, %v2501
        %v2534 = vadd.f32 %v2466, %v2502
        %v2535 = vadd.f32 %v2467, %v2503
        %v2536 = vadd.f32 %v2468, %v2504
        %v2537 = vadd.f32 %v2469, %v2505
        %v2538 = vadd.f32 %v2470, %v2506
        %v2539 = vadd.f32 %v2471, %v2507
        %v2540 = vadd.f32 %v2472, %v2508
        %v2541 = vadd.f32 %v2473, %v2509
        %v2542 = vadd.f32 %v2474, %v2510
        %v2543 = vadd.f32 %v2475, %v2511
        %v2544 = vadd.f32 %v2476, %v2512
        %v2545 = vadd.f32 %v2477, %v2513
        %v2546 = vadd.f32 %v2478, %v2514
        %v2547 = vadd.f32 %v2479, %v2515
        %v2548 = vadd.f32 %v2480, %v2516
        %v2549 = vadd.f32 %v2481, %v2517
        %v2550 = vadd.f32 %v2482, %v2518
        %v2551 = vadd.f32 %v2483, %v2519
        %v2552 = vadd.f32 %v2484, %v2520
        %v2553 = vadd.f32 %v2485, %v2521
        %v2554 = vadd.f32 %v2486, %v2522
        %v2555 = vadd.f32 %v2487, %v2523
        %v2556 = vadd.f32 %v2488, %v2524
        %v2557 = vadd.f32 %v2489, %v2525
        %v2558 = vadd.f32 %v2490, %v2526
        %v2559 = vadd.f32 %v2491, %v2527
        %v2560 = vlaneseq
        %v2561 = vshrl.u32 %v2560, 7
        %v2562 = vsub.s32 3, %v2561
        %v2563 = vrot.slane %v2012, %v2562
        %v2564 = vmul.f32 %v980, %v2563
        %v2565 = vmul.f32 %v981, %v2563
        %v2566 = vmul.f32 %v982, %v2563
        %v2567 = vmul.f32 %v983, %v2563
        %v2568 = vmul.f32 %v984, %v2563
        %v2569 = vmul.f32 %v985, %v2563
        %v2570 = vmul.f32 %v986, %v2563
        %v2571 = vmul.f32 %v987, %v2563
        %v2572 = vmul.f32 %v988, %v2563
        %v2573 = vmul.f32 %v989, %v2563
        %v2574 = vmul.f32 %v990, %v2563
        %v2575 = vmul.f32 %v991, %v2563
        %v2576 = vmul.f32 %v992, %v2563
        %v2577 = vmul.f32 %v993, %v2563
        %v2578 = vmul.f32 %v994, %v2563
        %v2579 = vmul.f32 %v995, %v2563
        %v2580 = vmul.f32 %v996, %v2563
        %v2581 = vmul.f32 %v997, %v2563
        %v2582 = vmul.f32 %v998, %v2563
        %v2583 = vmul.f32 %v999, %v2563
        %v2584 = vmul.f32 %v1000, %v2563
        %v2585 = vmul.f32 %v1001, %v2563
        %v2586 = vmul.f32 %v1002, %v2563
        %v2587 = vmul.f32 %v1003, %v2563
        %v2588 = vmul.f32 %v1004, %v2563
        %v2589 = vmul.f32 %v1005, %v2563
        %v2590 = vmul.f32 %v1006, %v2563
        %v2591 = vmul.f32 %v1007, %v2563
        %v2592 = vmul.f32 %v1008, %v2563
        %v2593 = vmul.f32 %v1009, %v2563
        %v2594 = vmul.f32 %v1010, %v2563
        %v2595 = vmul.f32 %v1011, %v2563
        %v2596 = vadd.f32 %v2528, %v2564
        %v2597 = vadd.f32 %v2529, %v2565
        %v2598 = vadd.f32 %v2530, %v2566
        %v2599 = vadd.f32 %v2531, %v2567
        %v2600 = vadd.f32 %v2532, %v2568
        %v2601 = vadd.f32 %v2533, %v2569
        %v2602 = vadd.f32 %v2534, %v2570
        %v2603 = vadd.f32 %v2535, %v2571
        %v2604 = vadd.f32 %v2536, %v2572
        %v2605 = vadd.f32 %v2537, %v2573
        %v2606 = vadd.f32 %v2538, %v2574
        %v2607 = vadd.f32 %v2539, %v2575
        %v2608 = vadd.f32 %v2540, %v2576
        %v2609 = vadd.f32 %v2541, %v2577
        %v2610 = vadd.f32 %v2542, %v2578
        %v2611 = vadd.f32 %v2543, %v2579
        %v2612 = vadd.f32 %v2544, %v2580
        %v2613 = vadd.f32 %v2545, %v2581
        %v2614 = vadd.f32 %v2546, %v2582
        %v2615 = vadd.f32 %v2547, %v2583
        %v2616 = vadd.f32 %v2548, %v2584
        %v2617 = vadd.f32 %v2549, %v2585
        %v2618 = vadd.f32 %v2550, %v2586
        %v2619 = vadd.f32 %v2551, %v2587
        %v2620 = vadd.f32 %v2552, %v2588
        %v2621 = vadd.f32 %v2553, %v2589
        %v2622 = vadd.f32 %v2554, %v2590
        %v2623 = vadd.f32 %v2555, %v2591
        %v2624 = vadd.f32 %v2556, %v2592
        %v2625 = vadd.f32 %v2557, %v2593
        %v2626 = vadd.f32 %v2558, %v2594
        %v2627 = vadd.f32 %v2559, %v2595
        %v2628 = vlaneseq
        %v2629 = vshrl.u32 %v2628, 7
        %v2630 = vsub.s32 4, %v2629
        %v2631 = vrot.slane %v2012, %v2630
        %v2632 = vmul.f32 %v1020, %v2631
        %v2633 = vmul.f32 %v1021, %v2631
        %v2634 = vmul.f32 %v1022, %v2631
        %v2635 = vmul.f32 %v1023, %v2631
        %v2636 = vmul.f32 %v1024, %v2631
        %v2637 = vmul.f32 %v1025, %v2631
        %v2638 = vmul.f32 %v1026, %v2631
        %v2639 = vmul.f32 %v1027, %v2631
        %v2640 = vmul.f32 %v1028, %v2631
        %v2641 = vmul.f32 %v1029, %v2631
        %v2642 = vmul.f32 %v1030, %v2631
        %v2643 = vmul.f32 %v1031, %v2631
        %v2644 = vmul.f32 %v1032, %v2631
        %v2645 = vmul.f32 %v1033, %v2631
        %v2646 = vmul.f32 %v1034, %v2631
        %v2647 = vmul.f32 %v1035, %v2631
        %v2648 = vmul.f32 %v1036, %v2631
        %v2649 = vmul.f32 %v1037, %v2631
        %v2650 = vmul.f32 %v1038, %v2631
        %v2651 = vmul.f32 %v1039, %v2631
        %v2652 = vmul.f32 %v1040, %v2631
        %v2653 = vmul.f32 %v1041, %v2631
        %v2654 = vmul.f32 %v1042, %v2631
        %v2655 = vmul.f32 %v1043, %v2631
        %v2656 = vmul.f32 %v1044, %v2631
        %v2657 = vmul.f32 %v1045, %v2631
        %v2658 = vmul.f32 %v1046, %v2631
        %v2659 = vmul.f32 %v1047, %v2631
        %v2660 = vmul.f32 %v1048, %v2631
        %v2661 = vmul.f32 %v1049, %v2631
        %v2662 = vmul.f32 %v1050, %v2631
        %v2663 = vmul.f32 %v1051, %v2631
        %v2664 = vadd.f32 %v2596, %v2632
        %v2665 = vadd.f32 %v2597, %v2633
        %v2666 = vadd.f32 %v2598, %v2634
        %v2667 = vadd.f32 %v2599, %v2635
        %v2668 = vadd.f32 %v2600, %v2636
        %v2669 = vadd.f32 %v2601, %v2637
        %v2670 = vadd.f32 %v2602, %v2638
        %v2671 = vadd.f32 %v2603, %v2639
        %v2672 = vadd.f32 %v2604, %v2640
        %v2673 = vadd.f32 %v2605, %v2641
        %v2674 = vadd.f32 %v2606, %v2642
        %v2675 = vadd.f32 %v2607, %v2643
        %v2676 = vadd.f32 %v2608, %v2644
        %v2677 = vadd.f32 %v2609, %v2645
        %v2678 = vadd.f32 %v2610, %v2646
        %v2679 = vadd.f32 %v2611, %v2647
        %v2680 = vadd.f32 %v2612, %v2648
        %v2681 = vadd.f32 %v2613, %v2649
        %v2682 = vadd.f32 %v2614, %v2650
        %v2683 = vadd.f32 %v2615, %v2651
        %v2684 = vadd.f32 %v2616, %v2652
        %v2685 = vadd.f32 %v2617, %v2653
        %v2686 = vadd.f32 %v2618, %v2654
        %v2687 = vadd.f32 %v2619, %v2655
        %v2688 = vadd.f32 %v2620, %v2656
        %v2689 = vadd.f32 %v2621, %v2657
        %v2690 = vadd.f32 %v2622, %v2658
        %v2691 = vadd.f32 %v2623, %v2659
        %v2692 = vadd.f32 %v2624, %v2660
        %v2693 = vadd.f32 %v2625, %v2661
        %v2694 = vadd.f32 %v2626, %v2662
        %v2695 = vadd.f32 %v2627, %v2663
        %v2696 = vlaneseq
        %v2697 = vshrl.u32 %v2696, 7
        %v2698 = vsub.s32 0, %v2697
        %v2699 = vrot.slane %v2013, %v2698
        %v2700 = vmul.f32 %v862, %v2699
        %v2701 = vmul.f32 %v863, %v2699
        %v2702 = vmul.f32 %v864, %v2699
        %v2703 = vmul.f32 %v865, %v2699
        %v2704 = vmul.f32 %v866, %v2699
        %v2705 = vmul.f32 %v867, %v2699
        %v2706 = vmul.f32 %v868, %v2699
        %v2707 = vmul.f32 %v869, %v2699
        %v2708 = vmul.f32 %v870, %v2699
        %v2709 = vmul.f32 %v871, %v2699
        %v2710 = vmul.f32 %v872, %v2699
        %v2711 = vmul.f32 %v873, %v2699
        %v2712 = vmul.f32 %v874, %v2699
        %v2713 = vmul.f32 %v875, %v2699
        %v2714 = vmul.f32 %v876, %v2699
        %v2715 = vmul.f32 %v877, %v2699
        %v2716 = vmul.f32 %v878, %v2699
        %v2717 = vmul.f32 %v879, %v2699
        %v2718 = vmul.f32 %v880, %v2699
        %v2719 = vmul.f32 %v881, %v2699
        %v2720 = vmul.f32 %v882, %v2699
        %v2721 = vmul.f32 %v883, %v2699
        %v2722 = vmul.f32 %v884, %v2699
        %v2723 = vmul.f32 %v885, %v2699
        %v2724 = vmul.f32 %v886, %v2699
        %v2725 = vmul.f32 %v887, %v2699
        %v2726 = vmul.f32 %v888, %v2699
        %v2727 = vmul.f32 %v889, %v2699
        %v2728 = vmul.f32 %v890, %v2699
        %v2729 = vmul.f32 %v891, %v2699
        %v2730 = vmul.f32 %v892, %v2699
        %v2731 = vmul.f32 %v893, %v2699
        %v2732 = vadd.f32 %v2664, %v2700
        %v2733 = vadd.f32 %v2665, %v2701
        %v2734 = vadd.f32 %v2666, %v2702
        %v2735 = vadd.f32 %v2667, %v2703
        %v2736 = vadd.f32 %v2668, %v2704
        %v2737 = vadd.f32 %v2669, %v2705
        %v2738 = vadd.f32 %v2670, %v2706
        %v2739 = vadd.f32 %v2671, %v2707
        %v2740 = vadd.f32 %v2672, %v2708
        %v2741 = vadd.f32 %v2673, %v2709
        %v2742 = vadd.f32 %v2674, %v2710
        %v2743 = vadd.f32 %v2675, %v2711
        %v2744 = vadd.f32 %v2676, %v2712
        %v2745 = vadd.f32 %v2677, %v2713
        %v2746 = vadd.f32 %v2678, %v2714
        %v2747 = vadd.f32 %v2679, %v2715
        %v2748 = vadd.f32 %v2680, %v2716
        %v2749 = vadd.f32 %v2681, %v2717
        %v2750 = vadd.f32 %v2682, %v2718
        %v2751 = vadd.f32 %v2683, %v2719
        %v2752 = vadd.f32 %v2684, %v2720
        %v2753 = vadd.f32 %v2685, %v2721
        %v2754 = vadd.f32 %v2686, %v2722
        %v2755 = vadd.f32 %v2687, %v2723
        %v2756 = vadd.f32 %v2688, %v2724
        %v2757 = vadd.f32 %v2689, %v2725
        %v2758 = vadd.f32 %v2690, %v2726
        %v2759 = vadd.f32 %v2691, %v2727
        %v2760 = vadd.f32 %v2692, %v2728
        %v2761 = vadd.f32 %v2693, %v2729
        %v2762 = vadd.f32 %v2694, %v2730
        %v2763 = vadd.f32 %v2695, %v2731
        %v2764 = vlaneseq
        %v2765 = vshrl.u32 %v2764, 7
        %v2766 = vsub.s32 1, %v2765
        %v2767 = vrot.slane %v2013, %v2766
        %v2768 = vmul.f32 %v902, %v2767
        %v2769 = vmul.f32 %v903, %v2767
        %v2770 = vmul.f32 %v904, %v2767
        %v2771 = vmul.f32 %v905, %v2767
        %v2772 = vmul.f32 %v906, %v2767
        %v2773 = vmul.f32 %v907, %v2767
        %v2774 = vmul.f32 %v908, %v2767
        %v2775 = vmul.f32 %v909, %v2767
        %v2776 = vmul.f32 %v910, %v2767
        %v2777 = vmul.f32 %v911, %v2767
        %v2778 = vmul.f32 %v912, %v2767
        %v2779 = vmul.f32 %v913, %v2767
        %v2780 = vmul.f32 %v914, %v2767
        %v2781 = vmul.f32 %v915, %v2767
        %v2782 = vmul.f32 %v916, %v2767
        %v2783 = vmul.f32 %v917, %v2767
        %v2784 = vmul.f32 %v918, %v2767
        %v2785 = vmul.f32 %v919, %v2767
        %v2786 = vmul.f32 %v920, %v2767
        %v2787 = vmul.f32 %v921, %v2767
        %v2788 = vmul.f32 %v922, %v2767
        %v2789 = vmul.f32 %v923, %v2767
        %v2790 = vmul.f32 %v924, %v2767
        %v2791 = vmul.f32 %v925, %v2767
        %v2792 = vmul.f32 %v926, %v2767
        %v2793 = vmul.f32 %v927, %v2767
        %v2794 = vmul.f32 %v928, %v2767
        %v2795 = vmul.f32 %v929, %v2767
        %v2796 = vmul.f32 %v930, %v2767
        %v2797 = vmul.f32 %v931, %v2767
        %v2798 = vmul.f32 %v932, %v2767
        %v2799 = vmul.f32 %v933, %v2767
        %v2800 = vadd.f32 %v2732, %v2768
        %v2801 = vadd.f32 %v2733, %v2769
        %v2802 = vadd.f32 %v2734, %v2770
        %v2803 = vadd.f32 %v2735, %v2771
        %v2804 = vadd.f32 %v2736, %v2772
        %v2805 = vadd.f32 %v2737, %v2773
        %v2806 = vadd.f32 %v2738, %v2774
        %v2807 = vadd.f32 %v2739, %v2775
        %v2808 = vadd.f32 %v2740, %v2776
        %v2809 = vadd.f32 %v2741, %v2777
        %v2810 = vadd.f32 %v2742, %v2778
        %v2811 = vadd.f32 %v2743, %v2779
        %v2812 = vadd.f32 %v2744, %v2780
        %v2813 = vadd.f32 %v2745, %v2781
        %v2814 = vadd.f32 %v2746, %v2782
        %v2815 = vadd.f32 %v2747, %v2783
        %v2816 = vadd.f32 %v2748, %v2784
        %v2817 = vadd.f32 %v2749, %v2785
        %v2818 = vadd.f32 %v2750, %v2786
        %v2819 = vadd.f32 %v2751, %v2787
        %v2820 = vadd.f32 %v2752, %v2788
        %v2821 = vadd.f32 %v2753, %v2789
        %v2822 = vadd.f32 %v2754, %v2790
        %v2823 = vadd.f32 %v2755, %v2791
        %v2824 = vadd.f32 %v2756, %v2792
        %v2825 = vadd.f32 %v2757, %v2793
        %v2826 = vadd.f32 %v2758, %v2794
        %v2827 = vadd.f32 %v2759, %v2795
        %v2828 = vadd.f32 %v2760, %v2796
        %v2829 = vadd.f32 %v2761, %v2797
        %v2830 = vadd.f32 %v2762, %v2798
        %v2831 = vadd.f32 %v2763, %v2799
        %v2832 = vlaneseq
        %v2833 = vshrl.u32 %v2832, 7
        %v2834 = vsub.s32 2, %v2833
        %v2835 = vrot.slane %v2013, %v2834
        %v2836 = vmul.f32 %v942, %v2835
        %v2837 = vmul.f32 %v943, %v2835
        %v2838 = vmul.f32 %v944, %v2835
        %v2839 = vmul.f32 %v945, %v2835
        %v2840 = vmul.f32 %v946, %v2835
        %v2841 = vmul.f32 %v947, %v2835
        %v2842 = vmul.f32 %v948, %v2835
        %v2843 = vmul.f32 %v949, %v2835
        %v2844 = vmul.f32 %v950, %v2835
        %v2845 = vmul.f32 %v951, %v2835
        %v2846 = vmul.f32 %v952, %v2835
        %v2847 = vmul.f32 %v953, %v2835
        %v2848 = vmul.f32 %v954, %v2835
        %v2849 = vmul.f32 %v955, %v2835
        %v2850 = vmul.f32 %v956, %v2835
        %v2851 = vmul.f32 %v957, %v2835
        %v2852 = vmul.f32 %v958, %v2835
        %v2853 = vmul.f32 %v959, %v2835
        %v2854 = vmul.f32 %v960, %v2835
        %v2855 = vmul.f32 %v961, %v2835
        %v2856 = vmul.f32 %v962, %v2835
        %v2857 = vmul.f32 %v963, %v2835
        %v2858 = vmul.f32 %v964, %v2835
        %v2859 = vmul.f32 %v965, %v2835
        %v2860 = vmul.f32 %v966, %v2835
        %v2861 = vmul.f32 %v967, %v2835
        %v2862 = vmul.f32 %v968, %v2835
        %v2863 = vmul.f32 %v969, %v2835
        %v2864 = vmul.f32 %v970, %v2835
        %v2865 = vmul.f32 %v971, %v2835
        %v2866 = vmul.f32 %v972, %v2835
        %v2867 = vmul.f32 %v973, %v2835
        %v2868 = vadd.f32 %v2800, %v2836
        %v2869 = vadd.f32 %v2801, %v2837
        %v2870 = vadd.f32 %v2802, %v2838
        %v2871 = vadd.f32 %v2803, %v2839
        %v2872 = vadd.f32 %v2804, %v2840
        %v2873 = vadd.f32 %v2805, %v2841
        %v2874 = vadd.f32 %v2806, %v2842
        %v2875 = vadd.f32 %v2807, %v2843
        %v2876 = vadd.f32 %v2808, %v2844
        %v2877 = vadd.f32 %v2809, %v2845
        %v2878 = vadd.f32 %v2810, %v2846
        %v2879 = vadd.f32 %v2811, %v2847
        %v2880 = vadd.f32 %v2812, %v2848
        %v2881 = vadd.f32 %v2813, %v2849
        %v2882 = vadd.f32 %v2814, %v2850
        %v2883 = vadd.f32 %v2815, %v2851
        %v2884 = vadd.f32 %v2816, %v2852
        %v2885 = vadd.f32 %v2817, %v2853
        %v2886 = vadd.f32 %v2818, %v2854
        %v2887 = vadd.f32 %v2819, %v2855
        %v2888 = vadd.f32 %v2820, %v2856
        %v2889 = vadd.f32 %v2821, %v2857
        %v2890 = vadd.f32 %v2822, %v2858
        %v2891 = vadd.f32 %v2823, %v2859
        %v2892 = vadd.f32 %v2824, %v2860
        %v2893 = vadd.f32 %v2825, %v2861
        %v2894 = vadd.f32 %v2826, %v2862
        %v2895 = vadd.f32 %v2827, %v2863
        %v2896 = vadd.f32 %v2828, %v2864
        %v2897 = vadd.f32 %v2829, %v2865
        %v2898 = vadd.f32 %v2830, %v2866
        %v2899 = vadd.f32 %v2831, %v2867
        %v2900 = vlaneseq
        %v2901 = vshrl.u32 %v2900, 7
        %v2902 = vsub.s32 3, %v2901
        %v2903 = vrot.slane %v2013, %v2902
        %v2904 = vmul.f32 %v982, %v2903
        %v2905 = vmul.f32 %v983, %v2903
        %v2906 = vmul.f32 %v984, %v2903
        %v2907 = vmul.f32 %v985, %v2903
        %v2908 = vmul.f32 %v986, %v2903
        %v2909 = vmul.f32 %v987, %v2903
        %v2910 = vmul.f32 %v988, %v2903
        %v2911 = vmul.f32 %v989, %v2903
        %v2912 = vmul.f32 %v990, %v2903
        %v2913 = vmul.f32 %v991, %v2903
        %v2914 = vmul.f32 %v992, %v2903
        %v2915 = vmul.f32 %v993, %v2903
        %v2916 = vmul.f32 %v994, %v2903
        %v2917 = vmul.f32 %v995, %v2903
        %v2918 = vmul.f32 %v996, %v2903
        %v2919 = vmul.f32 %v997, %v2903
        %v2920 = vmul.f32 %v998, %v2903
        %v2921 = vmul.f32 %v999, %v2903
        %v2922 = vmul.f32 %v1000, %v2903
        %v2923 = vmul.f32 %v1001, %v2903
        %v2924 = vmul.f32 %v1002, %v2903
        %v2925 = vmul.f32 %v1003, %v2903
        %v2926 = vmul.f32 %v1004, %v2903
        %v2927 = vmul.f32 %v1005, %v2903
        %v2928 = vmul.f32 %v1006, %v2903
        %v2929 = vmul.f32 %v1007, %v2903
        %v2930 = vmul.f32 %v1008, %v2903
        %v2931 = vmul.f32 %v1009, %v2903
        %v2932 = vmul.f32 %v1010, %v2903
        %v2933 = vmul.f32 %v1011, %v2903
        %v2934 = vmul.f32 %v1012, %v2903
        %v2935 = vmul.f32 %v1013, %v2903
        %v2936 = vadd.f32 %v2868, %v2904
        %v2937 = vadd.f32 %v2869, %v2905
        %v2938 = vadd.f32 %v2870, %v2906
        %v2939 = vadd.f32 %v2871, %v2907
        %v2940 = vadd.f32 %v2872, %v2908
        %v2941 = vadd.f32 %v2873, %v2909
        %v2942 = vadd.f32 %v2874, %v2910
        %v2943 = vadd.f32 %v2875, %v2911
        %v2944 = vadd.f32 %v2876, %v2912
        %v2945 = vadd.f32 %v2877, %v2913
        %v2946 = vadd.f32 %v2878, %v2914
        %v2947 = vadd.f32 %v2879, %v2915
        %v2948 = vadd.f32 %v2880, %v2916
        %v2949 = vadd.f32 %v2881, %v2917
        %v2950 = vadd.f32 %v2882, %v2918
        %v2951 = vadd.f32 %v2883, %v2919
        %v2952 = vadd.f32 %v2884, %v2920
        %v2953 = vadd.f32 %v2885, %v2921
        %v2954 = vadd.f32 %v2886, %v2922
        %v2955 = vadd.f32 %v2887, %v2923
        %v2956 = vadd.f32 %v2888, %v2924
        %v2957 = vadd.f32 %v2889, %v2925
        %v2958 = vadd.f32 %v2890, %v2926
        %v2959 = vadd.f32 %v2891, %v2927
        %v2960 = vadd.f32 %v2892, %v2928
        %v2961 = vadd.f32 %v2893, %v2929
        %v2962 = vadd.f32 %v2894, %v2930
        %v2963 = vadd.f32 %v2895, %v2931
        %v2964 = vadd.f32 %v2896, %v2932
        %v2965 = vadd.f32 %v2897, %v2933
        %v2966 = vadd.f32 %v2898, %v2934
        %v2967 = vadd.f32 %v2899, %v2935
        %v2968 = vlaneseq
        %v2969 = vshrl.u32 %v2968, 7
        %v2970 = vsub.s32 4, %v2969
        %v2971 = vrot.slane %v2013, %v2970
        %v2972 = vmul.f32 %v1022, %v2971
        %v2973 = vmul.f32 %v1023, %v2971
        %v2974 = vmul.f32 %v1024, %v2971
        %v2975 = vmul.f32 %v1025, %v2971
        %v2976 = vmul.f32 %v1026, %v2971
        %v2977 = vmul.f32 %v1027, %v2971
        %v2978 = vmul.f32 %v1028, %v2971
        %v2979 = vmul.f32 %v1029, %v2971
        %v2980 = vmul.f32 %v1030, %v2971
        %v2981 = vmul.f32 %v1031, %v2971
        %v2982 = vmul.f32 %v1032, %v2971
        %v2983 = vmul.f32 %v1033, %v2971
        %v2984 = vmul.f32 %v1034, %v2971
        %v2985 = vmul.f32 %v1035, %v2971
        %v2986 = vmul.f32 %v1036, %v2971
        %v2987 = vmul.f32 %v1037, %v2971
        %v2988 = vmul.f32 %v1038, %v2971
        %v2989 = vmul.f32 %v1039, %v2971
        %v2990 = vmul.f32 %v1040, %v2971
        %v2991 = vmul.f32 %v1041, %v2971
        %v2992 = vmul.f32 %v1042, %v2971
        %v2993 = vmul.f32 %v1043, %v2971
        %v2994 = vmul.f32 %v1044, %v2971
        %v2995 = vmul.f32 %v1045, %v2971
        %v2996 = vmul.f32 %v1046, %v2971
        %v2997 = vmul.f32 %v1047, %v2971
        %v2998 = vmul.f32 %v1048, %v2971
        %v2999 = vmul.f32 %v1049, %v2971
        %v3000 = vmul.f32 %v1050, %v2971
        %v3001 = vmul.f32 %v1051, %v2971
        %v3002 = vmul.f32 %v1052, %v2971
        %v3003 = vmul.f32 %v1053, %v2971
        %v3004 = vadd.f32 %v2936, %v2972
        %v3005 = vadd.f32 %v2937, %v2973
        %v3006 = vadd.f32 %v2938, %v2974
        %v3007 = vadd.f32 %v2939, %v2975
        %v3008 = vadd.f32 %v2940, %v2976
        %v3009 = vadd.f32 %v2941, %v2977
        %v3010 = vadd.f32 %v2942, %v2978
        %v3011 = vadd.f32 %v2943, %v2979
        %v3012 = vadd.f32 %v2944, %v2980
        %v3013 = vadd.f32 %v2945, %v2981
        %v3014 = vadd.f32 %v2946, %v2982
        %v3015 = vadd.f32 %v2947, %v2983
        %v3016 = vadd.f32 %v2948, %v2984
        %v3017 = vadd.f32 %v2949, %v2985
        %v3018 = vadd.f32 %v2950, %v2986
        %v3019 = vadd.f32 %v2951, %v2987
        %v3020 = vadd.f32 %v2952, %v2988
        %v3021 = vadd.f32 %v2953, %v2989
        %v3022 = vadd.f32 %v2954, %v2990
        %v3023 = vadd.f32 %v2955, %v2991
        %v3024 = vadd.f32 %v2956, %v2992
        %v3025 = vadd.f32 %v2957, %v2993
        %v3026 = vadd.f32 %v2958, %v2994
        %v3027 = vadd.f32 %v2959, %v2995
        %v3028 = vadd.f32 %v2960, %v2996
        %v3029 = vadd.f32 %v2961, %v2997
        %v3030 = vadd.f32 %v2962, %v2998
        %v3031 = vadd.f32 %v2963, %v2999
        %v3032 = vadd.f32 %v2964, %v3000
        %v3033 = vadd.f32 %v2965, %v3001
        %v3034 = vadd.f32 %v2966, %v3002
        %v3035 = vadd.f32 %v2967, %v3003
        %v3036 = vlaneseq
        %v3037 = vshrl.u32 %v3036, 7
        %v3038 = vsub.s32 0, %v3037
        %v3039 = vrot.slane %v2014, %v3038
        %v3040 = vmul.f32 %v864, %v3039
        %v3041 = vmul.f32 %v865, %v3039
        %v3042 = vmul.f32 %v866, %v3039
        %v3043 = vmul.f32 %v867, %v3039
        %v3044 = vmul.f32 %v868, %v3039
        %v3045 = vmul.f32 %v869, %v3039
        %v3046 = vmul.f32 %v870, %v3039
        %v3047 = vmul.f32 %v871, %v3039
        %v3048 = vmul.f32 %v872, %v3039
        %v3049 = vmul.f32 %v873, %v3039
        %v3050 = vmul.f32 %v874, %v3039
        %v3051 = vmul.f32 %v875, %v3039
        %v3052 = vmul.f32 %v876, %v3039
        %v3053 = vmul.f32 %v877, %v3039
        %v3054 = vmul.f32 %v878, %v3039
        %v3055 = vmul.f32 %v879, %v3039
        %v3056 = vmul.f32 %v880, %v3039
        %v3057 = vmul.f32 %v881, %v3039
        %v3058 = vmul.f32 %v882, %v3039
        %v3059 = vmul.f32 %v883, %v3039
        %v3060 = vmul.f32 %v884, %v3039
        %v3061 = vmul.f32 %v885, %v3039
        %v3062 = vmul.f32 %v886, %v3039
        %v3063 = vmul.f32 %v887, %v3039
        %v3064 = vmul.f32 %v888, %v3039
        %v3065 = vmul.f32 %v889, %v3039
        %v3066 = vmul.f32 %v890, %v3039
        %v3067 = vmul.f32 %v891, %v3039
        %v3068 = vmul.f32 %v892, %v3039
        %v3069 = vmul.f32 %v893, %v3039
        %v3070 = vmul.f32 %v894, %v3039
        %v3071 = vmul.f32 %v895, %v3039
        %v3072 = vadd.f32 %v3004, %v3040
        %v3073 = vadd.f32 %v3005, %v3041
        %v3074 = vadd.f32 %v3006, %v3042
        %v3075 = vadd.f32 %v3007, %v3043
        %v3076 = vadd.f32 %v3008, %v3044
        %v3077 = vadd.f32 %v3009, %v3045
        %v3078 = vadd.f32 %v3010, %v3046
        %v3079 = vadd.f32 %v3011, %v3047
        %v3080 = vadd.f32 %v3012, %v3048
        %v3081 = vadd.f32 %v3013, %v3049
        %v3082 = vadd.f32 %v3014, %v3050
        %v3083 = vadd.f32 %v3015, %v3051
        %v3084 = vadd.f32 %v3016, %v3052
        %v3085 = vadd.f32 %v3017, %v3053
        %v3086 = vadd.f32 %v3018, %v3054
        %v3087 = vadd.f32 %v3019, %v3055
        %v3088 = vadd.f32 %v3020, %v3056
        %v3089 = vadd.f32 %v3021, %v3057
        %v3090 = vadd.f32 %v3022, %v3058
        %v3091 = vadd.f32 %v3023, %v3059
        %v3092 = vadd.f32 %v3024, %v3060
        %v3093 = vadd.f32 %v3025, %v3061
        %v3094 = vadd.f32 %v3026, %v3062
        %v3095 = vadd.f32 %v3027, %v3063
        %v3096 = vadd.f32 %v3028, %v3064
        %v3097 = vadd.f32 %v3029, %v3065
        %v3098 = vadd.f32 %v3030, %v3066
        %v3099 = vadd.f32 %v3031, %v3067
        %v3100 = vadd.f32 %v3032, %v3068
        %v3101 = vadd.f32 %v3033, %v3069
        %v3102 = vadd.f32 %v3034, %v3070
        %v3103 = vadd.f32 %v3035, %v3071
        %v3104 = vlaneseq
        %v3105 = vshrl.u32 %v3104, 7
        %v3106 = vsub.s32 1, %v3105
        %v3107 = vrot.slane %v2014, %v3106
        %v3108 = vmul.f32 %v904, %v3107
        %v3109 = vmul.f32 %v905, %v3107
        %v3110 = vmul.f32 %v906, %v3107
        %v3111 = vmul.f32 %v907, %v3107
        %v3112 = vmul.f32 %v908, %v3107
        %v3113 = vmul.f32 %v909, %v3107
        %v3114 = vmul.f32 %v910, %v3107
        %v3115 = vmul.f32 %v911, %v3107
        %v3116 = vmul.f32 %v912, %v3107
        %v3117 = vmul.f32 %v913, %v3107
        %v3118 = vmul.f32 %v914, %v3107
        %v3119 = vmul.f32 %v915, %v3107
        %v3120 = vmul.f32 %v916, %v3107
        %v3121 = vmul.f32 %v917, %v3107
        %v3122 = vmul.f32 %v918, %v3107
        %v3123 = vmul.f32 %v919, %v3107
        %v3124 = vmul.f32 %v920, %v3107
        %v3125 = vmul.f32 %v921, %v3107
        %v3126 = vmul.f32 %v922, %v3107
        %v3127 = vmul.f32 %v923, %v3107
        %v3128 = vmul.f32 %v924, %v3107
        %v3129 = vmul.f32 %v925, %v3107
        %v3130 = vmul.f32 %v926, %v3107
        %v3131 = vmul.f32 %v927, %v3107
        %v3132 = vmul.f32 %v928, %v3107
        %v3133 = vmul.f32 %v929, %v3107
        %v3134 = vmul.f32 %v930, %v3107
        %v3135 = vmul.f32 %v931, %v3107
        %v3136 = vmul.f32 %v932, %v3107
        %v3137 = vmul.f32 %v933, %v3107
        %v3138 = vmul.f32 %v934, %v3107
        %v3139 = vmul.f32 %v935, %v3107
        %v3140 = vadd.f32 %v3072, %v3108
        %v3141 = vadd.f32 %v3073, %v3109
        %v3142 = vadd.f32 %v3074, %v3110
        %v3143 = vadd.f32 %v3075, %v3111
        %v3144 = vadd.f32 %v3076, %v3112
        %v3145 = vadd.f32 %v3077, %v3113
        %v3146 = vadd.f32 %v3078, %v3114
        %v3147 = vadd.f32 %v3079, %v3115
        %v3148 = vadd.f32 %v3080, %v3116
        %v3149 = vadd.f32 %v3081, %v3117
        %v3150 = vadd.f32 %v3082, %v3118
        %v3151 = vadd.f32 %v3083, %v3119
        %v3152 = vadd.f32 %v3084, %v3120
        %v3153 = vadd.f32 %v3085, %v3121
        %v3154 = vadd.f32 %v3086, %v3122
        %v3155 = vadd.f32 %v3087, %v3123
        %v3156 = vadd.f32 %v3088, %v3124
        %v3157 = vadd.f32 %v3089, %v3125
        %v3158 = vadd.f32 %v3090, %v3126
        %v3159 = vadd.f32 %v3091, %v3127
        %v3160 = vadd.f32 %v3092, %v3128
        %v3161 = vadd.f32 %v3093, %v3129
        %v3162 = vadd.f32 %v3094, %v3130
        %v3163 = vadd.f32 %v3095, %v3131
        %v3164 = vadd.f32 %v3096, %v3132
        %v3165 = vadd.f32 %v3097, %v3133
        %v3166 = vadd.f32 %v3098, %v3134
        %v3167 = vadd.f32 %v3099, %v3135
        %v3168 = vadd.f32 %v3100, %v3136
        %v3169 = vadd.f32 %v3101, %v3137
        %v3170 = vadd.f32 %v3102, %v3138
        %v3171 = vadd.f32 %v3103, %v3139
        %v3172 = vlaneseq
        %v3173 = vshrl.u32 %v3172, 7
        %v3174 = vsub.s32 2, %v3173
        %v3175 = vrot.slane %v2014, %v3174
        %v3176 = vmul.f32 %v944, %v3175
        %v3177 = vmul.f32 %v945, %v3175
        %v3178 = vmul.f32 %v946, %v3175
        %v3179 = vmul.f32 %v947, %v3175
        %v3180 = vmul.f32 %v948, %v3175
        %v3181 = vmul.f32 %v949, %v3175
        %v3182 = vmul.f32 %v950, %v3175
        %v3183 = vmul.f32 %v951, %v3175
        %v3184 = vmul.f32 %v952, %v3175
        %v3185 = vmul.f32 %v953, %v3175
        %v3186 = vmul.f32 %v954, %v3175
        %v3187 = vmul.f32 %v955, %v3175
        %v3188 = vmul.f32 %v956, %v3175
        %v3189 = vmul.f32 %v957, %v3175
        %v3190 = vmul.f32 %v958, %v3175
        %v3191 = vmul.f32 %v959, %v3175
        %v3192 = vmul.f32 %v960, %v3175
        %v3193 = vmul.f32 %v961, %v3175
        %v3194 = vmul.f32 %v962, %v3175
        %v3195 = vmul.f32 %v963, %v3175
        %v3196 = vmul.f32 %v964, %v3175
        %v3197 = vmul.f32 %v965, %v3175
        %v3198 = vmul.f32 %v966, %v3175
        %v3199 = vmul.f32 %v967, %v3175
        %v3200 = vmul.f32 %v968, %v3175
        %v3201 = vmul.f32 %v969, %v3175
        %v3202 = vmul.f32 %v970, %v3175
        %v3203 = vmul.f32 %v971, %v3175
        %v3204 = vmul.f32 %v972, %v3175
        %v3205 = vmul.f32 %v973, %v3175
        %v3206 = vmul.f32 %v974, %v3175
        %v3207 = vmul.f32 %v975, %v3175
        %v3208 = vadd.f32 %v3140, %v3176
        %v3209 = vadd.f32 %v3141, %v3177
        %v3210 = vadd.f32 %v3142, %v3178
        %v3211 = vadd.f32 %v3143, %v3179
        %v3212 = vadd.f32 %v3144, %v3180
        %v3213 = vadd.f32 %v3145, %v3181
        %v3214 = vadd.f32 %v3146, %v3182
        %v3215 = vadd.f32 %v3147, %v3183
        %v3216 = vadd.f32 %v3148, %v3184
        %v3217 = vadd.f32 %v3149, %v3185
        %v3218 = vadd.f32 %v3150, %v3186
        %v3219 = vadd.f32 %v3151, %v3187
        %v3220 = vadd.f32 %v3152, %v3188
        %v3221 = vadd.f32 %v3153, %v3189
        %v3222 = vadd.f32 %v3154, %v3190
        %v3223 = vadd.f32 %v3155, %v3191
        %v3224 = vadd.f32 %v3156, %v3192
        %v3225 = vadd.f32 %v3157, %v3193
        %v3226 = vadd.f32 %v3158, %v3194
        %v3227 = vadd.f32 %v3159, %v3195
        %v3228 = vadd.f32 %v3160, %v3196
        %v3229 = vadd.f32 %v3161, %v3197
        %v3230 = vadd.f32 %v3162, %v3198
        %v3231 = vadd.f32 %v3163, %v3199
        %v3232 = vadd.f32 %v3164, %v3200
        %v3233 = vadd.f32 %v3165, %v3201
        %v3234 = vadd.f32 %v3166, %v3202
        %v3235 = vadd.f32 %v3167, %v3203
        %v3236 = vadd.f32 %v3168, %v3204
        %v3237 = vadd.f32 %v3169, %v3205
        %v3238 = vadd.f32 %v3170, %v3206
        %v3239 = vadd.f32 %v3171, %v3207
        %v3240 = vlaneseq
        %v3241 = vshrl.u32 %v3240, 7
        %v3242 = vsub.s32 3, %v3241
        %v3243 = vrot.slane %v2014, %v3242
        %v3244 = vmul.f32 %v984, %v3243
        %v3245 = vmul.f32 %v985, %v3243
        %v3246 = vmul.f32 %v986, %v3243
        %v3247 = vmul.f32 %v987, %v3243
        %v3248 = vmul.f32 %v988, %v3243
        %v3249 = vmul.f32 %v989, %v3243
        %v3250 = vmul.f32 %v990, %v3243
        %v3251 = vmul.f32 %v991, %v3243
        %v3252 = vmul.f32 %v992, %v3243
        %v3253 = vmul.f32 %v993, %v3243
        %v3254 = vmul.f32 %v994, %v3243
        %v3255 = vmul.f32 %v995, %v3243
        %v3256 = vmul.f32 %v996, %v3243
        %v3257 = vmul.f32 %v997, %v3243
        %v3258 = vmul.f32 %v998, %v3243
        %v3259 = vmul.f32 %v999, %v3243
        %v3260 = vmul.f32 %v1000, %v3243
        %v3261 = vmul.f32 %v1001, %v3243
        %v3262 = vmul.f32 %v1002, %v3243
        %v3263 = vmul.f32 %v1003, %v3243
        %v3264 = vmul.f32 %v1004, %v3243
        %v3265 = vmul.f32 %v1005, %v3243
        %v3266 = vmul.f32 %v1006, %v3243
        %v3267 = vmul.f32 %v1007, %v3243
        %v3268 = vmul.f32 %v1008, %v3243
        %v3269 = vmul.f32 %v1009, %v3243
        %v3270 = vmul.f32 %v1010, %v3243
        %v3271 = vmul.f32 %v1011, %v3243
        %v3272 = vmul.f32 %v1012, %v3243
        %v3273 = vmul.f32 %v1013, %v3243
        %v3274 = vmul.f32 %v1014, %v3243
        %v3275 = vmul.f32 %v1015, %v3243
        %v3276 = vadd.f32 %v3208, %v3244
        %v3277 = vadd.f32 %v3209, %v3245
        %v3278 = vadd.f32 %v3210, %v3246
        %v3279 = vadd.f32 %v3211, %v3247
        %v3280 = vadd.f32 %v3212, %v3248
        %v3281 = vadd.f32 %v3213, %v3249
        %v3282 = vadd.f32 %v3214, %v3250
        %v3283 = vadd.f32 %v3215, %v3251
        %v3284 = vadd.f32 %v3216, %v3252
        %v3285 = vadd.f32 %v3217, %v3253
        %v3286 = vadd.f32 %v3218, %v3254
        %v3287 = vadd.f32 %v3219, %v3255
        %v3288 = vadd.f32 %v3220, %v3256
        %v3289 = vadd.f32 %v3221, %v3257
        %v3290 = vadd.f32 %v3222, %v3258
        %v3291 = vadd.f32 %v3223, %v3259
        %v3292 = vadd.f32 %v3224, %v3260
        %v3293 = vadd.f32 %v3225, %v3261
        %v3294 = vadd.f32 %v3226, %v3262
        %v3295 = vadd.f32 %v3227, %v3263
        %v3296 = vadd.f32 %v3228, %v3264
        %v3297 = vadd.f32 %v3229, %v3265
        %v3298 = vadd.f32 %v3230, %v3266
        %v3299 = vadd.f32 %v3231, %v3267
        %v3300 = vadd.f32 %v3232, %v3268
        %v3301 = vadd.f32 %v3233, %v3269
        %v3302 = vadd.f32 %v3234, %v3270
        %v3303 = vadd.f32 %v3235, %v3271
        %v3304 = vadd.f32 %v3236, %v3272
        %v3305 = vadd.f32 %v3237, %v3273
        %v3306 = vadd.f32 %v3238, %v3274
        %v3307 = vadd.f32 %v3239, %v3275
        %v3308 = vlaneseq
        %v3309 = vshrl.u32 %v3308, 7
        %v3310 = vsub.s32 4, %v3309
        %v3311 = vrot.slane %v2014, %v3310
        %v3312 = vmul.f32 %v1024, %v3311
        %v3313 = vmul.f32 %v1025, %v3311
        %v3314 = vmul.f32 %v1026, %v3311
        %v3315 = vmul.f32 %v1027, %v3311
        %v3316 = vmul.f32 %v1028, %v3311
        %v3317 = vmul.f32 %v1029, %v3311
        %v3318 = vmul.f32 %v1030, %v3311
        %v3319 = vmul.f32 %v1031, %v3311
        %v3320 = vmul.f32 %v1032, %v3311
        %v3321 = vmul.f32 %v1033, %v3311
        %v3322 = vmul.f32 %v1034, %v3311
        %v3323 = vmul.f32 %v1035, %v3311
        %v3324 = vmul.f32 %v1036, %v3311
        %v3325 = vmul.f32 %v1037, %v3311
        %v3326 = vmul.f32 %v1038, %v3311
        %v3327 = vmul.f32 %v1039, %v3311
        %v3328 = vmul.f32 %v1040, %v3311
        %v3329 = vmul.f32 %v1041, %v3311
        %v3330 = vmul.f32 %v1042, %v3311
        %v3331 = vmul.f32 %v1043, %v3311
        %v3332 = vmul.f32 %v1044, %v3311
        %v3333 = vmul.f32 %v1045, %v3311
        %v3334 = vmul.f32 %v1046, %v3311
        %v3335 = vmul.f32 %v1047, %v3311
        %v3336 = vmul.f32 %v1048, %v3311
        %v3337 = vmul.f32 %v1049, %v3311
        %v3338 = vmul.f32 %v1050, %v3311
        %v3339 = vmul.f32 %v1051, %v3311
        %v3340 = vmul.f32 %v1052, %v3311
        %v3341 = vmul.f32 %v1053, %v3311
        %v3342 = vmul.f32 %v1054, %v3311
        %v3343 = vmul.f32 %v1055, %v3311
        %v3344 = vadd.f32 %v3276, %v3312
        %v3345 = vadd.f32 %v3277, %v3313
        %v3346 = vadd.f32 %v3278, %v3314
        %v3347 = vadd.f32 %v3279, %v3315
        %v3348 = vadd.f32 %v3280, %v3316
        %v3349 = vadd.f32 %v3281, %v3317
        %v3350 = vadd.f32 %v3282, %v3318
        %v3351 = vadd.f32 %v3283, %v3319
        %v3352 = vadd.f32 %v3284, %v3320
        %v3353 = vadd.f32 %v3285, %v3321
        %v3354 = vadd.f32 %v3286, %v3322
        %v3355 = vadd.f32 %v3287, %v3323
        %v3356 = vadd.f32 %v3288, %v3324
        %v3357 = vadd.f32 %v3289, %v3325
        %v3358 = vadd.f32 %v3290, %v3326
        %v3359 = vadd.f32 %v3291, %v3327
        %v3360 = vadd.f32 %v3292, %v3328
        %v3361 = vadd.f32 %v3293, %v3329
        %v3362 = vadd.f32 %v3294, %v3330
        %v3363 = vadd.f32 %v3295, %v3331
        %v3364 = vadd.f32 %v3296, %v3332
        %v3365 = vadd.f32 %v3297, %v3333
        %v3366 = vadd.f32 %v3298, %v3334
        %v3367 = vadd.f32 %v3299, %v3335
        %v3368 = vadd.f32 %v3300, %v3336
        %v3369 = vadd.f32 %v3301, %v3337
        %v3370 = vadd.f32 %v3302, %v3338
        %v3371 = vadd.f32 %v3303, %v3339
        %v3372 = vadd.f32 %v3304, %v3340
        %v3373 = vadd.f32 %v3305, %v3341
        %v3374 = vadd.f32 %v3306, %v3342
        %v3375 = vadd.f32 %v3307, %v3343
        %v3376 = vlaneseq
        %v3377 = vshrl.u32 %v3376, 7
        %v3378 = vsub.s32 0, %v3377
        %v3379 = vrot.slane %v2015, %v3378
        %v3380 = vmul.f32 %v866, %v3379
        %v3381 = vmul.f32 %v867, %v3379
        %v3382 = vmul.f32 %v868, %v3379
        %v3383 = vmul.f32 %v869, %v3379
        %v3384 = vmul.f32 %v870, %v3379
        %v3385 = vmul.f32 %v871, %v3379
        %v3386 = vmul.f32 %v872, %v3379
        %v3387 = vmul.f32 %v873, %v3379
        %v3388 = vmul.f32 %v874, %v3379
        %v3389 = vmul.f32 %v875, %v3379
        %v3390 = vmul.f32 %v876, %v3379
        %v3391 = vmul.f32 %v877, %v3379
        %v3392 = vmul.f32 %v878, %v3379
        %v3393 = vmul.f32 %v879, %v3379
        %v3394 = vmul.f32 %v880, %v3379
        %v3395 = vmul.f32 %v881, %v3379
        %v3396 = vmul.f32 %v882, %v3379
        %v3397 = vmul.f32 %v883, %v3379
        %v3398 = vmul.f32 %v884, %v3379
        %v3399 = vmul.f32 %v885, %v3379
        %v3400 = vmul.f32 %v886, %v3379
        %v3401 = vmul.f32 %v887, %v3379
        %v3402 = vmul.f32 %v888, %v3379
        %v3403 = vmul.f32 %v889, %v3379
        %v3404 = vmul.f32 %v890, %v3379
        %v3405 = vmul.f32 %v891, %v3379
        %v3406 = vmul.f32 %v892, %v3379
        %v3407 = vmul.f32 %v893, %v3379
        %v3408 = vmul.f32 %v894, %v3379
        %v3409 = vmul.f32 %v895, %v3379
        %v3410 = vmul.f32 %v896, %v3379
        %v3411 = vmul.f32 %v897, %v3379
        %v3412 = vadd.f32 %v3344, %v3380
        %v3413 = vadd.f32 %v3345, %v3381
        %v3414 = vadd.f32 %v3346, %v3382
        %v3415 = vadd.f32 %v3347, %v3383
        %v3416 = vadd.f32 %v3348, %v3384
        %v3417 = vadd.f32 %v3349, %v3385
        %v3418 = vadd.f32 %v3350, %v3386
        %v3419 = vadd.f32 %v3351, %v3387
        %v3420 = vadd.f32 %v3352, %v3388
        %v3421 = vadd.f32 %v3353, %v3389
        %v3422 = vadd.f32 %v3354, %v3390
        %v3423 = vadd.f32 %v3355, %v3391
        %v3424 = vadd.f32 %v3356, %v3392
        %v3425 = vadd.f32 %v3357, %v3393
        %v3426 = vadd.f32 %v3358, %v3394
        %v3427 = vadd.f32 %v3359, %v3395
        %v3428 = vadd.f32 %v3360, %v3396
        %v3429 = vadd.f32 %v3361, %v3397
        %v3430 = vadd.f32 %v3362, %v3398
        %v3431 = vadd.f32 %v3363, %v3399
        %v3432 = vadd.f32 %v3364, %v3400
        %v3433 = vadd.f32 %v3365, %v3401
        %v3434 = vadd.f32 %v3366, %v3402
        %v3435 = vadd.f32 %v3367, %v3403
        %v3436 = vadd.f32 %v3368, %v3404
        %v3437 = vadd.f32 %v3369, %v3405
        %v3438 = vadd.f32 %v3370, %v3406
        %v3439 = vadd.f32 %v3371, %v3407
        %v3440 = vadd.f32 %v3372, %v3408
        %v3441 = vadd.f32 %v3373, %v3409
        %v3442 = vadd.f32 %v3374, %v3410
        %v3443 = vadd.f32 %v3375, %v3411
        %v3444 = vlaneseq
        %v3445 = vshrl.u32 %v3444, 7
        %v3446 = vsub.s32 1, %v3445
        %v3447 = vrot.slane %v2015, %v3446
        %v3448 = vmul.f32 %v906, %v3447
        %v3449 = vmul.f32 %v907, %v3447
        %v3450 = vmul.f32 %v908, %v3447
        %v3451 = vmul.f32 %v909, %v3447
        %v3452 = vmul.f32 %v910, %v3447
        %v3453 = vmul.f32 %v911, %v3447
        %v3454 = vmul.f32 %v912, %v3447
        %v3455 = vmul.f32 %v913, %v3447
        %v3456 = vmul.f32 %v914, %v3447
        %v3457 = vmul.f32 %v915, %v3447
        %v3458 = vmul.f32 %v916, %v3447
        %v3459 = vmul.f32 %v917, %v3447
        %v3460 = vmul.f32 %v918, %v3447
        %v3461 = vmul.f32 %v919, %v3447
        %v3462 = vmul.f32 %v920, %v3447
        %v3463 = vmul.f32 %v921, %v3447
        %v3464 = vmul.f32 %v922, %v3447
        %v3465 = vmul.f32 %v923, %v3447
        %v3466 = vmul.f32 %v924, %v3447
        %v3467 = vmul.f32 %v925, %v3447
        %v3468 = vmul.f32 %v926, %v3447
        %v3469 = vmul.f32 %v927, %v3447
        %v3470 = vmul.f32 %v928, %v3447
        %v3471 = vmul.f32 %v929, %v3447
        %v3472 = vmul.f32 %v930, %v3447
        %v3473 = vmul.f32 %v931, %v3447
        %v3474 = vmul.f32 %v932, %v3447
        %v3475 = vmul.f32 %v933, %v3447
        %v3476 = vmul.f32 %v934, %v3447
        %v3477 = vmul.f32 %v935, %v3447
        %v3478 = vmul.f32 %v936, %v3447
        %v3479 = vmul.f32 %v937, %v3447
        %v3480 = vadd.f32 %v3412, %v3448
        %v3481 = vadd.f32 %v3413, %v3449
        %v3482 = vadd.f32 %v3414, %v3450
        %v3483 = vadd.f32 %v3415, %v3451
        %v3484 = vadd.f32 %v3416, %v3452
        %v3485 = vadd.f32 %v3417, %v3453
        %v3486 = vadd.f32 %v3418, %v3454
        %v3487 = vadd.f32 %v3419, %v3455
        %v3488 = vadd.f32 %v3420, %v3456
        %v3489 = vadd.f32 %v3421, %v3457
        %v3490 = vadd.f32 %v3422, %v3458
        %v3491 = vadd.f32 %v3423, %v3459
        %v3492 = vadd.f32 %v3424, %v3460
        %v3493 = vadd.f32 %v3425, %v3461
        %v3494 = vadd.f32 %v3426, %v3462
        %v3495 = vadd.f32 %v3427, %v3463
        %v3496 = vadd.f32 %v3428, %v3464
        %v3497 = vadd.f32 %v3429, %v3465
        %v3498 = vadd.f32 %v3430, %v3466
        %v3499 = vadd.f32 %v3431, %v3467
        %v3500 = vadd.f32 %v3432, %v3468
        %v3501 = vadd.f32 %v3433, %v3469
        %v3502 = vadd.f32 %v3434, %v3470
        %v3503 = vadd.f32 %v3435, %v3471
        %v3504 = vadd.f32 %v3436, %v3472
        %v3505 = vadd.f32 %v3437, %v3473
        %v3506 = vadd.f32 %v3438, %v3474
        %v3507 = vadd.f32 %v3439, %v3475
        %v3508 = vadd.f32 %v3440, %v3476
        %v3509 = vadd.f32 %v3441, %v3477
        %v3510 = vadd.f32 %v3442, %v3478
        %v3511 = vadd.f32 %v3443, %v3479
        %v3512 = vlaneseq
        %v3513 = vshrl.u32 %v3512, 7
        %v3514 = vsub.s32 2, %v3513
        %v3515 = vrot.slane %v2015, %v3514
        %v3516 = vmul.f32 %v946, %v3515
        %v3517 = vmul.f32 %v947, %v3515
        %v3518 = vmul.f32 %v948, %v3515
        %v3519 = vmul.f32 %v949, %v3515
        %v3520 = vmul.f32 %v950, %v3515
        %v3521 = vmul.f32 %v951, %v3515
        %v3522 = vmul.f32 %v952, %v3515
        %v3523 = vmul.f32 %v953, %v3515
        %v3524 = vmul.f32 %v954, %v3515
        %v3525 = vmul.f32 %v955, %v3515
        %v3526 = vmul.f32 %v956, %v3515
        %v3527 = vmul.f32 %v957, %v3515
        %v3528 = vmul.f32 %v958, %v3515
        %v3529 = vmul.f32 %v959, %v3515
        %v3530 = vmul.f32 %v960, %v3515
        %v3531 = vmul.f32 %v961, %v3515
        %v3532 = vmul.f32 %v962, %v3515
        %v3533 = vmul.f32 %v963, %v3515
        %v3534 = vmul.f32 %v964, %v3515
        %v3535 = vmul.f32 %v965, %v3515
        %v3536 = vmul.f32 %v966, %v3515
        %v3537 = vmul.f32 %v967, %v3515
        %v3538 = vmul.f32 %v968, %v3515
        %v3539 = vmul.f32 %v969, %v3515
        %v3540 = vmul.f32 %v970, %v3515
        %v3541 = vmul.f32 %v971, %v3515
        %v3542 = vmul.f32 %v972, %v3515
        %v3543 = vmul.f32 %v973, %v3515
        %v3544 = vmul.f32 %v974, %v3515
        %v3545 = vmul.f32 %v975, %v3515
        %v3546 = vmul.f32 %v976, %v3515
        %v3547 = vmul.f32 %v977, %v3515
        %v3548 = vadd.f32 %v3480, %v3516
        %v3549 = vadd.f32 %v3481, %v3517
        %v3550 = vadd.f32 %v3482, %v3518
        %v3551 = vadd.f32 %v3483, %v3519
        %v3552 = vadd.f32 %v3484, %v3520
        %v3553 = vadd.f32 %v3485, %v3521
        %v3554 = vadd.f32 %v3486, %v3522
        %v3555 = vadd.f32 %v3487, %v3523
        %v3556 = vadd.f32 %v3488, %v3524
        %v3557 = vadd.f32 %v3489, %v3525
        %v3558 = vadd.f32 %v3490, %v3526
        %v3559 = vadd.f32 %v3491, %v3527
        %v3560 = vadd.f32 %v3492, %v3528
        %v3561 = vadd.f32 %v3493, %v3529
        %v3562 = vadd.f32 %v3494, %v3530
        %v3563 = vadd.f32 %v3495, %v3531
        %v3564 = vadd.f32 %v3496, %v3532
        %v3565 = vadd.f32 %v3497, %v3533
        %v3566 = vadd.f32 %v3498, %v3534
        %v3567 = vadd.f32 %v3499, %v3535
        %v3568 = vadd.f32 %v3500, %v3536
        %v3569 = vadd.f32 %v3501, %v3537
        %v3570 = vadd.f32 %v3502, %v3538
        %v3571 = vadd.f32 %v3503, %v3539
        %v3572 = vadd.f32 %v3504, %v3540
        %v3573 = vadd.f32 %v3505, %v3541
        %v3574 = vadd.f32 %v3506, %v3542
        %v3575 = vadd.f32 %v3507, %v3543
        %v3576 = vadd.f32 %v3508, %v3544
        %v3577 = vadd.f32 %v3509, %v3545
        %v3578 = vadd.f32 %v3510, %v3546
        %v3579 = vadd.f32 %v3511, %v3547
        %v3580 = vlaneseq
        %v3581 = vshrl.u32 %v3580, 7
        %v3582 = vsub.s32 3, %v3581
        %v3583 = vrot.slane %v2015, %v3582
        %v3584 = vmul.f32 %v986, %v3583
        %v3585 = vmul.f32 %v987, %v3583
        %v3586 = vmul.f32 %v988, %v3583
        %v3587 = vmul.f32 %v989, %v3583
        %v3588 = vmul.f32 %v990, %v3583
        %v3589 = vmul.f32 %v991, %v3583
        %v3590 = vmul.f32 %v992, %v3583
        %v3591 = vmul.f32 %v993, %v3583
        %v3592 = vmul.f32 %v994, %v3583
        %v3593 = vmul.f32 %v995, %v3583
        %v3594 = vmul.f32 %v996, %v3583
        %v3595 = vmul.f32 %v997, %v3583
        %v3596 = vmul.f32 %v998, %v3583
        %v3597 = vmul.f32 %v999, %v3583
        %v3598 = vmul.f32 %v1000, %v3583
        %v3599 = vmul.f32 %v1001, %v3583
        %v3600 = vmul.f32 %v1002, %v3583
        %v3601 = vmul.f32 %v1003, %v3583
        %v3602 = vmul.f32 %v1004, %v3583
        %v3603 = vmul.f32 %v1005, %v3583
        %v3604 = vmul.f32 %v1006, %v3583
        %v3605 = vmul.f32 %v1007, %v3583
        %v3606 = vmul.f32 %v1008, %v3583
        %v3607 = vmul.f32 %v1009, %v3583
        %v3608 = vmul.f32 %v1010, %v3583
        %v3609 = vmul.f32 %v1011, %v3583
        %v3610 = vmul.f32 %v1012, %v3583
        %v3611 = vmul.f32 %v1013, %v3583
        %v3612 = vmul.f32 %v1014, %v3583
        %v3613 = vmul.f32 %v1015, %v3583
        %v3614 = vmul.f32 %v1016, %v3583
        %v3615 = vmul.f32 %v1017, %v3583
        %v3616 = vadd.f32 %v3548, %v3584
        %v3617 = vadd.f32 %v3549, %v3585
        %v3618 = vadd.f32 %v3550, %v3586
        %v3619 = vadd.f32 %v3551, %v3587
        %v3620 = vadd.f32 %v3552, %v3588
        %v3621 = vadd.f32 %v3553, %v3589
        %v3622 = vadd.f32 %v3554, %v3590
        %v3623 = vadd.f32 %v3555, %v3591
        %v3624 = vadd.f32 %v3556, %v3592
        %v3625 = vadd.f32 %v3557, %v3593
        %v3626 = vadd.f32 %v3558, %v3594
        %v3627 = vadd.f32 %v3559, %v3595
        %v3628 = vadd.f32 %v3560, %v3596
        %v3629 = vadd.f32 %v3561, %v3597
        %v3630 = vadd.f32 %v3562, %v3598
        %v3631 = vadd.f32 %v3563, %v3599
        %v3632 = vadd.f32 %v3564, %v3600
        %v3633 = vadd.f32 %v3565, %v3601
        %v3634 = vadd.f32 %v3566, %v3602
        %v3635 = vadd.f32 %v3567, %v3603
        %v3636 = vadd.f32 %v3568, %v3604
        %v3637 = vadd.f32 %v3569, %v3605
        %v3638 = vadd.f32 %v3570, %v3606
        %v3639 = vadd.f32 %v3571, %v3607
        %v3640 = vadd.f32 %v3572, %v3608
        %v3641 = vadd.f32 %v3573, %v3609
        %v3642 = vadd.f32 %v3574, %v3610
        %v3643 = vadd.f32 %v3575, %v3611
        %v3644 = vadd.f32 %v3576, %v3612
        %v3645 = vadd.f32 %v3577, %v3613
        %v3646 = vadd.f32 %v3578, %v3614
        %v3647 = vadd.f32 %v3579, %v3615
        %v3648 = vlaneseq
        %v3649 = vshrl.u32 %v3648, 7
        %v3650 = vsub.s32 4, %v3649
        %v3651 = vrot.slane %v2015, %v3650
        %v3652 = vmul.f32 %v1026, %v3651
        %v3653 = vmul.f32 %v1027, %v3651
        %v3654 = vmul.f32 %v1028, %v3651
        %v3655 = vmul.f32 %v1029, %v3651
        %v3656 = vmul.f32 %v1030, %v3651
        %v3657 = vmul.f32 %v1031, %v3651
        %v3658 = vmul.f32 %v1032, %v3651
        %v3659 = vmul.f32 %v1033, %v3651
        %v3660 = vmul.f32 %v1034, %v3651
        %v3661 = vmul.f32 %v1035, %v3651
        %v3662 = vmul.f32 %v1036, %v3651
        %v3663 = vmul.f32 %v1037, %v3651
        %v3664 = vmul.f32 %v1038, %v3651
        %v3665 = vmul.f32 %v1039, %v3651
        %v3666 = vmul.f32 %v1040, %v3651
        %v3667 = vmul.f32 %v1041, %v3651
        %v3668 = vmul.f32 %v1042, %v3651
        %v3669 = vmul.f32 %v1043, %v3651
        %v3670 = vmul.f32 %v1044, %v3651
        %v3671 = vmul.f32 %v1045, %v3651
        %v3672 = vmul.f32 %v1046, %v3651
        %v3673 = vmul.f32 %v1047, %v3651
        %v3674 = vmul.f32 %v1048, %v3651
        %v3675 = vmul.f32 %v1049, %v3651
        %v3676 = vmul.f32 %v1050, %v3651
        %v3677 = vmul.f32 %v1051, %v3651
        %v3678 = vmul.f32 %v1052, %v3651
        %v3679 = vmul.f32 %v1053, %v3651
        %v3680 = vmul.f32 %v1054, %v3651
        %v3681 = vmul.f32 %v1055, %v3651
        %v3682 = vmul.f32 %v1056, %v3651
        %v3683 = vmul.f32 %v1057, %v3651
        %v3684 = vadd.f32 %v3616, %v3652
        %v3685 = vadd.f32 %v3617, %v3653
        %v3686 = vadd.f32 %v3618, %v3654
        %v3687 = vadd.f32 %v3619, %v3655
        %v3688 = vadd.f32 %v3620, %v3656
        %v3689 = vadd.f32 %v3621, %v3657
        %v3690 = vadd.f32 %v3622, %v3658
        %v3691 = vadd.f32 %v3623, %v3659
        %v3692 = vadd.f32 %v3624, %v3660
        %v3693 = vadd.f32 %v3625, %v3661
        %v3694 = vadd.f32 %v3626, %v3662
        %v3695 = vadd.f32 %v3627, %v3663
        %v3696 = vadd.f32 %v3628, %v3664
        %v3697 = vadd.f32 %v3629, %v3665
        %v3698 = vadd.f32 %v3630, %v3666
        %v3699 = vadd.f32 %v3631, %v3667
        %v3700 = vadd.f32 %v3632, %v3668
        %v3701 = vadd.f32 %v3633, %v3669
        %v3702 = vadd.f32 %v3634, %v3670
        %v3703 = vadd.f32 %v3635, %v3671
        %v3704 = vadd.f32 %v3636, %v3672
        %v3705 = vadd.f32 %v3637, %v3673
        %v3706 = vadd.f32 %v3638, %v3674
        %v3707 = vadd.f32 %v3639, %v3675
        %v3708 = vadd.f32 %v3640, %v3676
        %v3709 = vadd.f32 %v3641, %v3677
        %v3710 = vadd.f32 %v3642, %v3678
        %v3711 = vadd.f32 %v3643, %v3679
        %v3712 = vadd.f32 %v3644, %v3680
        %v3713 = vadd.f32 %v3645, %v3681
        %v3714 = vadd.f32 %v3646, %v3682
        %v3715 = vadd.f32 %v3647, %v3683
        %v3716 = vld [vmem:[#allocation3] sm:$0xff]
        %v3717 = vld [vmem:[#allocation3 + $0x8] sm:$0xff]
        %v3718 = vld [vmem:[#allocation3 + $0x10] sm:$0xff]
        %v3719 = vld [vmem:[#allocation3 + $0x18] sm:$0xff]
        %v3720 = vld [vmem:[#allocation3 + $0x20] sm:$0xff]
        %v3721 = vld [vmem:[#allocation3 + $0x28] sm:$0xff]
        %v3722 = vld [vmem:[#allocation3 + $0x30] sm:$0xff]
        %v3723 = vld [vmem:[#allocation3 + $0x38] sm:$0xff]
        %v3724 = vld [vmem:[#allocation3 + $0x40] sm:$0xff]
        %v3725 = vld [vmem:[#allocation3 + $0x48] sm:$0xff]
        %v3726 = vld [vmem:[#allocation3 + $0x50] sm:$0xff]
        %v3727 = vld [vmem:[#allocation3 + $0x58] sm:$0xff]
        %v3728 = vld [vmem:[#allocation3 + $0x60] sm:$0xff]
        %v3729 = vld [vmem:[#allocation3 + $0x68] sm:$0xff]
        %v3730 = vld [vmem:[#allocation3 + $0x70] sm:$0xff]
        %v3731 = vld [vmem:[#allocation3 + $0x78] sm:$0xff]
        %v3732 = vld [vmem:[#allocation3 + $0x80] sm:$0xff]
        %v3733 = vld [vmem:[#allocation3 + $0x88] sm:$0xff]
        %v3734 = vld [vmem:[#allocation3 + $0x90] sm:$0xff]
        %v3735 = vld [vmem:[#allocation3 + $0x98] sm:$0xff]
        %v3736 = vld [vmem:[#allocation3 + $0xa0] sm:$0xff]
        %v3737 = vld [vmem:[#allocation3 + $0xa8] sm:$0xff]
        %v3738 = vld [vmem:[#allocation3 + $0xb0] sm:$0xff]
        %v3739 = vld [vmem:[#allocation3 + $0xb8] sm:$0xff]
        %v3740 = vld [vmem:[#allocation3 + $0xc0] sm:$0xff]
        %v3741 = vld [vmem:[#allocation3 + $0xc8] sm:$0xff]
        %v3742 = vld [vmem:[#allocation3 + $0xd0] sm:$0xff]
        %v3743 = vld [vmem:[#allocation3 + $0xd8] sm:$0xff]
        %v3744 = vld [vmem:[#allocation3 + $0xe0] sm:$0xff]
        %v3745 = vld [vmem:[#allocation3 + $0xe8] sm:$0xff]
        %v3746 = vld [vmem:[#allocation3 + $0xf0] sm:$0xff]
        %v3747 = vld [vmem:[#allocation3 + $0xf8] sm:$0xff]
        %v3748 = vpack.c.bf16 %v3685, %v3684
        %v3749 = vpack.c.bf16 %v3687, %v3686
        %v3750 = vpack.c.bf16 %v3689, %v3688
        %v3751 = vpack.c.bf16 %v3691, %v3690
        %v3752 = vpack.c.bf16 %v3693, %v3692
        %v3753 = vpack.c.bf16 %v3695, %v3694
        %v3754 = vpack.c.bf16 %v3697, %v3696
        %v3755 = vpack.c.bf16 %v3699, %v3698
        %v3756 = vpack.c.bf16 %v3701, %v3700
        %v3757 = vpack.c.bf16 %v3703, %v3702
        %v3758 = vpack.c.bf16 %v3705, %v3704
        %v3759 = vpack.c.bf16 %v3707, %v3706
        %v3760 = vpack.c.bf16 %v3709, %v3708
        %v3761 = vpack.c.bf16 %v3711, %v3710
        %v3762 = vpack.c.bf16 %v3713, %v3712
        %v3763 = vpack.c.bf16 %v3715, %v3714
        %s3764 = scalar_lea.vmem [#allocation9], 128
        %v3765 = vld [vmem:[%s3764] sm:$0xf]
        %v3766 = vld [vmem:[%s3764 + $0x4] sm:$0xf]
        %v3767 = vld [vmem:[%s3764 + $0x8] sm:$0xf]
        %v3768 = vld [vmem:[%s3764 + $0xc] sm:$0xf]
        %v3769 = vld [vmem:[%s3764 + $0x10] sm:$0xf]
        %v3770 = vld [vmem:[%s3764 + $0x14] sm:$0xf]
        %v3771 = vld [vmem:[%s3764 + $0x18] sm:$0xf]
        %v3772 = vld [vmem:[%s3764 + $0x1c] sm:$0xf]
        %v3773 = vld [vmem:[%s3764 + $0x20] sm:$0xf]
        %v3774 = vld [vmem:[%s3764 + $0x24] sm:$0xf]
        %v3775 = vld [vmem:[%s3764 + $0x28] sm:$0xf]
        %v3776 = vld [vmem:[%s3764 + $0x2c] sm:$0xf]
        %v3777 = vld [vmem:[%s3764 + $0x30] sm:$0xf]
        %v3778 = vld [vmem:[%s3764 + $0x34] sm:$0xf]
        %v3779 = vld [vmem:[%s3764 + $0x38] sm:$0xf]
        %v3780 = vld [vmem:[%s3764 + $0x3c] sm:$0xf]
        %v3797 = vunpack.c.l.b16 %v3765
        %v3798 = vunpack.c.l.b16 %v3766
        %v3799 = vunpack.c.l.b16 %v3767
        %v3800 = vunpack.c.l.b16 %v3768
        %v3801 = vunpack.c.l.b16 %v3769
        %v3802 = vunpack.c.l.b16 %v3770
        %v3803 = vunpack.c.l.b16 %v3771
        %v3804 = vunpack.c.l.b16 %v3772
        %v3805 = vunpack.c.l.b16 %v3773
        %v3806 = vunpack.c.l.b16 %v3774
        %v3807 = vunpack.c.l.b16 %v3775
        %v3808 = vunpack.c.l.b16 %v3776
        %v3809 = vunpack.c.l.b16 %v3777
        %v3810 = vunpack.c.l.b16 %v3778
        %v3811 = vunpack.c.l.b16 %v3779
        %v3812 = vunpack.c.l.b16 %v3780
        %v3813 = vpack.c.b16 %v3798, %v3797
        %v3814 = vpack.c.b16 %v3800, %v3799
        %v3815 = vpack.c.b16 %v3802, %v3801
        %v3816 = vpack.c.b16 %v3804, %v3803
        %v3817 = vpack.c.b16 %v3806, %v3805
        %v3818 = vpack.c.b16 %v3808, %v3807
        %v3819 = vpack.c.b16 %v3810, %v3809
        %v3820 = vpack.c.b16 %v3812, %v3811
        %3829 = vmatprep.subr.bf16.mxu0 0
        %3830 = vmatpush1.bf16.msra.mxu0 %v3813
        %3831 = vmatprep.subr.bf16.mxu0 0
        %3832 = vmatpush1.bf16.msra.mxu0 %v3814
        %3833 = vmatprep.subr.bf16.mxu0 0
        %3834 = vmatpush1.bf16.msra.mxu0 %v3815
        %3835 = vmatprep.subr.bf16.mxu0 0
        %3836 = vmatpush1.bf16.msra.mxu0 %v3816
        %3837 = vmatprep.subr.bf16.mxu0 0
        %3838 = vmatpush1.bf16.msra.mxu0 %v3817
        %3839 = vmatprep.subr.bf16.mxu0 0
        %3840 = vmatpush1.bf16.msra.mxu0 %v3818
        %3841 = vmatprep.subr.bf16.mxu0 0
        %3842 = vmatpush1.bf16.msra.mxu0 %v3819
        %3843 = vmatprep.subr.bf16.mxu0 0
        %3844 = vmatpush1.bf16.msra.mxu0 %v3820
        %3845 = vmatprep.subr.bf16.mxu0 0
        %3846 = vmatpush1.bf16.msra.mxu0 0
        %3847 = vmatprep.subr.bf16.mxu0 0
        %3848 = vmatpush1.bf16.msra.mxu0 0
        %3849 = vmatprep.subr.bf16.mxu0 0
        %3850 = vmatpush1.bf16.msra.mxu0 0
        %3851 = vmatprep.subr.bf16.mxu0 0
        %3852 = vmatpush1.bf16.msra.mxu0 0
        %3853 = vmatprep.subr.bf16.mxu0 0
        %3854 = vmatpush1.bf16.msra.mxu0 0
        %3855 = vmatprep.subr.bf16.mxu0 0
        %3856 = vmatpush1.bf16.msra.mxu0 0
        %3857 = vmatprep.subr.bf16.mxu0 0
        %3858 = vmatpush1.bf16.msra.mxu0 0
        %3859 = vmatprep.subr.bf16.mxu0 0
        %3860 = vmatpush1.bf16.msra.mxu0 0
        %3861 = vmatprep.mubr.bf16.mxu0 0
        %3862 = vmatmul.mubr.bf16.gmra.mrb[0].mxu0 %v3748
        %v3863 = vpop.f32.mrb[0].mxu0
        %v3864 = vadd.f32 0.0, %v3863
        %v3865 = vpop.f32.mrb[0].mxu0
        %v3866 = vpop.f32.mrb[0].mxu0
        %v3867 = vadd.f32 0.0, %v3866
        %v3868 = vpop.f32.mrb[0].mxu0
        %3869 = vmatprep.mubr.bf16.mxu0 0
        %3870 = vmatmul.mubr.bf16.gmra.mrb[0].mxu0 %v3749
        %v3871 = vpop.f32.mrb[0].mxu0
        %v3872 = vadd.f32 0.0, %v3871
        %v3873 = vpop.f32.mrb[0].mxu0
        %v3874 = vpop.f32.mrb[0].mxu0
        %v3875 = vadd.f32 0.0, %v3874
        %v3876 = vpop.f32.mrb[0].mxu0
        %3877 = vmatprep.mubr.bf16.mxu0 0
        %3878 = vmatmul.mubr.bf16.gmra.mrb[0].mxu0 %v3750
        %v3879 = vpop.f32.mrb[0].mxu0
        %v3880 = vadd.f32 0.0, %v3879
        %v3881 = vpop.f32.mrb[0].mxu0
        %v3882 = vpop.f32.mrb[0].mxu0
        %v3883 = vadd.f32 0.0, %v3882
        %v3884 = vpop.f32.mrb[0].mxu0
        %3885 = vmatprep.mubr.bf16.mxu0 0
        %3886 = vmatmul.mubr.bf16.gmra.mrb[0].mxu0 %v3751
        %v3887 = vpop.f32.mrb[0].mxu0
        %v3888 = vadd.f32 0.0, %v3887
        %v3889 = vpop.f32.mrb[0].mxu0
        %v3890 = vpop.f32.mrb[0].mxu0
        %v3891 = vadd.f32 0.0, %v3890
        %v3892 = vpop.f32.mrb[0].mxu0
        %3893 = vmatprep.mubr.bf16.mxu0 0
        %3894 = vmatmul.mubr.bf16.gmra.mrb[0].mxu0 %v3752
        %v3895 = vpop.f32.mrb[0].mxu0
        %v3896 = vadd.f32 0.0, %v3895
        %v3897 = vpop.f32.mrb[0].mxu0
        %v3898 = vpop.f32.mrb[0].mxu0
        %v3899 = vadd.f32 0.0, %v3898
        %v3900 = vpop.f32.mrb[0].mxu0
        %3901 = vmatprep.mubr.bf16.mxu0 0
        %3902 = vmatmul.mubr.bf16.gmra.mrb[0].mxu0 %v3753
        %v3903 = vpop.f32.mrb[0].mxu0
        %v3904 = vadd.f32 0.0, %v3903
        %v3905 = vpop.f32.mrb[0].mxu0
        %v3906 = vpop.f32.mrb[0].mxu0
        %v3907 = vadd.f32 0.0, %v3906
        %v3908 = vpop.f32.mrb[0].mxu0
        %3909 = vmatprep.mubr.bf16.mxu0 0
        %3910 = vmatmul.mubr.bf16.gmra.mrb[0].mxu0 %v3754
        %v3911 = vpop.f32.mrb[0].mxu0
        %v3912 = vadd.f32 0.0, %v3911
        %v3913 = vpop.f32.mrb[0].mxu0
        %v3914 = vpop.f32.mrb[0].mxu0
        %v3915 = vadd.f32 0.0, %v3914
        %v3916 = vpop.f32.mrb[0].mxu0
        %3917 = vmatprep.mubr.bf16.mxu0 0
        %3918 = vmatmul.mubr.bf16.gmra.mrb[0].mxu0 %v3755
        %v3919 = vpop.f32.mrb[0].mxu0
        %v3920 = vadd.f32 0.0, %v3919
        %v3921 = vpop.f32.mrb[0].mxu0
        %v3922 = vpop.f32.mrb[0].mxu0
        %v3923 = vadd.f32 0.0, %v3922
        %v3924 = vpop.f32.mrb[0].mxu0
        %3925 = vmatprep.mubr.bf16.mxu0 0
        %3926 = vmatmul.mubr.bf16.gmra.mrb[0].mxu0 %v3756
        %v3927 = vpop.f32.mrb[0].mxu0
        %v3928 = vadd.f32 0.0, %v3927
        %v3929 = vpop.f32.mrb[0].mxu0
        %v3930 = vpop.f32.mrb[0].mxu0
        %v3931 = vadd.f32 0.0, %v3930
        %v3932 = vpop.f32.mrb[0].mxu0
        %3933 = vmatprep.mubr.bf16.mxu0 0
        %3934 = vmatmul.mubr.bf16.gmra.mrb[0].mxu0 %v3757
        %v3935 = vpop.f32.mrb[0].mxu0
        %v3936 = vadd.f32 0.0, %v3935
        %v3937 = vpop.f32.mrb[0].mxu0
        %v3938 = vpop.f32.mrb[0].mxu0
        %v3939 = vadd.f32 0.0, %v3938
        %v3940 = vpop.f32.mrb[0].mxu0
        %3941 = vmatprep.mubr.bf16.mxu0 0
        %3942 = vmatmul.mubr.bf16.gmra.mrb[0].mxu0 %v3758
        %v3943 = vpop.f32.mrb[0].mxu0
        %v3944 = vadd.f32 0.0, %v3943
        %v3945 = vpop.f32.mrb[0].mxu0
        %v3946 = vpop.f32.mrb[0].mxu0
        %v3947 = vadd.f32 0.0, %v3946
        %v3948 = vpop.f32.mrb[0].mxu0
        %3949 = vmatprep.mubr.bf16.mxu0 0
        %3950 = vmatmul.mubr.bf16.gmra.mrb[0].mxu0 %v3759
        %v3951 = vpop.f32.mrb[0].mxu0
        %v3952 = vadd.f32 0.0, %v3951
        %v3953 = vpop.f32.mrb[0].mxu0
        %v3954 = vpop.f32.mrb[0].mxu0
        %v3955 = vadd.f32 0.0, %v3954
        %v3956 = vpop.f32.mrb[0].mxu0
        %3957 = vmatprep.mubr.bf16.mxu0 0
        %3958 = vmatmul.mubr.bf16.gmra.mrb[0].mxu0 %v3760
        %v3959 = vpop.f32.mrb[0].mxu0
        %v3960 = vadd.f32 0.0, %v3959
        %v3961 = vpop.f32.mrb[0].mxu0
        %v3962 = vpop.f32.mrb[0].mxu0
        %v3963 = vadd.f32 0.0, %v3962
        %v3964 = vpop.f32.mrb[0].mxu0
        %3965 = vmatprep.mubr.bf16.mxu0 0
        %3966 = vmatmul.mubr.bf16.gmra.mrb[0].mxu0 %v3761
        %v3967 = vpop.f32.mrb[0].mxu0
        %v3968 = vadd.f32 0.0, %v3967
        %v3969 = vpop.f32.mrb[0].mxu0
        %v3970 = vpop.f32.mrb[0].mxu0
        %v3971 = vadd.f32 0.0, %v3970
        %v3972 = vpop.f32.mrb[0].mxu0
        %3973 = vmatprep.mubr.bf16.mxu0 0
        %3974 = vmatmul.mubr.bf16.gmra.mrb[0].mxu0 %v3762
        %v3975 = vpop.f32.mrb[0].mxu0
        %v3976 = vadd.f32 0.0, %v3975
        %v3977 = vpop.f32.mrb[0].mxu0
        %v3978 = vpop.f32.mrb[0].mxu0
        %v3979 = vadd.f32 0.0, %v3978
        %v3980 = vpop.f32.mrb[0].mxu0
        %3981 = vmatprep.mubr.bf16.mxu0 0
        %3982 = vmatmul.mubr.bf16.gmra.mrb[0].mxu0 %v3763
        %v3983 = vpop.f32.mrb[0].mxu0
        %v3984 = vadd.f32 0.0, %v3983
        %v3985 = vpop.f32.mrb[0].mxu0
        %v3986 = vpop.f32.mrb[0].mxu0
        %v3987 = vadd.f32 0.0, %v3986
        %v3988 = vpop.f32.mrb[0].mxu0
        %3989 = vdwg.mxu0
        %v3990 = vadd.f32 %v3716, %v3864
        %v3991 = vadd.f32 %v3717, %v3867
        %v3992 = vadd.f32 %v3718, %v3872
        %v3993 = vadd.f32 %v3719, %v3875
        %v3994 = vadd.f32 %v3720, %v3880
        %v3995 = vadd.f32 %v3721, %v3883
        %v3996 = vadd.f32 %v3722, %v3888
        %v3997 = vadd.f32 %v3723, %v3891
        %v3998 = vadd.f32 %v3724, %v3896
        %v3999 = vadd.f32 %v3725, %v3899
        %v4000 = vadd.f32 %v3726, %v3904
        %v4001 = vadd.f32 %v3727, %v3907
        %v4002 = vadd.f32 %v3728, %v3912
        %v4003 = vadd.f32 %v3729, %v3915
        %v4004 = vadd.f32 %v3730, %v3920
        %v4005 = vadd.f32 %v3731, %v3923
        %v4006 = vadd.f32 %v3732, %v3928
        %v4007 = vadd.f32 %v3733, %v3931
        %v4008 = vadd.f32 %v3734, %v3936
        %v4009 = vadd.f32 %v3735, %v3939
        %v4010 = vadd.f32 %v3736, %v3944
        %v4011 = vadd.f32 %v3737, %v3947
        %v4012 = vadd.f32 %v3738, %v3952
        %v4013 = vadd.f32 %v3739, %v3955
        %v4014 = vadd.f32 %v3740, %v3960
        %v4015 = vadd.f32 %v3741, %v3963
        %v4016 = vadd.f32 %v3742, %v3968
        %v4017 = vadd.f32 %v3743, %v3971
        %v4018 = vadd.f32 %v3744, %v3976
        %v4019 = vadd.f32 %v3745, %v3979
        %v4020 = vadd.f32 %v3746, %v3984
        %v4021 = vadd.f32 %v3747, %v3987
        %4022 = vst [vmem:[#allocation3] sm:$0xff] %v3990
        %4023 = vst [vmem:[#allocation3 + $0x8] sm:$0xff] %v3991
        %4024 = vst [vmem:[#allocation3 + $0x10] sm:$0xff] %v3992
        %4025 = vst [vmem:[#allocation3 + $0x18] sm:$0xff] %v3993
        %4026 = vst [vmem:[#allocation3 + $0x20] sm:$0xff] %v3994
        %4027 = vst [vmem:[#allocation3 + $0x28] sm:$0xff] %v3995
        %4028 = vst [vmem:[#allocation3 + $0x30] sm:$0xff] %v3996
        %4029 = vst [vmem:[#allocation3 + $0x38] sm:$0xff] %v3997
        %4030 = vst [vmem:[#allocation3 + $0x40] sm:$0xff] %v3998
        %4031 = vst [vmem:[#allocation3 + $0x48] sm:$0xff] %v3999
        %4032 = vst [vmem:[#allocation3 + $0x50] sm:$0xff] %v4000
        %4033 = vst [vmem:[#allocation3 + $0x58] sm:$0xff] %v4001
        %4034 = vst [vmem:[#allocation3 + $0x60] sm:$0xff] %v4002
        %4035 = vst [vmem:[#allocation3 + $0x68] sm:$0xff] %v4003
        %4036 = vst [vmem:[#allocation3 + $0x70] sm:$0xff] %v4004
        %4037 = vst [vmem:[#allocation3 + $0x78] sm:$0xff] %v4005
        %4038 = vst [vmem:[#allocation3 + $0x80] sm:$0xff] %v4006
        %4039 = vst [vmem:[#allocation3 + $0x88] sm:$0xff] %v4007
        %4040 = vst [vmem:[#allocation3 + $0x90] sm:$0xff] %v4008
        %4041 = vst [vmem:[#allocation3 + $0x98] sm:$0xff] %v4009
        %4042 = vst [vmem:[#allocation3 + $0xa0] sm:$0xff] %v4010
        %4043 = vst [vmem:[#allocation3 + $0xa8] sm:$0xff] %v4011
        %4044 = vst [vmem:[#allocation3 + $0xb0] sm:$0xff] %v4012
        %4045 = vst [vmem:[#allocation3 + $0xb8] sm:$0xff] %v4013
        %4046 = vst [vmem:[#allocation3 + $0xc0] sm:$0xff] %v4014
        %4047 = vst [vmem:[#allocation3 + $0xc8] sm:$0xff] %v4015
        %4048 = vst [vmem:[#allocation3 + $0xd0] sm:$0xff] %v4016
        %4049 = vst [vmem:[#allocation3 + $0xd8] sm:$0xff] %v4017
        %4050 = vst [vmem:[#allocation3 + $0xe0] sm:$0xff] %v4018
        %4051 = vst [vmem:[#allocation3 + $0xe8] sm:$0xff] %v4019
        %4052 = vst [vmem:[#allocation3 + $0xf0] sm:$0xff] %v4020
        %4053 = vst [vmem:[#allocation3 + $0xf8] sm:$0xff] %v4021
        %v4054 = vld [vmem:[#allocation3] sm:$0xff]
        %v4055 = vld [vmem:[#allocation3 + $0x8] sm:$0xff]
        %v4056 = vld [vmem:[#allocation3 + $0x10] sm:$0xff]
        %v4057 = vld [vmem:[#allocation3 + $0x18] sm:$0xff]
        %v4058 = vld [vmem:[#allocation3 + $0x20] sm:$0xff]
        %v4059 = vld [vmem:[#allocation3 + $0x28] sm:$0xff]
        %v4060 = vld [vmem:[#allocation3 + $0x30] sm:$0xff]
        %v4061 = vld [vmem:[#allocation3 + $0x38] sm:$0xff]
        %v4062 = vld [vmem:[#allocation3 + $0x40] sm:$0xff]
        %v4063 = vld [vmem:[#allocation3 + $0x48] sm:$0xff]
        %v4064 = vld [vmem:[#allocation3 + $0x50] sm:$0xff]
        %v4065 = vld [vmem:[#allocation3 + $0x58] sm:$0xff]
        %v4066 = vld [vmem:[#allocation3 + $0x60] sm:$0xff]
        %v4067 = vld [vmem:[#allocation3 + $0x68] sm:$0xff]
        %v4068 = vld [vmem:[#allocation3 + $0x70] sm:$0xff]
        %v4069 = vld [vmem:[#allocation3 + $0x78] sm:$0xff]
        %v4070 = vld [vmem:[#allocation3 + $0x80] sm:$0xff]
        %v4071 = vld [vmem:[#allocation3 + $0x88] sm:$0xff]
        %v4072 = vld [vmem:[#allocation3 + $0x90] sm:$0xff]
        %v4073 = vld [vmem:[#allocation3 + $0x98] sm:$0xff]
        %v4074 = vld [vmem:[#allocation3 + $0xa0] sm:$0xff]
        %v4075 = vld [vmem:[#allocation3 + $0xa8] sm:$0xff]
        %v4076 = vld [vmem:[#allocation3 + $0xb0] sm:$0xff]
        %v4077 = vld [vmem:[#allocation3 + $0xb8] sm:$0xff]
        %v4078 = vld [vmem:[#allocation3 + $0xc0] sm:$0xff]
        %v4079 = vld [vmem:[#allocation3 + $0xc8] sm:$0xff]
        %v4080 = vld [vmem:[#allocation3 + $0xd0] sm:$0xff]
        %v4081 = vld [vmem:[#allocation3 + $0xd8] sm:$0xff]
        %v4082 = vld [vmem:[#allocation3 + $0xe0] sm:$0xff]
        %v4083 = vld [vmem:[#allocation3 + $0xe8] sm:$0xff]
        %v4084 = vld [vmem:[#allocation3 + $0xf0] sm:$0xff]
        %v4085 = vld [vmem:[#allocation3 + $0xf8] sm:$0xff]
        %v4086 = vld [vmem:[%s7] sm:$0x1]
        %v4088 = vlaneseq
        %v4089 = vshrl.u32 %v4088, 7
        %v4090 = vsub.s32 0, %v4089
        %v4091 = vrot.slane %v4086, %v4090
        %v4093 = vadd.f32 %v4054, %v4091
        %v4094 = vadd.f32 %v4055, %v4091
        %v4095 = vadd.f32 %v4056, %v4091
        %v4096 = vadd.f32 %v4057, %v4091
        %v4097 = vadd.f32 %v4058, %v4091
        %v4098 = vadd.f32 %v4059, %v4091
        %v4099 = vadd.f32 %v4060, %v4091
        %v4100 = vadd.f32 %v4061, %v4091
        %v4101 = vadd.f32 %v4062, %v4091
        %v4102 = vadd.f32 %v4063, %v4091
        %v4103 = vadd.f32 %v4064, %v4091
        %v4104 = vadd.f32 %v4065, %v4091
        %v4105 = vadd.f32 %v4066, %v4091
        %v4106 = vadd.f32 %v4067, %v4091
        %v4107 = vadd.f32 %v4068, %v4091
        %v4108 = vadd.f32 %v4069, %v4091
        %v4109 = vadd.f32 %v4070, %v4091
        %v4110 = vadd.f32 %v4071, %v4091
        %v4111 = vadd.f32 %v4072, %v4091
        %v4112 = vadd.f32 %v4073, %v4091
        %v4113 = vadd.f32 %v4074, %v4091
        %v4114 = vadd.f32 %v4075, %v4091
        %v4115 = vadd.f32 %v4076, %v4091
        %v4116 = vadd.f32 %v4077, %v4091
        %v4117 = vadd.f32 %v4078, %v4091
        %v4118 = vadd.f32 %v4079, %v4091
        %v4119 = vadd.f32 %v4080, %v4091
        %v4120 = vadd.f32 %v4081, %v4091
        %v4121 = vadd.f32 %v4082, %v4091
        %v4122 = vadd.f32 %v4083, %v4091
        %v4123 = vadd.f32 %v4084, %v4091
        %v4124 = vadd.f32 %v4085, %v4091
        %4125 = vst [vmem:[%s352] sm:$0xff] %v4093
        %4126 = vst [vmem:[%s352 + $0x8] sm:$0xff] %v4094
        %4127 = vst [vmem:[%s352 + $0x10] sm:$0xff] %v4095
        %4128 = vst [vmem:[%s352 + $0x18] sm:$0xff] %v4096
        %4129 = vst [vmem:[%s352 + $0x20] sm:$0xff] %v4097
        %4130 = vst [vmem:[%s352 + $0x28] sm:$0xff] %v4098
        %4131 = vst [vmem:[%s352 + $0x30] sm:$0xff] %v4099
        %4132 = vst [vmem:[%s352 + $0x38] sm:$0xff] %v4100
        %4133 = vst [vmem:[%s352 + $0x40] sm:$0xff] %v4101
        %4134 = vst [vmem:[%s352 + $0x48] sm:$0xff] %v4102
        %4135 = vst [vmem:[%s352 + $0x50] sm:$0xff] %v4103
        %4136 = vst [vmem:[%s352 + $0x58] sm:$0xff] %v4104
        %4137 = vst [vmem:[%s352 + $0x60] sm:$0xff] %v4105
        %4138 = vst [vmem:[%s352 + $0x68] sm:$0xff] %v4106
        %4139 = vst [vmem:[%s352 + $0x70] sm:$0xff] %v4107
        %4140 = vst [vmem:[%s352 + $0x78] sm:$0xff] %v4108
        %4141 = vst [vmem:[%s352 + $0x80] sm:$0xff] %v4109
        %4142 = vst [vmem:[%s352 + $0x88] sm:$0xff] %v4110
        %4143 = vst [vmem:[%s352 + $0x90] sm:$0xff] %v4111
        %4144 = vst [vmem:[%s352 + $0x98] sm:$0xff] %v4112
        %4145 = vst [vmem:[%s352 + $0xa0] sm:$0xff] %v4113
        %4146 = vst [vmem:[%s352 + $0xa8] sm:$0xff] %v4114
        %4147 = vst [vmem:[%s352 + $0xb0] sm:$0xff] %v4115
        %4148 = vst [vmem:[%s352 + $0xb8] sm:$0xff] %v4116
        %4149 = vst [vmem:[%s352 + $0xc0] sm:$0xff] %v4117
        %4150 = vst [vmem:[%s352 + $0xc8] sm:$0xff] %v4118
        %4151 = vst [vmem:[%s352 + $0xd0] sm:$0xff] %v4119
        %4152 = vst [vmem:[%s352 + $0xd8] sm:$0xff] %v4120
        %4153 = vst [vmem:[%s352 + $0xe0] sm:$0xff] %v4121
        %4154 = vst [vmem:[%s352 + $0xe8] sm:$0xff] %v4122
        %4155 = vst [vmem:[%s352 + $0xf0] sm:$0xff] %v4123
        %4156 = vst [vmem:[%s352 + $0xf8] sm:$0xff] %v4124
        %s4157 = sand.u32 %s207, 1
        %s4158 = scalar_lea.sflag [#allocation6], %s4157
        %s4159 = sand.u32 %s207, 1
        %s4160 = smul.addr %s4159, 256
        %s4161 = scalar_lea.vmem [#allocation10], %s4160
        // Predicated region
        $region65: #{tpu_custom_call.1} parent=51 // pred_check
          %p4162 = pneg %p217
        $region66: #{tpu_custom_call.1} parent=51 // pred_check_branch
          %4164 = sbr.rel (%p4162) target = $region68
        $region67: #{tpu_custom_call.1} parent=51 // pred_region
          %s4166 = ssub.s32 4096, 4096
          %4167 = vsyncadd %s4158, %s4166
          %s4168 = smul.addr %s26, 32
          %s4169 = smul.addr %s4168, 128
          %s4170 = scalar_lea.hbm %s8, %s4169
          %s4171 = sshll.u32 %s4161, 4
          %s4172 = int_to_ptr.vmem [resolvable:$true] %s4171
          %4177 = dma.vmem_to_hbm [thread:$0]  %s4172, 4096, %s4170, %s4158, 128, 128, 8
        $region68: #{tpu_custom_call.1} parent=51 // pred_fallthru
          _
      $region52: #{tpu_custom_call.1} parent=5 // pred_fallthru
        _
      %p4178 = scmp.le.s32.totalorder 2, %s21
      // Predicated region
      $region69: #{tpu_custom_call.1} parent=5 // pred_check
        %p4179 = pneg %p4178
      $region70: #{tpu_custom_call.1} parent=5 // pred_check_branch
        %4181 = sbr.rel (%p4179) target = $region72
      $region71: #{tpu_custom_call.1} parent=5 // pred_region
        %s4182 = ssub.s32 %s21, 2
        // Predicated region
        $region73: #{tpu_custom_call.1} parent=71 // pred_check
          %p4183 = pneg %p223
        $region74: #{tpu_custom_call.1} parent=71 // pred_check_branch
          %4185 = sbr.rel (%p4183) target = $region76
        $region75: #{tpu_custom_call.1} parent=71 // pred_region
          %s4186 = sand.u32 %s208, 1
          %s4187 = scalar_lea.sflag [#allocation6], %s4186
          %s4188 = sand.u32 %s208, 1
          %s4189 = smul.addr %s4188, 256
          %s4190 = scalar_lea.vmem [#allocation10], %s4189
          %4191 = dma.done %s4187, 4096
        $region76: #{tpu_custom_call.1} parent=71 // pred_fallthru
          _
      $region72: #{tpu_custom_call.1} parent=5 // pred_fallthru
        _
    $region6: #{tpu_custom_call.1} parent=1 // loop_footer
      %s25 = sadd.s32 1, %s21
    $region7: #{tpu_custom_call.1} parent=1 // loop_footer_branch
      %20 = sbr.rel target = $region3
    $region8: #{tpu_custom_call.1} parent=1 // loop_exit
      _
    %4192 = vsyncpa [#allocation5], 1
    %s4193 = scalar_lea.sflag [#allocation5], 1
    %4194 = vsyncpa %s4193, 1
    %4195 = vsyncpa [#allocation8], 1
    %4196 = vsyncpa [#allocation6], 1
    %s4197 = scalar_lea.sflag [#allocation6], 1
    %4198 = vsyncpa %s4197, 1

</llo_original>
